<compile_context>
chip_gen: v7x
topology: tpu7x:2x2x1
jax: 0.10.0
libtpu: 0.0.40
codegen_flags: <defaults>
</compile_context>

<pallas_src>
import jax
import jax.numpy as jnp
from jax import lax
from jax.experimental import pallas as pl
from jax.experimental.pallas import tpu as pltpu


def _residual_block_kernel(xpad_ref, w1_ref, b1_ref, w2_ref, b2_ref,
                           o_ref, h1_pad, patch):
    # xpad_ref: (1, H+2, W+2, Cp)  zero-padded (spatial halo + channel pad) input
    # w1_ref  : (9*Cp, Cp)         conv1 weights, tap-major, BN1 scale folded in
    # b1_ref  : (1, Cp)            folded BN1 bias (+ conv1 bias)
    # w2_ref  : (9*Cp, Cp)         conv2 weights, BN2 scale folded in
    # b2_ref  : (1, Cp)            folded BN2 bias (+ conv2 bias)
    # o_ref   : (1, H, W, Cp)
    # h1_pad  : VMEM scratch (H+2, W+2, Cp) -- zero-padded conv1 output
    # patch   : VMEM scratch (H, W, 9*Cp)   -- im2col patches (reused by conv2)
    _, Hp, Wp, Cp = xpad_ref.shape
    H, W = Hp - 2, Wp - 2
    K9 = 9 * Cp

    # ---- conv1 (3x3, stride 1, pad 1): im2col -> one MXU matmul (K = 9*Cp) ----
    for dy in range(3):
        for dx in range(3):
            k = dy * 3 + dx
            patch[:, :, k * Cp:(k + 1) * Cp] = xpad_ref[0, dy:dy + H, dx:dx + W, :]
    acc1 = jnp.dot(patch[...].reshape(H * W, K9), w1_ref[...],
                   preferred_element_type=jnp.float32)
    h1 = jnp.maximum(acc1 + b1_ref[...], 0.0)          # folded BN1 + ReLU

    # ---- stage padded conv1 output: zero only the 1-px halo, store interior ----
    h1_pad[0:1, :, :] = jnp.zeros((1, Wp, Cp), jnp.float32)
    h1_pad[Hp - 1:Hp, :, :] = jnp.zeros((1, Wp, Cp), jnp.float32)
    h1_pad[:, 0:1, :] = jnp.zeros((Hp, 1, Cp), jnp.float32)
    h1_pad[:, Wp - 1:Wp, :] = jnp.zeros((Hp, 1, Cp), jnp.float32)
    h1_pad[1:1 + H, 1:1 + W, :] = h1.reshape(H, W, Cp)

    # ---- conv2 (3x3, stride 1, pad 1): same im2col trick ----
    for dy in range(3):
        for dx in range(3):
            k = dy * 3 + dx
            patch[:, :, k * Cp:(k + 1) * Cp] = h1_pad[dy:dy + H, dx:dx + W, :]
    acc2 = jnp.dot(patch[...].reshape(H * W, K9), w2_ref[...],
                   preferred_element_type=jnp.float32)

    # Residual comes from the interior of the single padded input stream.
    res = xpad_ref[0, 1:1 + H, 1:1 + W, :].reshape(H * W, Cp)
    out = acc2 + b2_ref[...] + res                     # folded BN2 + residual
    o_ref[0] = jnp.maximum(out, 0.0).reshape(H, W, Cp)  # final ReLU


def residual_block_pallas(x_nchw, params, eps=1e-5):
    """x_nchw: (N, C, H, W) float32. params: dict of torch-layout tensors."""
    N, C, H, W = x_nchw.shape
    Cout = params["w1"].shape[0]
    assert C == Cout, "residual add requires in_channels == out_channels"
    Cp = ((C + 127) // 128) * 128          # pad channels to the 128-lane width

    # NCHW -> NHWC, pad channels + 1-px spatial halo. This is the ONLY
    # activation stream; the kernel reads the residual from its interior.
    x = jnp.transpose(x_nchw, (0, 2, 3, 1)).astype(jnp.float32)
    x_pad = jnp.pad(x, ((0, 0), (1, 1), (1, 1), (0, Cp - C)))

    # Fold conv bias + BN (eval mode): scale goes into the weights, so the
    # kernel only adds a per-channel bias.
    def fold(w_oihw, conv_b, gamma, beta, mean, var):
        scale = gamma / jnp.sqrt(var + eps)                       # (Cout,)
        w = jnp.transpose(w_oihw, (2, 3, 1, 0)) * scale           # HWIO, scaled
        b = (conv_b - mean) * scale + beta
        w = jnp.pad(w, ((0, 0), (0, 0), (0, Cp - C), (0, Cp - C)))
        b = jnp.pad(b, (0, Cp - C))
        # (3,3,Cp,Cp) -> (9*Cp, Cp): row index = (dy*3+dx)*Cp + cin, matching
        # the im2col patch layout built in the kernel.
        return (w.reshape(9 * Cp, Cp).astype(jnp.float32),
                b.reshape(1, Cp).astype(jnp.float32))

    w1, b1 = fold(params["w1"], params["b1"], params["g1"], params["be1"],
                  params["m1"], params["v1"])
    w2, b2 = fold(params["w2"], params["b2"], params["g2"], params["be2"],
                  params["m2"], params["v2"])

    full = lambda shape: pl.BlockSpec(shape, lambda n: (0,) * len(shape))

    out_nhwc = pl.pallas_call(
        _residual_block_kernel,
        out_shape=jax.ShapeDtypeStruct((N, H, W, Cp), jnp.float32),
        grid_spec=pltpu.PrefetchScalarGridSpec(
            num_scalar_prefetch=0,
            grid=(N,),
            in_specs=[
                pl.BlockSpec((1, H + 2, W + 2, Cp), lambda n: (n, 0, 0, 0)),
                full((9 * Cp, Cp)),
                full((1, Cp)),
                full((9 * Cp, Cp)),
                full((1, Cp)),
            ],
            out_specs=pl.BlockSpec((1, H, W, Cp), lambda n: (n, 0, 0, 0)),
            scratch_shapes=[
                pltpu.VMEM((H + 2, W + 2, Cp), jnp.float32),   # padded conv1 out
                pltpu.VMEM((H, W, 9 * Cp), jnp.float32),       # im2col patches
            ],
        ),
        compiler_params=pltpu.CompilerParams(
            dimension_semantics=("parallel",),
            vmem_limit_bytes=64 * 1024 * 1024,
        ),
    )(x_pad, w1, b1, w2, b2)

    # Drop channel padding, back to NCHW (keep the whole model NHWC end-to-end
    # in real use to avoid these transposes).
    return jnp.transpose(out_nhwc[:, :, :, :C], (0, 3, 1, 2))


def residual_block_ref(x, p, eps=1e-5):
    """Pure-JAX reference mirroring the PyTorch module (BN in eval mode)."""
    def conv(x, w, b):
        y = lax.conv_general_dilated(
            x, w, window_strides=(1, 1), padding=((1, 1), (1, 1)),
            dimension_numbers=("NCHW", "OIHW", "NCHW"))
        return y + b[None, :, None, None]

    def bn(x, g, be, m, v):
        return (g[None, :, None, None] * (x - m[None, :, None, None])
                / jnp.sqrt(v[None, :, None, None] + eps)
                + be[None, :, None, None])

    h = jax.nn.relu(bn(conv(x, p["w1"], p["b1"]), p["g1"], p["be1"],
                       p["m1"], p["v1"]))
    h = bn(conv(h, p["w2"], p["b2"]), p["g2"], p["be2"], p["m2"], p["v2"])
    return jax.nn.relu(h + x)


if __name__ == "__main__":
    N, C, H, W = 2, 4, 16, 16  # small shapes; in_channels == out_channels
    key = jax.random.PRNGKey(0)
    ks = jax.random.split(key, 12)

    params = {
        "w1": 0.1 * jax.random.normal(ks[0], (C, C, 3, 3), jnp.float32),
        "b1": 0.1 * jax.random.normal(ks[1], (C,), jnp.float32),
        "g1": 1.0 + 0.1 * jax.random.normal(ks[2], (C,), jnp.float32),
        "be1": 0.1 * jax.random.normal(ks[3], (C,), jnp.float32),
        "m1": 0.05 * jax.random.normal(ks[4], (C,), jnp.float32),
        "v1": 1.0 + 0.1 * jax.random.uniform(ks[5], (C,), jnp.float32),
        "w2": 0.1 * jax.random.normal(ks[6], (C, C, 3, 3), jnp.float32),
        "b2": 0.1 * jax.random.normal(ks[7], (C,), jnp.float32),
        "g2": 1.0 + 0.1 * jax.random.normal(ks[8], (C,), jnp.float32),
        "be2": 0.1 * jax.random.normal(ks[9], (C,), jnp.float32),
        "m2": 0.05 * jax.random.normal(ks[10], (C,), jnp.float32),
        "v2": 1.0 + 0.1 * jax.random.uniform(ks[11], (C,), jnp.float32),
    }

    x = jax.random.normal(key, (N, C, H, W), jnp.float32)

    out = jax.block_until_ready(residual_block_pallas(x, params))
    ref = jax.block_until_ready(residual_block_ref(x, params))

    assert out.shape == (N, C, H, W)
    assert jnp.allclose(out, ref, atol=5e-4, rtol=5e-4), \
        f"max abs err {jnp.max(jnp.abs(out - ref))}"
    print("KERNEL_OK")
</pallas_src>

<mosaic_0001>
module attributes {stable_mosaic.version = 11 : i64} {
  func.func @_residual_block_kernel(%arg0: i32, %arg1: memref<1x18x18x128xf32, #tpu.memory_space<vmem>>, %arg2: memref<1152x128xf32, #tpu.memory_space<vmem>>, %arg3: memref<1x128xf32, #tpu.memory_space<vmem>>, %arg4: memref<1152x128xf32, #tpu.memory_space<vmem>>, %arg5: memref<1x128xf32, #tpu.memory_space<vmem>>, %arg6: memref<1x16x16x128xf32, #tpu.memory_space<vmem>>, %arg7: memref<18x18x128xf32, #tpu.memory_space<vmem>>, %arg8: memref<16x16x1152xf32, #tpu.memory_space<vmem>>) attributes {dimension_semantics = [#tpu.dimension_semantics<parallel>], iteration_bounds = array<i64: 2>, scalar_prefetch = 0 : i64, scratch_operands = 2 : i64, tpu.core_type = #tpu.core_type<tc>, window_params = [{transform_indices = @transform_0, window_bounds = array<i64: 1, 18, 18, 128>}, {pipeline_mode = #tpu.pipeline_mode<synchronous>, transform_indices = @transform_1, window_bounds = array<i64: 1152, 128>}, {pipeline_mode = #tpu.pipeline_mode<synchronous>, transform_indices = @transform_2, window_bounds = array<i64: 1, 128>}, {pipeline_mode = #tpu.pipeline_mode<synchronous>, transform_indices = @transform_3, window_bounds = array<i64: 1152, 128>}, {pipeline_mode = #tpu.pipeline_mode<synchronous>, transform_indices = @transform_4, window_bounds = array<i64: 1, 128>}, {transform_indices = @transform_5, window_bounds = array<i64: 1, 16, 16, 128>}]} {
    %c0 = arith.constant 0 : index
    %c0_0 = arith.constant 0 : index
    %c0_1 = arith.constant 0 : index
    %c0_2 = arith.constant 0 : index
    %0 = vector.load %arg1[%c0, %c0_0, %c0_1, %c0_2] : memref<1x18x18x128xf32, #tpu.memory_space<vmem>>, vector<1x16x16x128xf32>
    %1 = vector.shape_cast %0 : vector<1x16x16x128xf32> to vector<16x16x128xf32>
    %c0_3 = arith.constant 0 : index
    %c0_4 = arith.constant 0 : index
    %c0_5 = arith.constant 0 : index
    %2 = vector.load %arg8[%c0_3, %c0_4, %c0_5] : memref<16x16x1152xf32, #tpu.memory_space<vmem>>, vector<16x16x128xf32>
    tpu.vector_store %arg8[%c0_3, %c0_4, %c0_5], %1 {strides = array<i32>} : memref<16x16x1152xf32, #tpu.memory_space<vmem>>, vector<16x16x128xf32>,
    %c0_6 = arith.constant 0 : index
    %c0_7 = arith.constant 0 : index
    %c1 = arith.constant 1 : index
    %c0_8 = arith.constant 0 : index
    %3 = vector.load %arg1[%c0_6, %c0_7, %c1, %c0_8] : memref<1x18x18x128xf32, #tpu.memory_space<vmem>>, vector<1x16x16x128xf32>
    %4 = vector.shape_cast %3 : vector<1x16x16x128xf32> to vector<16x16x128xf32>
    %c0_9 = arith.constant 0 : index
    %c0_10 = arith.constant 0 : index
    %c128 = arith.constant 128 : index
    %5 = vector.load %arg8[%c0_9, %c0_10, %c128] : memref<16x16x1152xf32, #tpu.memory_space<vmem>>, vector<16x16x128xf32>
    tpu.vector_store %arg8[%c0_9, %c0_10, %c128], %4 {strides = array<i32>} : memref<16x16x1152xf32, #tpu.memory_space<vmem>>, vector<16x16x128xf32>,
    %c0_11 = arith.constant 0 : index
    %c0_12 = arith.constant 0 : index
    %c2 = arith.constant 2 : index
    %c0_13 = arith.constant 0 : index
    %6 = vector.load %arg1[%c0_11, %c0_12, %c2, %c0_13] : memref<1x18x18x128xf32, #tpu.memory_space<vmem>>, vector<1x16x16x128xf32>
    %7 = vector.shape_cast %6 : vector<1x16x16x128xf32> to vector<16x16x128xf32>
    %c0_14 = arith.constant 0 : index
    %c0_15 = arith.constant 0 : index
    %c256 = arith.constant 256 : index
    %8 = vector.load %arg8[%c0_14, %c0_15, %c256] : memref<16x16x1152xf32, #tpu.memory_space<vmem>>, vector<16x16x128xf32>
    tpu.vector_store %arg8[%c0_14, %c0_15, %c256], %7 {strides = array<i32>} : memref<16x16x1152xf32, #tpu.memory_space<vmem>>, vector<16x16x128xf32>,
    %c0_16 = arith.constant 0 : index
    %c1_17 = arith.constant 1 : index
    %c0_18 = arith.constant 0 : index
    %c0_19 = arith.constant 0 : index
    %9 = vector.load %arg1[%c0_16, %c1_17, %c0_18, %c0_19] : memref<1x18x18x128xf32, #tpu.memory_space<vmem>>, vector<1x16x16x128xf32>
    %10 = vector.shape_cast %9 : vector<1x16x16x128xf32> to vector<16x16x128xf32>
    %c0_20 = arith.constant 0 : index
    %c0_21 = arith.constant 0 : index
    %c384 = arith.constant 384 : index
    %11 = vector.load %arg8[%c0_20, %c0_21, %c384] : memref<16x16x1152xf32, #tpu.memory_space<vmem>>, vector<16x16x128xf32>
    tpu.vector_store %arg8[%c0_20, %c0_21, %c384], %10 {strides = array<i32>} : memref<16x16x1152xf32, #tpu.memory_space<vmem>>, vector<16x16x128xf32>,
    %c0_22 = arith.constant 0 : index
    %c1_23 = arith.constant 1 : index
    %c1_24 = arith.constant 1 : index
    %c0_25 = arith.constant 0 : index
    %12 = vector.load %arg1[%c0_22, %c1_23, %c1_24, %c0_25] : memref<1x18x18x128xf32, #tpu.memory_space<vmem>>, vector<1x16x16x128xf32>
    %13 = vector.shape_cast %12 : vector<1x16x16x128xf32> to vector<16x16x128xf32>
    %c0_26 = arith.constant 0 : index
    %c0_27 = arith.constant 0 : index
    %c512 = arith.constant 512 : index
    %14 = vector.load %arg8[%c0_26, %c0_27, %c512] : memref<16x16x1152xf32, #tpu.memory_space<vmem>>, vector<16x16x128xf32>
    tpu.vector_store %arg8[%c0_26, %c0_27, %c512], %13 {strides = array<i32>} : memref<16x16x1152xf32, #tpu.memory_space<vmem>>, vector<16x16x128xf32>,
    %c0_28 = arith.constant 0 : index
    %c1_29 = arith.constant 1 : index
    %c2_30 = arith.constant 2 : index
    %c0_31 = arith.constant 0 : index
    %15 = vector.load %arg1[%c0_28, %c1_29, %c2_30, %c0_31] : memref<1x18x18x128xf32, #tpu.memory_space<vmem>>, vector<1x16x16x128xf32>
    %16 = vector.shape_cast %15 : vector<1x16x16x128xf32> to vector<16x16x128xf32>
    %c0_32 = arith.constant 0 : index
    %c0_33 = arith.constant 0 : index
    %c640 = arith.constant 640 : index
    %17 = vector.load %arg8[%c0_32, %c0_33, %c640] : memref<16x16x1152xf32, #tpu.memory_space<vmem>>, vector<16x16x128xf32>
    tpu.vector_store %arg8[%c0_32, %c0_33, %c640], %16 {strides = array<i32>} : memref<16x16x1152xf32, #tpu.memory_space<vmem>>, vector<16x16x128xf32>,
    %c0_34 = arith.constant 0 : index
    %c2_35 = arith.constant 2 : index
    %c0_36 = arith.constant 0 : index
    %c0_37 = arith.constant 0 : index
    %18 = vector.load %arg1[%c0_34, %c2_35, %c0_36, %c0_37] : memref<1x18x18x128xf32, #tpu.memory_space<vmem>>, vector<1x16x16x128xf32>
    %19 = vector.shape_cast %18 : vector<1x16x16x128xf32> to vector<16x16x128xf32>
    %c0_38 = arith.constant 0 : index
    %c0_39 = arith.constant 0 : index
    %c768 = arith.constant 768 : index
    %20 = vector.load %arg8[%c0_38, %c0_39, %c768] : memref<16x16x1152xf32, #tpu.memory_space<vmem>>, vector<16x16x128xf32>
    tpu.vector_store %arg8[%c0_38, %c0_39, %c768], %19 {strides = array<i32>} : memref<16x16x1152xf32, #tpu.memory_space<vmem>>, vector<16x16x128xf32>,
    %c0_40 = arith.constant 0 : index
    %c2_41 = arith.constant 2 : index
    %c1_42 = arith.constant 1 : index
    %c0_43 = arith.constant 0 : index
    %21 = vector.load %arg1[%c0_40, %c2_41, %c1_42, %c0_43] : memref<1x18x18x128xf32, #tpu.memory_space<vmem>>, vector<1x16x16x128xf32>
    %22 = vector.shape_cast %21 : vector<1x16x16x128xf32> to vector<16x16x128xf32>
    %c0_44 = arith.constant 0 : index
    %c0_45 = arith.constant 0 : index
    %c896 = arith.constant 896 : index
    %23 = vector.load %arg8[%c0_44, %c0_45, %c896] : memref<16x16x1152xf32, #tpu.memory_space<vmem>>, vector<16x16x128xf32>
    tpu.vector_store %arg8[%c0_44, %c0_45, %c896], %22 {strides = array<i32>} : memref<16x16x1152xf32, #tpu.memory_space<vmem>>, vector<16x16x128xf32>,
    %c0_46 = arith.constant 0 : index
    %c2_47 = arith.constant 2 : index
    %c2_48 = arith.constant 2 : index
    %c0_49 = arith.constant 0 : index
    %24 = vector.load %arg1[%c0_46, %c2_47, %c2_48, %c0_49] : memref<1x18x18x128xf32, #tpu.memory_space<vmem>>, vector<1x16x16x128xf32>
    %25 = vector.shape_cast %24 : vector<1x16x16x128xf32> to vector<16x16x128xf32>
    %c0_50 = arith.constant 0 : index
    %c0_51 = arith.constant 0 : index
    %c1024 = arith.constant 1024 : index
    %26 = vector.load %arg8[%c0_50, %c0_51, %c1024] : memref<16x16x1152xf32, #tpu.memory_space<vmem>>, vector<16x16x128xf32>
    tpu.vector_store %arg8[%c0_50, %c0_51, %c1024], %25 {strides = array<i32>} : memref<16x16x1152xf32, #tpu.memory_space<vmem>>, vector<16x16x128xf32>,
    %c0_52 = arith.constant 0 : index
    %c0_53 = arith.constant 0 : index
    %c0_54 = arith.constant 0 : index
    %27 = vector.load %arg8[%c0_52, %c0_53, %c0_54] : memref<16x16x1152xf32, #tpu.memory_space<vmem>>, vector<16x16x1152xf32>
    %28 = vector.shape_cast %27 : vector<16x16x1152xf32> to vector<256x1152xf32>
    %c0_55 = arith.constant 0 : index
    %c0_56 = arith.constant 0 : index
    %29 = vector.load %arg2[%c0_55, %c0_56] : memref<1152x128xf32, #tpu.memory_space<vmem>>, vector<1152x128xf32>
    %cst = arith.constant dense<0.000000e+00> : vector<256x128xf32>
    %30 = tpu.matmul %28, %29, %cst {dimension_numbers = #tpu.dot_dimension_numbers<[1], [0], [0], [1], [0, 0, 1, 1], [], []>} : vector<256x1152xf32>, vector<1152x128xf32>, vector<256x128xf32> -> vector<256x128xf32>
    %c0_57 = arith.constant 0 : index
    %c0_58 = arith.constant 0 : index
    %31 = vector.load %arg3[%c0_57, %c0_58] : memref<1x128xf32, #tpu.memory_space<vmem>>, vector<1x128xf32>
    %32 = vector.broadcast %31 : vector<1x128xf32> to vector<256x128xf32>
    %33 = arith.addf %30, %32 : vector<256x128xf32>
    %cst_59 = arith.constant 0.000000e+00 : f32
    %34 = vector.broadcast %cst_59 : f32 to vector<256x128xf32>
    %35 = arith.maximumf %33, %34 : vector<256x128xf32>
    %cst_60 = arith.constant 0.000000e+00 : f32
    %36 = vector.broadcast %cst_60 : f32 to vector<1x18x128xf32>
    %c0_61 = arith.constant 0 : index
    %c0_62 = arith.constant 0 : index
    %c0_63 = arith.constant 0 : index
    %37 = vector.load %arg7[%c0_61, %c0_62, %c0_63] : memref<18x18x128xf32, #tpu.memory_space<vmem>>, vector<1x18x128xf32>
    tpu.vector_store %arg7[%c0_61, %c0_62, %c0_63], %36 {strides = array<i32>} : memref<18x18x128xf32, #tpu.memory_space<vmem>>, vector<1x18x128xf32>,
    %cst_64 = arith.constant 0.000000e+00 : f32
    %38 = vector.broadcast %cst_64 : f32 to vector<1x18x128xf32>
    %c17 = arith.constant 17 : index
    %c0_65 = arith.constant 0 : index
    %c0_66 = arith.constant 0 : index
    %39 = vector.load %arg7[%c17, %c0_65, %c0_66] : memref<18x18x128xf32, #tpu.memory_space<vmem>>, vector<1x18x128xf32>
    tpu.vector_store %arg7[%c17, %c0_65, %c0_66], %38 {strides = array<i32>} : memref<18x18x128xf32, #tpu.memory_space<vmem>>, vector<1x18x128xf32>,
    %cst_67 = arith.constant 0.000000e+00 : f32
    %40 = vector.broadcast %cst_67 : f32 to vector<18x1x128xf32>
    %c0_68 = arith.constant 0 : index
    %c0_69 = arith.constant 0 : index
    %c0_70 = arith.constant 0 : index
    %41 = vector.load %arg7[%c0_68, %c0_69, %c0_70] : memref<18x18x128xf32, #tpu.memory_space<vmem>>, vector<18x1x128xf32>
    tpu.vector_store %arg7[%c0_68, %c0_69, %c0_70], %40 {strides = array<i32>} : memref<18x18x128xf32, #tpu.memory_space<vmem>>, vector<18x1x128xf32>,
    %cst_71 = arith.constant 0.000000e+00 : f32
    %42 = vector.broadcast %cst_71 : f32 to vector<18x1x128xf32>
    %c0_72 = arith.constant 0 : index
    %c17_73 = arith.constant 17 : index
    %c0_74 = arith.constant 0 : index
    %43 = vector.load %arg7[%c0_72, %c17_73, %c0_74] : memref<18x18x128xf32, #tpu.memory_space<vmem>>, vector<18x1x128xf32>
    tpu.vector_store %arg7[%c0_72, %c17_73, %c0_74], %42 {strides = array<i32>} : memref<18x18x128xf32, #tpu.memory_space<vmem>>, vector<18x1x128xf32>,
    %44 = vector.shape_cast %35 : vector<256x128xf32> to vector<16x16x128xf32>
    %c1_75 = arith.constant 1 : index
    %c1_76 = arith.constant 1 : index
    %c0_77 = arith.constant 0 : index
    %45 = vector.load %arg7[%c1_75, %c1_76, %c0_77] : memref<18x18x128xf32, #tpu.memory_space<vmem>>, vector<16x16x128xf32>
    tpu.vector_store %arg7[%c1_75, %c1_76, %c0_77], %44 {strides = array<i32>} : memref<18x18x128xf32, #tpu.memory_space<vmem>>, vector<16x16x128xf32>,
    %c0_78 = arith.constant 0 : index
    %c0_79 = arith.constant 0 : index
    %c0_80 = arith.constant 0 : index
    %46 = vector.load %arg7[%c0_78, %c0_79, %c0_80] : memref<18x18x128xf32, #tpu.memory_space<vmem>>, vector<16x16x128xf32>
    %c0_81 = arith.constant 0 : index
    %c0_82 = arith.constant 0 : index
    %c0_83 = arith.constant 0 : index
    %47 = vector.load %arg8[%c0_81, %c0_82, %c0_83] : memref<16x16x1152xf32, #tpu.memory_space<vmem>>, vector<16x16x128xf32>
    tpu.vector_store %arg8[%c0_81, %c0_82, %c0_83], %46 {strides = array<i32>} : memref<16x16x1152xf32, #tpu.memory_space<vmem>>, vector<16x16x128xf32>,
    %c0_84 = arith.constant 0 : index
    %c1_85 = arith.constant 1 : index
    %c0_86 = arith.constant 0 : index
    %48 = vector.load %arg7[%c0_84, %c1_85, %c0_86] : memref<18x18x128xf32, #tpu.memory_space<vmem>>, vector<16x16x128xf32>
    %c0_87 = arith.constant 0 : index
    %c0_88 = arith.constant 0 : index
    %c128_89 = arith.constant 128 : index
    %49 = vector.load %arg8[%c0_87, %c0_88, %c128_89] : memref<16x16x1152xf32, #tpu.memory_space<vmem>>, vector<16x16x128xf32>
    tpu.vector_store %arg8[%c0_87, %c0_88, %c128_89], %48 {strides = array<i32>} : memref<16x16x1152xf32, #tpu.memory_space<vmem>>, vector<16x16x128xf32>,
    %c0_90 = arith.constant 0 : index
    %c2_91 = arith.constant 2 : index
    %c0_92 = arith.constant 0 : index
    %50 = vector.load %arg7[%c0_90, %c2_91, %c0_92] : memref<18x18x128xf32, #tpu.memory_space<vmem>>, vector<16x16x128xf32>
    %c0_93 = arith.constant 0 : index
    %c0_94 = arith.constant 0 : index
    %c256_95 = arith.constant 256 : index
    %51 = vector.load %arg8[%c0_93, %c0_94, %c256_95] : memref<16x16x1152xf32, #tpu.memory_space<vmem>>, vector<16x16x128xf32>
    tpu.vector_store %arg8[%c0_93, %c0_94, %c256_95], %50 {strides = array<i32>} : memref<16x16x1152xf32, #tpu.memory_space<vmem>>, vector<16x16x128xf32>,
    %c1_96 = arith.constant 1 : index
    %c0_97 = arith.constant 0 : index
    %c0_98 = arith.constant 0 : index
    %52 = vector.load %arg7[%c1_96, %c0_97, %c0_98] : memref<18x18x128xf32, #tpu.memory_space<vmem>>, vector<16x16x128xf32>
    %c0_99 = arith.constant 0 : index
    %c0_100 = arith.constant 0 : index
    %c384_101 = arith.constant 384 : index
    %53 = vector.load %arg8[%c0_99, %c0_100, %c384_101] : memref<16x16x1152xf32, #tpu.memory_space<vmem>>, vector<16x16x128xf32>
    tpu.vector_store %arg8[%c0_99, %c0_100, %c384_101], %52 {strides = array<i32>} : memref<16x16x1152xf32, #tpu.memory_space<vmem>>, vector<16x16x128xf32>,
    %c1_102 = arith.constant 1 : index
    %c1_103 = arith.constant 1 : index
    %c0_104 = arith.constant 0 : index
    %54 = vector.load %arg7[%c1_102, %c1_103, %c0_104] : memref<18x18x128xf32, #tpu.memory_space<vmem>>, vector<16x16x128xf32>
    %c0_105 = arith.constant 0 : index
    %c0_106 = arith.constant 0 : index
    %c512_107 = arith.constant 512 : index
    %55 = vector.load %arg8[%c0_105, %c0_106, %c512_107] : memref<16x16x1152xf32, #tpu.memory_space<vmem>>, vector<16x16x128xf32>
    tpu.vector_store %arg8[%c0_105, %c0_106, %c512_107], %54 {strides = array<i32>} : memref<16x16x1152xf32, #tpu.memory_space<vmem>>, vector<16x16x128xf32>,
    %c1_108 = arith.constant 1 : index
    %c2_109 = arith.constant 2 : index
    %c0_110 = arith.constant 0 : index
    %56 = vector.load %arg7[%c1_108, %c2_109, %c0_110] : memref<18x18x128xf32, #tpu.memory_space<vmem>>, vector<16x16x128xf32>
    %c0_111 = arith.constant 0 : index
    %c0_112 = arith.constant 0 : index
    %c640_113 = arith.constant 640 : index
    %57 = vector.load %arg8[%c0_111, %c0_112, %c640_113] : memref<16x16x1152xf32, #tpu.memory_space<vmem>>, vector<16x16x128xf32>
    tpu.vector_store %arg8[%c0_111, %c0_112, %c640_113], %56 {strides = array<i32>} : memref<16x16x1152xf32, #tpu.memory_space<vmem>>, vector<16x16x128xf32>,
    %c2_114 = arith.constant 2 : index
    %c0_115 = arith.constant 0 : index
    %c0_116 = arith.constant 0 : index
    %58 = vector.load %arg7[%c2_114, %c0_115, %c0_116] : memref<18x18x128xf32, #tpu.memory_space<vmem>>, vector<16x16x128xf32>
    %c0_117 = arith.constant 0 : index
    %c0_118 = arith.constant 0 : index
    %c768_119 = arith.constant 768 : index
    %59 = vector.load %arg8[%c0_117, %c0_118, %c768_119] : memref<16x16x1152xf32, #tpu.memory_space<vmem>>, vector<16x16x128xf32>
    tpu.vector_store %arg8[%c0_117, %c0_118, %c768_119], %58 {strides = array<i32>} : memref<16x16x1152xf32, #tpu.memory_space<vmem>>, vector<16x16x128xf32>,
    %c2_120 = arith.constant 2 : index
    %c1_121 = arith.constant 1 : index
    %c0_122 = arith.constant 0 : index
    %60 = vector.load %arg7[%c2_120, %c1_121, %c0_122] : memref<18x18x128xf32, #tpu.memory_space<vmem>>, vector<16x16x128xf32>
    %c0_123 = arith.constant 0 : index
    %c0_124 = arith.constant 0 : index
    %c896_125 = arith.constant 896 : index
    %61 = vector.load %arg8[%c0_123, %c0_124, %c896_125] : memref<16x16x1152xf32, #tpu.memory_space<vmem>>, vector<16x16x128xf32>
    tpu.vector_store %arg8[%c0_123, %c0_124, %c896_125], %60 {strides = array<i32>} : memref<16x16x1152xf32, #tpu.memory_space<vmem>>, vector<16x16x128xf32>,
    %c2_126 = arith.constant 2 : index
    %c2_127 = arith.constant 2 : index
    %c0_128 = arith.constant 0 : index
    %62 = vector.load %arg7[%c2_126, %c2_127, %c0_128] : memref<18x18x128xf32, #tpu.memory_space<vmem>>, vector<16x16x128xf32>
    %c0_129 = arith.constant 0 : index
    %c0_130 = arith.constant 0 : index
    %c1024_131 = arith.constant 1024 : index
    %63 = vector.load %arg8[%c0_129, %c0_130, %c1024_131] : memref<16x16x1152xf32, #tpu.memory_space<vmem>>, vector<16x16x128xf32>
    tpu.vector_store %arg8[%c0_129, %c0_130, %c1024_131], %62 {strides = array<i32>} : memref<16x16x1152xf32, #tpu.memory_space<vmem>>, vector<16x16x128xf32>,
    %c0_132 = arith.constant 0 : index
    %c0_133 = arith.constant 0 : index
    %c0_134 = arith.constant 0 : index
    %64 = vector.load %arg8[%c0_132, %c0_133, %c0_134] : memref<16x16x1152xf32, #tpu.memory_space<vmem>>, vector<16x16x1152xf32>
    %65 = vector.shape_cast %64 : vector<16x16x1152xf32> to vector<256x1152xf32>
    %c0_135 = arith.constant 0 : index
    %c0_136 = arith.constant 0 : index
    %66 = vector.load %arg4[%c0_135, %c0_136] : memref<1152x128xf32, #tpu.memory_space<vmem>>, vector<1152x128xf32>
    %cst_137 = arith.constant dense<0.000000e+00> : vector<256x128xf32>
    %67 = tpu.matmul %65, %66, %cst_137 {dimension_numbers = #tpu.dot_dimension_numbers<[1], [0], [0], [1], [0, 0, 1, 1], [], []>} : vector<256x1152xf32>, vector<1152x128xf32>, vector<256x128xf32> -> vector<256x128xf32>
    %c0_138 = arith.constant 0 : index
    %c1_139 = arith.constant 1 : index
    %c1_140 = arith.constant 1 : index
    %c0_141 = arith.constant 0 : index
    %68 = vector.load %arg1[%c0_138, %c1_139, %c1_140, %c0_141] : memref<1x18x18x128xf32, #tpu.memory_space<vmem>>, vector<1x16x16x128xf32>
    %69 = vector.shape_cast %68 : vector<1x16x16x128xf32> to vector<16x16x128xf32>
    %70 = vector.shape_cast %69 : vector<16x16x128xf32> to vector<256x128xf32>
    %c0_142 = arith.constant 0 : index
    %c0_143 = arith.constant 0 : index
    %71 = vector.load %arg5[%c0_142, %c0_143] : memref<1x128xf32, #tpu.memory_space<vmem>>, vector<1x128xf32>
    %72 = vector.broadcast %71 : vector<1x128xf32> to vector<256x128xf32>
    %73 = arith.addf %67, %72 : vector<256x128xf32>
    %74 = arith.addf %73, %70 : vector<256x128xf32>
    %cst_144 = arith.constant 0.000000e+00 : f32
    %75 = vector.broadcast %cst_144 : f32 to vector<256x128xf32>
    %76 = arith.maximumf %74, %75 : vector<256x128xf32>
    %77 = vector.shape_cast %76 : vector<256x128xf32> to vector<16x16x128xf32>
    %c0_145 = arith.constant 0 : index
    %c0_146 = arith.constant 0 : index
    %c0_147 = arith.constant 0 : index
    %c0_148 = arith.constant 0 : index
    %78 = vector.load %arg6[%c0_145, %c0_146, %c0_147, %c0_148] : memref<1x16x16x128xf32, #tpu.memory_space<vmem>>, vector<1x16x16x128xf32>
    %79 = vector.shape_cast %78 : vector<1x16x16x128xf32> to vector<16x16x128xf32>
    %80 = vector.shape_cast %77 : vector<16x16x128xf32> to vector<1x16x16x128xf32>
    tpu.vector_store %arg6[%c0_145, %c0_146, %c0_147, %c0_148], %80 {strides = array<i32>} : memref<1x16x16x128xf32, #tpu.memory_space<vmem>>, vector<1x16x16x128xf32>,
    return
  }
  func.func @transform_0(%arg0: i32) -> (i32, i32, i32, i32) {
    %c0_i32 = arith.constant 0 : i32
    %c0_i32_0 = arith.constant 0 : i32
    %c0_i32_1 = arith.constant 0 : i32
    %c0_i32_2 = arith.constant 0 : i32
    return %arg0, %c0_i32, %c0_i32_0, %c0_i32_1 : i32, i32, i32, i32
  }
  func.func @transform_1(%arg0: i32) -> (i32, i32) {
    %c0_i32 = arith.constant 0 : i32
    %c0_i32_0 = arith.constant 0 : i32
    %c0_i32_1 = arith.constant 0 : i32
    return %c0_i32, %c0_i32_0 : i32, i32
  }
  func.func @transform_2(%arg0: i32) -> (i32, i32) {
    %c0_i32 = arith.constant 0 : i32
    %c0_i32_0 = arith.constant 0 : i32
    %c0_i32_1 = arith.constant 0 : i32
    return %c0_i32, %c0_i32_0 : i32, i32
  }
  func.func @transform_3(%arg0: i32) -> (i32, i32) {
    %c0_i32 = arith.constant 0 : i32
    %c0_i32_0 = arith.constant 0 : i32
    %c0_i32_1 = arith.constant 0 : i32
    return %c0_i32, %c0_i32_0 : i32, i32
  }
  func.func @transform_4(%arg0: i32) -> (i32, i32) {
    %c0_i32 = arith.constant 0 : i32
    %c0_i32_0 = arith.constant 0 : i32
    %c0_i32_1 = arith.constant 0 : i32
    return %c0_i32, %c0_i32_0 : i32, i32
  }
  func.func @transform_5(%arg0: i32) -> (i32, i32, i32, i32) {
    %c0_i32 = arith.constant 0 : i32
    %c0_i32_0 = arith.constant 0 : i32
    %c0_i32_1 = arith.constant 0 : i32
    %c0_i32_2 = arith.constant 0 : i32
    return %arg0, %c0_i32, %c0_i32_0, %c0_i32_1 : i32, i32, i32, i32
  }
}

</mosaic_0001>

<llo_original>
// kernel: tpu_custom_call.1
$region0: #{tpu_custom_call.1}
  #allocation0 [shape = 'u32[]', space=smem, size = 0x4, offset = 0x4, fixed_abs, tag = 'smem constant byte address 0x4 - core index']
  #allocation1 [shape = 'u32[144,128]{1,0:T(1,128)}', space=vmem, size = 0x12000, scoped, tag = 'internal scratch']
  #allocation2 [shape = 'f32[18,18,128]{2,1,0:T(8,128)}', space=vmem, size = 0x36000, scoped, tag = 'scratch operand']
  #allocation3 [shape = 'f32[16,16,1152]{2,1,0:T(8,128)}', space=vmem, size = 0x120000, scoped, tag = 'scratch operand']
  %s0 = inlined_call_operand.hbm [shape: f32[2,18,18,128], index: 0, kind: input, shape index: {}]
  %s1 = inlined_call_operand.hbm [shape: f32[1152,128], index: 1, kind: input, shape index: {}]
  %s2 = inlined_call_operand.hbm [shape: f32[1,128], index: 2, kind: input, shape index: {}]
  %s3 = inlined_call_operand.hbm [shape: f32[1152,128], index: 3, kind: input, shape index: {}]
  %s4 = inlined_call_operand.hbm [shape: f32[1,128], index: 4, kind: input, shape index: {}]
  %s5 = inlined_call_operand.hbm [shape: f32[2,16,16,128], index: 5, kind: output, shape index: {}]
  %s6 = sld [smem:[#allocation0]]
  $region73: #{tpu_custom_call.1} parent=0
    _
  %s8 = ssub.s32 1, %s6
  %s9 = scalar_select 0, %s8, %s6
  $region1: #{tpu_custom_call.1} parent=0
    #allocation4 [shape = 'u8[442368]{0}', space=vmem, size = 0x6c000, scoped, tag = 'input window, operand 0']
    #allocation5 [shape = 's32[2]{0}', space=sflag, size = 0x8, scoped, tag = 'scoped memory for tpu_custom_call.1']
    #allocation6 [shape = 's32[2]{0}', space=sflag, size = 0x8, scoped, tag = 'scoped memory for tpu_custom_call.1']
    #allocation7 [shape = 'u8[589824]{0}', space=vmem, size = 0x90000, scoped, tag = 'input window, operand 1, single buffered']
    #allocation8 [shape = 's32[1]{0}', space=sflag, size = 0x4, scoped, tag = 'scoped memory for tpu_custom_call.1']
    #allocation9 [shape = 'u8[512]{0}', space=vmem, size = 0x400, scoped, tag = 'input window, operand 2, single buffered']
    #allocation10 [shape = 'u8[589824]{0}', space=vmem, size = 0x90000, scoped, tag = 'input window, operand 3, single buffered']
    #allocation11 [shape = 's32[1]{0}', space=sflag, size = 0x4, scoped, tag = 'scoped memory for tpu_custom_call.1']
    #allocation12 [shape = 'u8[512]{0}', space=vmem, size = 0x400, scoped, tag = 'input window, operand 4, single buffered']
    #allocation13 [shape = 'u8[262144]{0}', space=vmem, size = 0x40000, scoped, tag = 'output window, operand 0']
    %10 = vsyncpa [#allocation5], 0
    %s11 = scalar_lea.sflag [#allocation5], 1
    %12 = vsyncpa %s11, 0
    %13 = vsyncpa [#allocation8], 0
    %14 = vsyncpa [#allocation11], 0
    %15 = vsyncpa [#allocation6], 0
    %s16 = scalar_lea.sflag [#allocation6], 1
    %17 = vsyncpa %s16, 0
    loop: start=0, step=1, limit=4
    $region2: #{tpu_custom_call.1} parent=1 // loop_pre_header
      _
    $region3: #{tpu_custom_call.1} parent=1 // loop_header
      %s19 = sphi 0, %s23
      %p20 = scmp.ge.s32.totalorder %s19, 4
      %s29 = sphi 0, %s31
      %s32 = sphi 0, %s29
      %s33 = sphi 0, %s32
      %s49 = sphi 0, %s33
      %s53 = sphi 0, %s53
      %s55 = sphi 0, %s53
      %s56 = sphi 0, %s55
      %s70 = sphi 0, %s56
      %s74 = sphi 0, %s74
      %s76 = sphi 0, %s74
      %s77 = sphi 0, %s76
      %s91 = sphi 0, %s77
      %s95 = sphi 0, %s95
      %s97 = sphi 0, %s95
      %s98 = sphi 0, %s97
      %s112 = sphi 0, %s98
      %s116 = sphi 0, %s116
      %s118 = sphi 0, %s116
      %s119 = sphi 0, %s118
      %s133 = sphi 0, %s119
      %s139 = sphi 0, %s141
      %s142 = sphi 0, %s139
      %s143 = sphi 0, %s142
      %s159 = sphi 0, %s143
    $region4: #{tpu_custom_call.1} parent=1 // loop_header_branch
      %22 = sbr.rel (%p20) target = $region8
    $region5: #{tpu_custom_call.1} parent=1 // loop_body
      %s24 = ssub.s32 %s19, 1
      %s25 = ssub.s32 %s19, 2
      %s26 = sadd.s32 %s19, 1
      %s27 = ssub.s32 %s19, %s26
      %p28 = scmp.eq.s32.totalorder %s27, 0
      %s30 = sadd.s32 %s29, 1
      %s31 = scalar_select %p28, %s29, %s30
      %p34 = pneg %p28
      %p35 = scmp.eq.s32.totalorder %s19, 1
      %p36 = por %p34, %p35
      %p37 = scmp.ne.s32.totalorder %s29, %s32
      %p38 = scmp.eq.s32.totalorder %s19, 0
      %p39 = por %p37, %p38
      %p40 = scmp.ne.s32.totalorder %s29, %s32
      %p41 = scmp.eq.s32.totalorder %s24, 1
      %p42 = por %p40, %p41
      %p43 = scmp.ne.s32.totalorder %s32, %s33
      %p44 = scmp.eq.s32.totalorder %s24, 0
      %p45 = por %p43, %p44
      %p46 = scmp.ne.s32.totalorder %s32, %s33
      %p47 = scmp.eq.s32.totalorder %s25, 1
      %p48 = por %p46, %p47
      %p50 = scmp.ne.s32.totalorder %s33, %s49
      %p51 = scmp.eq.s32.totalorder %s25, 0
      %p52 = por %p50, %p51
      %s54 = sadd.s32 %s53, 1
      %p57 = scmp.eq.s32.totalorder %s19, 1
      %p58 = scmp.ne.s32.totalorder %s53, %s55
      %p59 = scmp.eq.s32.totalorder %s19, 0
      %p60 = por %p58, %p59
      %p61 = scmp.ne.s32.totalorder %s53, %s55
      %p62 = scmp.eq.s32.totalorder %s24, 1
      %p63 = por %p61, %p62
      %p64 = scmp.ne.s32.totalorder %s55, %s56
      %p65 = scmp.eq.s32.totalorder %s24, 0
      %p66 = por %p64, %p65
      %p67 = scmp.ne.s32.totalorder %s55, %s56
      %p68 = scmp.eq.s32.totalorder %s25, 1
      %p69 = por %p67, %p68
      %p71 = scmp.ne.s32.totalorder %s56, %s70
      %p72 = scmp.eq.s32.totalorder %s25, 0
      %p73 = por %p71, %p72
      %s75 = sadd.s32 %s74, 1
      %p78 = scmp.eq.s32.totalorder %s19, 1
      %p79 = scmp.ne.s32.totalorder %s74, %s76
      %p80 = scmp.eq.s32.totalorder %s19, 0
      %p81 = por %p79, %p80
      %p82 = scmp.ne.s32.totalorder %s74, %s76
      %p83 = scmp.eq.s32.totalorder %s24, 1
      %p84 = por %p82, %p83
      %p85 = scmp.ne.s32.totalorder %s76, %s77
      %p86 = scmp.eq.s32.totalorder %s24, 0
      %p87 = por %p85, %p86
      %p88 = scmp.ne.s32.totalorder %s76, %s77
      %p89 = scmp.eq.s32.totalorder %s25, 1
      %p90 = por %p88, %p89
      %p92 = scmp.ne.s32.totalorder %s77, %s91
      %p93 = scmp.eq.s32.totalorder %s25, 0
      %p94 = por %p92, %p93
      %s96 = sadd.s32 %s95, 1
      %p99 = scmp.eq.s32.totalorder %s19, 1
      %p100 = scmp.ne.s32.totalorder %s95, %s97
      %p101 = scmp.eq.s32.totalorder %s19, 0
      %p102 = por %p100, %p101
      %p103 = scmp.ne.s32.totalorder %s95, %s97
      %p104 = scmp.eq.s32.totalorder %s24, 1
      %p105 = por %p103, %p104
      %p106 = scmp.ne.s32.totalorder %s97, %s98
      %p107 = scmp.eq.s32.totalorder %s24, 0
      %p108 = por %p106, %p107
      %p109 = scmp.ne.s32.totalorder %s97, %s98
      %p110 = scmp.eq.s32.totalorder %s25, 1
      %p111 = por %p109, %p110
      %p113 = scmp.ne.s32.totalorder %s98, %s112
      %p114 = scmp.eq.s32.totalorder %s25, 0
      %p115 = por %p113, %p114
      %s117 = sadd.s32 %s116, 1
      %p120 = scmp.eq.s32.totalorder %s19, 1
      %p121 = scmp.ne.s32.totalorder %s116, %s118
      %p122 = scmp.eq.s32.totalorder %s19, 0
      %p123 = por %p121, %p122
      %p124 = scmp.ne.s32.totalorder %s116, %s118
      %p125 = scmp.eq.s32.totalorder %s24, 1
      %p126 = por %p124, %p125
      %p127 = scmp.ne.s32.totalorder %s118, %s119
      %p128 = scmp.eq.s32.totalorder %s24, 0
      %p129 = por %p127, %p128
      %p130 = scmp.ne.s32.totalorder %s118, %s119
      %p131 = scmp.eq.s32.totalorder %s25, 1
      %p132 = por %p130, %p131
      %p134 = scmp.ne.s32.totalorder %s119, %s133
      %p135 = scmp.eq.s32.totalorder %s25, 0
      %p136 = por %p134, %p135
      %s137 = ssub.s32 %s19, %s26
      %p138 = scmp.eq.s32.totalorder %s137, 0
      %s140 = sadd.s32 %s139, 1
      %s141 = scalar_select %p138, %s139, %s140
      %p144 = pneg %p138
      %p145 = scmp.eq.s32.totalorder %s19, 1
      %p146 = por %p144, %p145
      %p147 = scmp.ne.s32.totalorder %s139, %s142
      %p148 = scmp.eq.s32.totalorder %s19, 0
      %p149 = por %p147, %p148
      %p150 = scmp.ne.s32.totalorder %s139, %s142
      %p151 = scmp.eq.s32.totalorder %s24, 1
      %p152 = por %p150, %p151
      %p153 = scmp.ne.s32.totalorder %s142, %s143
      %p154 = scmp.eq.s32.totalorder %s24, 0
      %p155 = por %p153, %p154
      %p156 = scmp.ne.s32.totalorder %s142, %s143
      %p157 = scmp.eq.s32.totalorder %s25, 1
      %p158 = por %p156, %p157
      %p160 = scmp.ne.s32.totalorder %s143, %s159
      %p161 = scmp.eq.s32.totalorder %s25, 0
      %p162 = por %p160, %p161
      %p163 = scmp.le.s32.totalorder 1, %s19
      %p164 = scmp.lt.s32.totalorder %s19, 3
      %p165 = pnand %p163, %p164
      %p166 = pneg %p165
      // Predicated region
      $region9: #{tpu_custom_call.1} parent=5 // pred_check
        _
      $region10: #{tpu_custom_call.1} parent=5 // pred_check_branch
        %168 = sbr.rel (%p165) target = $region12
      $region11: #{tpu_custom_call.1} parent=5 // pred_region
        %s169 = ssub.s32 %s19, 1
        // Predicated region
        $region13: #{tpu_custom_call.1} parent=11 // pred_check
          %p170 = pneg %p66
        $region14: #{tpu_custom_call.1} parent=11 // pred_check_branch
          %172 = sbr.rel (%p170) target = $region16
        $region15: #{tpu_custom_call.1} parent=11 // pred_region
          %s174 = ssub.s32 18432, 18432
          %175 = vsyncadd [#allocation8], %s174
          %s176 = sshll.u32 [#allocation7], 4
          %s177 = int_to_ptr.vmem [resolvable:$true] %s176
          %182 = dma.hbm_to_vmem [thread:$0]  %s1, 18432, %s177, [#allocation8], 128, 128, 8
        $region16: #{tpu_custom_call.1} parent=11 // pred_fallthru
          _
        // Predicated region
        $region17: #{tpu_custom_call.1} parent=11 // pred_check
          %p183 = pneg %p87
        $region18: #{tpu_custom_call.1} parent=11 // pred_check_branch
          %185 = sbr.rel (%p183) target = $region20
        $region19: #{tpu_custom_call.1} parent=11 // pred_region
          %s187 = ssub.s32 16, 16
          %188 = vsyncadd [#allocation8], %s187
          %s190 = sshll.u32 [#allocation9], 4
          %s191 = int_to_ptr.vmem [resolvable:$true] %s190
          %193 = dma.hbm_to_vmem [thread:$0]  %s2, 16, %s191, [#allocation8]
        $region20: #{tpu_custom_call.1} parent=11 // pred_fallthru
          _
        // Predicated region
        $region21: #{tpu_custom_call.1} parent=11 // pred_check
          %p194 = pneg %p108
        $region22: #{tpu_custom_call.1} parent=11 // pred_check_branch
          %196 = sbr.rel (%p194) target = $region24
        $region23: #{tpu_custom_call.1} parent=11 // pred_region
          %s198 = ssub.s32 18432, 18432
          %199 = vsyncadd [#allocation11], %s198
          %s200 = sshll.u32 [#allocation10], 4
          %s201 = int_to_ptr.vmem [resolvable:$true] %s200
          %206 = dma.hbm_to_vmem [thread:$0]  %s3, 18432, %s201, [#allocation11], 128, 128, 8
        $region24: #{tpu_custom_call.1} parent=11 // pred_fallthru
          _
        // Predicated region
        $region25: #{tpu_custom_call.1} parent=11 // pred_check
          %p207 = pneg %p129
        $region26: #{tpu_custom_call.1} parent=11 // pred_check_branch
          %209 = sbr.rel (%p207) target = $region28
        $region27: #{tpu_custom_call.1} parent=11 // pred_region
          %s211 = ssub.s32 16, 16
          %212 = vsyncadd [#allocation11], %s211
          %s214 = sshll.u32 [#allocation12], 4
          %s215 = int_to_ptr.vmem [resolvable:$true] %s214
          %217 = dma.hbm_to_vmem [thread:$0]  %s4, 16, %s215, [#allocation11]
        $region28: #{tpu_custom_call.1} parent=11 // pred_fallthru
          _
      $region12: #{tpu_custom_call.1} parent=5 // pred_fallthru
        _
      %p218 = scmp.lt.s32.totalorder %s19, 2
      // Predicated region
      $region29: #{tpu_custom_call.1} parent=5 // pred_check
        %p219 = pneg %p218
      $region30: #{tpu_custom_call.1} parent=5 // pred_check_branch
        %221 = sbr.rel (%p219) target = $region32
      $region31: #{tpu_custom_call.1} parent=5 // pred_region
        // Predicated region
        $region33: #{tpu_custom_call.1} parent=31 // pred_check
          %p222 = pneg %p39
        $region34: #{tpu_custom_call.1} parent=31 // pred_check_branch
          %224 = sbr.rel (%p222) target = $region36
        $region35: #{tpu_custom_call.1} parent=31 // pred_region
          %s225 = sand.u32 %s29, 1
          %s226 = scalar_lea.sflag [#allocation5], %s225
          %s227 = sand.u32 %s29, 1
          %s228 = smul.addr %s227, 432
          %s229 = scalar_lea.vmem [#allocation4], %s228
          %s231 = ssub.s32 6912, 6912
          %232 = vsyncadd %s226, %s231
          %s233 = smul.addr %s19, 54
          %s234 = smul.addr %s233, 128
          %s235 = scalar_lea.hbm %s0, %s234
          %s236 = sshll.u32 %s229, 4
          %s237 = int_to_ptr.vmem [resolvable:$true] %s236
          %242 = dma.hbm_to_vmem [thread:$0]  %s235, 6912, %s237, %s226, 128, 128, 8
        $region36: #{tpu_custom_call.1} parent=31 // pred_fallthru
          _
      $region32: #{tpu_custom_call.1} parent=5 // pred_fallthru
        _
      %p243 = scmp.le.s32.totalorder 1, %s19
      %p244 = scmp.lt.s32.totalorder %s19, 3
      %p245 = pnand %p243, %p244
      %p246 = pneg %p245
      // Predicated region
      $region37: #{tpu_custom_call.1} parent=5 // pred_check
        _
      $region38: #{tpu_custom_call.1} parent=5 // pred_check_branch
        %248 = sbr.rel (%p245) target = $region40
      $region39: #{tpu_custom_call.1} parent=5 // pred_region
        %s249 = ssub.s32 %s19, 1
        %s250 = sand.u32 %s32, 1
        %s251 = scalar_lea.sflag [#allocation5], %s250
        %s252 = sand.u32 %s32, 1
        %s253 = smul.addr %s252, 432
        %s254 = scalar_lea.vmem [#allocation4], %s253
        // Predicated region
        $region41: #{tpu_custom_call.1} parent=39 // pred_check
          %p255 = pneg %p45
        $region42: #{tpu_custom_call.1} parent=39 // pred_check_branch
          %257 = sbr.rel (%p255) target = $region44
        $region43: #{tpu_custom_call.1} parent=39 // pred_region
          %258 = dma.done %s251, 6912
        $region44: #{tpu_custom_call.1} parent=39 // pred_fallthru
          _
        // Predicated region
        $region45: #{tpu_custom_call.1} parent=39 // pred_check
          %p259 = pneg %p66
        $region46: #{tpu_custom_call.1} parent=39 // pred_check_branch
          %261 = sbr.rel (%p259) target = $region48
        $region47: #{tpu_custom_call.1} parent=39 // pred_region
          %262 = dma.done [#allocation8], 18432
        $region48: #{tpu_custom_call.1} parent=39 // pred_fallthru
          _
        // Predicated region
        $region49: #{tpu_custom_call.1} parent=39 // pred_check
          %p263 = pneg %p87
        $region50: #{tpu_custom_call.1} parent=39 // pred_check_branch
          %265 = sbr.rel (%p263) target = $region52
        $region51: #{tpu_custom_call.1} parent=39 // pred_region
          %266 = dma.done [#allocation8], 16
        $region52: #{tpu_custom_call.1} parent=39 // pred_fallthru
          _
        // Predicated region
        $region53: #{tpu_custom_call.1} parent=39 // pred_check
          %p267 = pneg %p108
        $region54: #{tpu_custom_call.1} parent=39 // pred_check_branch
          %269 = sbr.rel (%p267) target = $region56
        $region55: #{tpu_custom_call.1} parent=39 // pred_region
          %270 = dma.done [#allocation11], 18432
        $region56: #{tpu_custom_call.1} parent=39 // pred_fallthru
          _
        // Predicated region
        $region57: #{tpu_custom_call.1} parent=39 // pred_check
          %p271 = pneg %p129
        $region58: #{tpu_custom_call.1} parent=39 // pred_check_branch
          %273 = sbr.rel (%p271) target = $region60
        $region59: #{tpu_custom_call.1} parent=39 // pred_region
          %274 = dma.done [#allocation11], 16
        $region60: #{tpu_custom_call.1} parent=39 // pred_fallthru
          _
        %s275 = sand.u32 %s32, 1
        %s276 = scalar_lea.sflag [#allocation5], %s275
        %s277 = sand.u32 %s32, 1
        %s278 = smul.addr %s277, 432
        %s279 = scalar_lea.vmem [#allocation4], %s278
        %p280 = pneg %p45
        %p281 = pneg %p42
        %p282 = pneg %p66
        %p283 = pneg %p63
        %p284 = pneg %p87
        %p285 = pneg %p84
        %p286 = pneg %p108
        %p287 = pneg %p105
        %p288 = pneg %p129
        %p289 = pneg %p126
        %p290 = pneg %p155
        %p291 = pneg %p152
        %s292 = sand.u32 %s142, 1
        %s293 = scalar_lea.sflag [#allocation6], %s292
        %s294 = sand.u32 %s142, 1
        %s295 = smul.addr %s294, 256
        %s296 = scalar_lea.vmem [#allocation13], %s295
        %v297 = vld [vmem:[%s254] sm:$0xff]
        %v298 = vld [vmem:[%s254 + $0x8] sm:$0xff]
        %v299 = vld [vmem:[%s254 + $0x18] sm:$0xff]
        %v300 = vld [vmem:[%s254 + $0x20] sm:$0xff]
        %v301 = vld [vmem:[%s254 + $0x30] sm:$0xff]
        %v302 = vld [vmem:[%s254 + $0x38] sm:$0xff]
        %v303 = vld [vmem:[%s254 + $0x48] sm:$0xff]
        %v304 = vld [vmem:[%s254 + $0x50] sm:$0xff]
        %v305 = vld [vmem:[%s254 + $0x60] sm:$0xff]
        %v306 = vld [vmem:[%s254 + $0x68] sm:$0xff]
        %v307 = vld [vmem:[%s254 + $0x78] sm:$0xff]
        %v308 = vld [vmem:[%s254 + $0x80] sm:$0xff]
        %v309 = vld [vmem:[%s254 + $0x90] sm:$0xff]
        %v310 = vld [vmem:[%s254 + $0x98] sm:$0xff]
        %v311 = vld [vmem:[%s254 + $0xa8] sm:$0xff]
        %v312 = vld [vmem:[%s254 + $0xb0] sm:$0xff]
        %v313 = vld [vmem:[%s254 + $0xc0] sm:$0xff]
        %v314 = vld [vmem:[%s254 + $0xc8] sm:$0xff]
        %v315 = vld [vmem:[%s254 + $0xd8] sm:$0xff]
        %v316 = vld [vmem:[%s254 + $0xe0] sm:$0xff]
        %v317 = vld [vmem:[%s254 + $0xf0] sm:$0xff]
        %v318 = vld [vmem:[%s254 + $0xf8] sm:$0xff]
        %v319 = vld [vmem:[%s254 + $0x108] sm:$0xff]
        %v320 = vld [vmem:[%s254 + $0x110] sm:$0xff]
        %v321 = vld [vmem:[%s254 + $0x120] sm:$0xff]
        %v322 = vld [vmem:[%s254 + $0x128] sm:$0xff]
        %v323 = vld [vmem:[%s254 + $0x138] sm:$0xff]
        %v324 = vld [vmem:[%s254 + $0x140] sm:$0xff]
        %v325 = vld [vmem:[%s254 + $0x150] sm:$0xff]
        %v326 = vld [vmem:[%s254 + $0x158] sm:$0xff]
        %v327 = vld [vmem:[%s254 + $0x168] sm:$0xff]
        %v328 = vld [vmem:[%s254 + $0x170] sm:$0xff]
        %329 = vst [vmem:[#allocation3] sm:$0xff] %v297
        %330 = vst [vmem:[#allocation3 + $0x48] sm:$0xff] %v298
        %331 = vst [vmem:[#allocation3 + $0x90] sm:$0xff] %v299
        %332 = vst [vmem:[#allocation3 + $0xd8] sm:$0xff] %v300
        %333 = vst [vmem:[#allocation3 + $0x120] sm:$0xff] %v301
        %334 = vst [vmem:[#allocation3 + $0x168] sm:$0xff] %v302
        %335 = vst [vmem:[#allocation3 + $0x1b0] sm:$0xff] %v303
        %336 = vst [vmem:[#allocation3 + $0x1f8] sm:$0xff] %v304
        %337 = vst [vmem:[#allocation3 + $0x240] sm:$0xff] %v305
        %338 = vst [vmem:[#allocation3 + $0x288] sm:$0xff] %v306
        %339 = vst [vmem:[#allocation3 + $0x2d0] sm:$0xff] %v307
        %340 = vst [vmem:[#allocation3 + $0x318] sm:$0xff] %v308
        %341 = vst [vmem:[#allocation3 + $0x360] sm:$0xff] %v309
        %342 = vst [vmem:[#allocation3 + $0x3a8] sm:$0xff] %v310
        %343 = vst [vmem:[#allocation3 + $0x3f0] sm:$0xff] %v311
        %344 = vst [vmem:[#allocation3 + $0x438] sm:$0xff] %v312
        %345 = vst [vmem:[#allocation3 + $0x480] sm:$0xff] %v313
        %346 = vst [vmem:[#allocation3 + $0x4c8] sm:$0xff] %v314
        %347 = vst [vmem:[#allocation3 + $0x510] sm:$0xff] %v315
        %348 = vst [vmem:[#allocation3 + $0x558] sm:$0xff] %v316
        %349 = vst [vmem:[#allocation3 + $0x5a0] sm:$0xff] %v317
        %350 = vst [vmem:[#allocation3 + $0x5e8] sm:$0xff] %v318
        %351 = vst [vmem:[#allocation3 + $0x630] sm:$0xff] %v319
        %352 = vst [vmem:[#allocation3 + $0x678] sm:$0xff] %v320
        %353 = vst [vmem:[#allocation3 + $0x6c0] sm:$0xff] %v321
        %354 = vst [vmem:[#allocation3 + $0x708] sm:$0xff] %v322
        %355 = vst [vmem:[#allocation3 + $0x750] sm:$0xff] %v323
        %356 = vst [vmem:[#allocation3 + $0x798] sm:$0xff] %v324
        %357 = vst [vmem:[#allocation3 + $0x7e0] sm:$0xff] %v325
        %358 = vst [vmem:[#allocation3 + $0x828] sm:$0xff] %v326
        %359 = vst [vmem:[#allocation3 + $0x870] sm:$0xff] %v327
        %360 = vst [vmem:[#allocation3 + $0x8b8] sm:$0xff] %v328
        %v361 = vld [vmem:[%s254 + $0x1] sm:$0xff]
        %v362 = vld [vmem:[%s254 + $0x9] sm:$0xff]
        %v363 = vld [vmem:[%s254 + $0x19] sm:$0xff]
        %v364 = vld [vmem:[%s254 + $0x21] sm:$0xff]
        %v365 = vld [vmem:[%s254 + $0x31] sm:$0xff]
        %v366 = vld [vmem:[%s254 + $0x39] sm:$0xff]
        %v367 = vld [vmem:[%s254 + $0x49] sm:$0xff]
        %v368 = vld [vmem:[%s254 + $0x51] sm:$0xff]
        %v369 = vld [vmem:[%s254 + $0x61] sm:$0xff]
        %v370 = vld [vmem:[%s254 + $0x69] sm:$0xff]
        %v371 = vld [vmem:[%s254 + $0x79] sm:$0xff]
        %v372 = vld [vmem:[%s254 + $0x81] sm:$0xff]
        %v373 = vld [vmem:[%s254 + $0x91] sm:$0xff]
        %v374 = vld [vmem:[%s254 + $0x99] sm:$0xff]
        %v375 = vld [vmem:[%s254 + $0xa9] sm:$0xff]
        %v376 = vld [vmem:[%s254 + $0xb1] sm:$0xff]
        %v377 = vld [vmem:[%s254 + $0xc1] sm:$0xff]
        %v378 = vld [vmem:[%s254 + $0xc9] sm:$0xff]
        %v379 = vld [vmem:[%s254 + $0xd9] sm:$0xff]
        %v380 = vld [vmem:[%s254 + $0xe1] sm:$0xff]
        %v381 = vld [vmem:[%s254 + $0xf1] sm:$0xff]
        %v382 = vld [vmem:[%s254 + $0xf9] sm:$0xff]
        %v383 = vld [vmem:[%s254 + $0x109] sm:$0xff]
        %v384 = vld [vmem:[%s254 + $0x111] sm:$0xff]
        %v385 = vld [vmem:[%s254 + $0x121] sm:$0xff]
        %v386 = vld [vmem:[%s254 + $0x129] sm:$0xff]
        %v387 = vld [vmem:[%s254 + $0x139] sm:$0xff]
        %v388 = vld [vmem:[%s254 + $0x141] sm:$0xff]
        %v389 = vld [vmem:[%s254 + $0x151] sm:$0xff]
        %v390 = vld [vmem:[%s254 + $0x159] sm:$0xff]
        %v391 = vld [vmem:[%s254 + $0x169] sm:$0xff]
        %v392 = vld [vmem:[%s254 + $0x171] sm:$0xff]
        %393 = vst [vmem:[#allocation3 + $0x8] sm:$0xff] %v361
        %394 = vst [vmem:[#allocation3 + $0x50] sm:$0xff] %v362
        %395 = vst [vmem:[#allocation3 + $0x98] sm:$0xff] %v363
        %396 = vst [vmem:[#allocation3 + $0xe0] sm:$0xff] %v364
        %397 = vst [vmem:[#allocation3 + $0x128] sm:$0xff] %v365
        %398 = vst [vmem:[#allocation3 + $0x170] sm:$0xff] %v366
        %399 = vst [vmem:[#allocation3 + $0x1b8] sm:$0xff] %v367
        %400 = vst [vmem:[#allocation3 + $0x200] sm:$0xff] %v368
        %401 = vst [vmem:[#allocation3 + $0x248] sm:$0xff] %v369
        %402 = vst [vmem:[#allocation3 + $0x290] sm:$0xff] %v370
        %403 = vst [vmem:[#allocation3 + $0x2d8] sm:$0xff] %v371
        %404 = vst [vmem:[#allocation3 + $0x320] sm:$0xff] %v372
        %405 = vst [vmem:[#allocation3 + $0x368] sm:$0xff] %v373
        %406 = vst [vmem:[#allocation3 + $0x3b0] sm:$0xff] %v374
        %407 = vst [vmem:[#allocation3 + $0x3f8] sm:$0xff] %v375
        %408 = vst [vmem:[#allocation3 + $0x440] sm:$0xff] %v376
        %409 = vst [vmem:[#allocation3 + $0x488] sm:$0xff] %v377
        %410 = vst [vmem:[#allocation3 + $0x4d0] sm:$0xff] %v378
        %411 = vst [vmem:[#allocation3 + $0x518] sm:$0xff] %v379
        %412 = vst [vmem:[#allocation3 + $0x560] sm:$0xff] %v380
        %413 = vst [vmem:[#allocation3 + $0x5a8] sm:$0xff] %v381
        %414 = vst [vmem:[#allocation3 + $0x5f0] sm:$0xff] %v382
        %415 = vst [vmem:[#allocation3 + $0x638] sm:$0xff] %v383
        %416 = vst [vmem:[#allocation3 + $0x680] sm:$0xff] %v384
        %417 = vst [vmem:[#allocation3 + $0x6c8] sm:$0xff] %v385
        %418 = vst [vmem:[#allocation3 + $0x710] sm:$0xff] %v386
        %419 = vst [vmem:[#allocation3 + $0x758] sm:$0xff] %v387
        %420 = vst [vmem:[#allocation3 + $0x7a0] sm:$0xff] %v388
        %421 = vst [vmem:[#allocation3 + $0x7e8] sm:$0xff] %v389
        %422 = vst [vmem:[#allocation3 + $0x830] sm:$0xff] %v390
        %423 = vst [vmem:[#allocation3 + $0x878] sm:$0xff] %v391
        %424 = vst [vmem:[#allocation3 + $0x8c0] sm:$0xff] %v392
        %v425 = vld [vmem:[%s254 + $0x2] sm:$0xff]
        %v426 = vld [vmem:[%s254 + $0xa] sm:$0xff]
        %v427 = vld [vmem:[%s254 + $0x1a] sm:$0xff]
        %v428 = vld [vmem:[%s254 + $0x22] sm:$0xff]
        %v429 = vld [vmem:[%s254 + $0x32] sm:$0xff]
        %v430 = vld [vmem:[%s254 + $0x3a] sm:$0xff]
        %v431 = vld [vmem:[%s254 + $0x4a] sm:$0xff]
        %v432 = vld [vmem:[%s254 + $0x52] sm:$0xff]
        %v433 = vld [vmem:[%s254 + $0x62] sm:$0xff]
        %v434 = vld [vmem:[%s254 + $0x6a] sm:$0xff]
        %v435 = vld [vmem:[%s254 + $0x7a] sm:$0xff]
        %v436 = vld [vmem:[%s254 + $0x82] sm:$0xff]
        %v437 = vld [vmem:[%s254 + $0x92] sm:$0xff]
        %v438 = vld [vmem:[%s254 + $0x9a] sm:$0xff]
        %v439 = vld [vmem:[%s254 + $0xaa] sm:$0xff]
        %v440 = vld [vmem:[%s254 + $0xb2] sm:$0xff]
        %v441 = vld [vmem:[%s254 + $0xc2] sm:$0xff]
        %v442 = vld [vmem:[%s254 + $0xca] sm:$0xff]
        %v443 = vld [vmem:[%s254 + $0xda] sm:$0xff]
        %v444 = vld [vmem:[%s254 + $0xe2] sm:$0xff]
        %v445 = vld [vmem:[%s254 + $0xf2] sm:$0xff]
        %v446 = vld [vmem:[%s254 + $0xfa] sm:$0xff]
        %v447 = vld [vmem:[%s254 + $0x10a] sm:$0xff]
        %v448 = vld [vmem:[%s254 + $0x112] sm:$0xff]
        %v449 = vld [vmem:[%s254 + $0x122] sm:$0xff]
        %v450 = vld [vmem:[%s254 + $0x12a] sm:$0xff]
        %v451 = vld [vmem:[%s254 + $0x13a] sm:$0xff]
        %v452 = vld [vmem:[%s254 + $0x142] sm:$0xff]
        %v453 = vld [vmem:[%s254 + $0x152] sm:$0xff]
        %v454 = vld [vmem:[%s254 + $0x15a] sm:$0xff]
        %v455 = vld [vmem:[%s254 + $0x16a] sm:$0xff]
        %v456 = vld [vmem:[%s254 + $0x172] sm:$0xff]
        %457 = vst [vmem:[#allocation3 + $0x10] sm:$0xff] %v425
        %458 = vst [vmem:[#allocation3 + $0x58] sm:$0xff] %v426
        %459 = vst [vmem:[#allocation3 + $0xa0] sm:$0xff] %v427
        %460 = vst [vmem:[#allocation3 + $0xe8] sm:$0xff] %v428
        %461 = vst [vmem:[#allocation3 + $0x130] sm:$0xff] %v429
        %462 = vst [vmem:[#allocation3 + $0x178] sm:$0xff] %v430
        %463 = vst [vmem:[#allocation3 + $0x1c0] sm:$0xff] %v431
        %464 = vst [vmem:[#allocation3 + $0x208] sm:$0xff] %v432
        %465 = vst [vmem:[#allocation3 + $0x250] sm:$0xff] %v433
        %466 = vst [vmem:[#allocation3 + $0x298] sm:$0xff] %v434
        %467 = vst [vmem:[#allocation3 + $0x2e0] sm:$0xff] %v435
        %468 = vst [vmem:[#allocation3 + $0x328] sm:$0xff] %v436
        %469 = vst [vmem:[#allocation3 + $0x370] sm:$0xff] %v437
        %470 = vst [vmem:[#allocation3 + $0x3b8] sm:$0xff] %v438
        %471 = vst [vmem:[#allocation3 + $0x400] sm:$0xff] %v439
        %472 = vst [vmem:[#allocation3 + $0x448] sm:$0xff] %v440
        %473 = vst [vmem:[#allocation3 + $0x490] sm:$0xff] %v441
        %474 = vst [vmem:[#allocation3 + $0x4d8] sm:$0xff] %v442
        %475 = vst [vmem:[#allocation3 + $0x520] sm:$0xff] %v443
        %476 = vst [vmem:[#allocation3 + $0x568] sm:$0xff] %v444
        %477 = vst [vmem:[#allocation3 + $0x5b0] sm:$0xff] %v445
        %478 = vst [vmem:[#allocation3 + $0x5f8] sm:$0xff] %v446
        %479 = vst [vmem:[#allocation3 + $0x640] sm:$0xff] %v447
        %480 = vst [vmem:[#allocation3 + $0x688] sm:$0xff] %v448
        %481 = vst [vmem:[#allocation3 + $0x6d0] sm:$0xff] %v449
        %482 = vst [vmem:[#allocation3 + $0x718] sm:$0xff] %v450
        %483 = vst [vmem:[#allocation3 + $0x760] sm:$0xff] %v451
        %484 = vst [vmem:[#allocation3 + $0x7a8] sm:$0xff] %v452
        %485 = vst [vmem:[#allocation3 + $0x7f0] sm:$0xff] %v453
        %486 = vst [vmem:[#allocation3 + $0x838] sm:$0xff] %v454
        %487 = vst [vmem:[#allocation3 + $0x880] sm:$0xff] %v455
        %488 = vst [vmem:[#allocation3 + $0x8c8] sm:$0xff] %v456
        %s489 = scalar_lea.vmem %s254, 24 [#allocation4]
        %v490 = vld [vmem:[%s489] sm:$0xff]
        %v491 = vld [vmem:[%s489 + $0x8] sm:$0xff]
        %v492 = vld [vmem:[%s489 + $0x18] sm:$0xff]
        %v493 = vld [vmem:[%s489 + $0x20] sm:$0xff]
        %v494 = vld [vmem:[%s489 + $0x30] sm:$0xff]
        %v495 = vld [vmem:[%s489 + $0x38] sm:$0xff]
        %v496 = vld [vmem:[%s489 + $0x48] sm:$0xff]
        %v497 = vld [vmem:[%s489 + $0x50] sm:$0xff]
        %v498 = vld [vmem:[%s489 + $0x60] sm:$0xff]
        %v499 = vld [vmem:[%s489 + $0x68] sm:$0xff]
        %v500 = vld [vmem:[%s489 + $0x78] sm:$0xff]
        %v501 = vld [vmem:[%s489 + $0x80] sm:$0xff]
        %v502 = vld [vmem:[%s489 + $0x90] sm:$0xff]
        %v503 = vld [vmem:[%s489 + $0x98] sm:$0xff]
        %v504 = vld [vmem:[%s489 + $0xa8] sm:$0xff]
        %v505 = vld [vmem:[%s489 + $0xb0] sm:$0xff]
        %v506 = vld [vmem:[%s489 + $0xc0] sm:$0xff]
        %v507 = vld [vmem:[%s489 + $0xc8] sm:$0xff]
        %v508 = vld [vmem:[%s489 + $0xd8] sm:$0xff]
        %v509 = vld [vmem:[%s489 + $0xe0] sm:$0xff]
        %v510 = vld [vmem:[%s489 + $0xf0] sm:$0xff]
        %v511 = vld [vmem:[%s489 + $0xf8] sm:$0xff]
        %v512 = vld [vmem:[%s489 + $0x108] sm:$0xff]
        %v513 = vld [vmem:[%s489 + $0x110] sm:$0xff]
        %v514 = vld [vmem:[%s489 + $0x120] sm:$0xff]
        %v515 = vld [vmem:[%s489 + $0x128] sm:$0xff]
        %v516 = vld [vmem:[%s489 + $0x138] sm:$0xff]
        %v517 = vld [vmem:[%s489 + $0x140] sm:$0xff]
        %v518 = vld [vmem:[%s489 + $0x150] sm:$0xff]
        %v519 = vld [vmem:[%s489 + $0x158] sm:$0xff]
        %v520 = vld [vmem:[%s489 + $0x168] sm:$0xff]
        %v521 = vld [vmem:[%s489 + $0x170] sm:$0xff]
        %522 = vst [vmem:[#allocation3 + $0x18] sm:$0xff] %v490
        %523 = vst [vmem:[#allocation3 + $0x60] sm:$0xff] %v491
        %524 = vst [vmem:[#allocation3 + $0xa8] sm:$0xff] %v492
        %525 = vst [vmem:[#allocation3 + $0xf0] sm:$0xff] %v493
        %526 = vst [vmem:[#allocation3 + $0x138] sm:$0xff] %v494
        %527 = vst [vmem:[#allocation3 + $0x180] sm:$0xff] %v495
        %528 = vst [vmem:[#allocation3 + $0x1c8] sm:$0xff] %v496
        %529 = vst [vmem:[#allocation3 + $0x210] sm:$0xff] %v497
        %530 = vst [vmem:[#allocation3 + $0x258] sm:$0xff] %v498
        %531 = vst [vmem:[#allocation3 + $0x2a0] sm:$0xff] %v499
        %532 = vst [vmem:[#allocation3 + $0x2e8] sm:$0xff] %v500
        %533 = vst [vmem:[#allocation3 + $0x330] sm:$0xff] %v501
        %534 = vst [vmem:[#allocation3 + $0x378] sm:$0xff] %v502
        %535 = vst [vmem:[#allocation3 + $0x3c0] sm:$0xff] %v503
        %536 = vst [vmem:[#allocation3 + $0x408] sm:$0xff] %v504
        %537 = vst [vmem:[#allocation3 + $0x450] sm:$0xff] %v505
        %538 = vst [vmem:[#allocation3 + $0x498] sm:$0xff] %v506
        %539 = vst [vmem:[#allocation3 + $0x4e0] sm:$0xff] %v507
        %540 = vst [vmem:[#allocation3 + $0x528] sm:$0xff] %v508
        %541 = vst [vmem:[#allocation3 + $0x570] sm:$0xff] %v509
        %542 = vst [vmem:[#allocation3 + $0x5b8] sm:$0xff] %v510
        %543 = vst [vmem:[#allocation3 + $0x600] sm:$0xff] %v511
        %544 = vst [vmem:[#allocation3 + $0x648] sm:$0xff] %v512
        %545 = vst [vmem:[#allocation3 + $0x690] sm:$0xff] %v513
        %546 = vst [vmem:[#allocation3 + $0x6d8] sm:$0xff] %v514
        %547 = vst [vmem:[#allocation3 + $0x720] sm:$0xff] %v515
        %548 = vst [vmem:[#allocation3 + $0x768] sm:$0xff] %v516
        %549 = vst [vmem:[#allocation3 + $0x7b0] sm:$0xff] %v517
        %550 = vst [vmem:[#allocation3 + $0x7f8] sm:$0xff] %v518
        %551 = vst [vmem:[#allocation3 + $0x840] sm:$0xff] %v519
        %552 = vst [vmem:[#allocation3 + $0x888] sm:$0xff] %v520
        %553 = vst [vmem:[#allocation3 + $0x8d0] sm:$0xff] %v521
        %v554 = vld [vmem:[%s489 + $0x1] sm:$0xff]
        %v555 = vld [vmem:[%s489 + $0x9] sm:$0xff]
        %v556 = vld [vmem:[%s489 + $0x19] sm:$0xff]
        %v557 = vld [vmem:[%s489 + $0x21] sm:$0xff]
        %v558 = vld [vmem:[%s489 + $0x31] sm:$0xff]
        %v559 = vld [vmem:[%s489 + $0x39] sm:$0xff]
        %v560 = vld [vmem:[%s489 + $0x49] sm:$0xff]
        %v561 = vld [vmem:[%s489 + $0x51] sm:$0xff]
        %v562 = vld [vmem:[%s489 + $0x61] sm:$0xff]
        %v563 = vld [vmem:[%s489 + $0x69] sm:$0xff]
        %v564 = vld [vmem:[%s489 + $0x79] sm:$0xff]
        %v565 = vld [vmem:[%s489 + $0x81] sm:$0xff]
        %v566 = vld [vmem:[%s489 + $0x91] sm:$0xff]
        %v567 = vld [vmem:[%s489 + $0x99] sm:$0xff]
        %v568 = vld [vmem:[%s489 + $0xa9] sm:$0xff]
        %v569 = vld [vmem:[%s489 + $0xb1] sm:$0xff]
        %v570 = vld [vmem:[%s489 + $0xc1] sm:$0xff]
        %v571 = vld [vmem:[%s489 + $0xc9] sm:$0xff]
        %v572 = vld [vmem:[%s489 + $0xd9] sm:$0xff]
        %v573 = vld [vmem:[%s489 + $0xe1] sm:$0xff]
        %v574 = vld [vmem:[%s489 + $0xf1] sm:$0xff]
        %v575 = vld [vmem:[%s489 + $0xf9] sm:$0xff]
        %v576 = vld [vmem:[%s489 + $0x109] sm:$0xff]
        %v577 = vld [vmem:[%s489 + $0x111] sm:$0xff]
        %v578 = vld [vmem:[%s489 + $0x121] sm:$0xff]
        %v579 = vld [vmem:[%s489 + $0x129] sm:$0xff]
        %v580 = vld [vmem:[%s489 + $0x139] sm:$0xff]
        %v581 = vld [vmem:[%s489 + $0x141] sm:$0xff]
        %v582 = vld [vmem:[%s489 + $0x151] sm:$0xff]
        %v583 = vld [vmem:[%s489 + $0x159] sm:$0xff]
        %v584 = vld [vmem:[%s489 + $0x169] sm:$0xff]
        %v585 = vld [vmem:[%s489 + $0x171] sm:$0xff]
        %586 = vst [vmem:[#allocation3 + $0x20] sm:$0xff] %v554
        %587 = vst [vmem:[#allocation3 + $0x68] sm:$0xff] %v555
        %588 = vst [vmem:[#allocation3 + $0xb0] sm:$0xff] %v556
        %589 = vst [vmem:[#allocation3 + $0xf8] sm:$0xff] %v557
        %590 = vst [vmem:[#allocation3 + $0x140] sm:$0xff] %v558
        %591 = vst [vmem:[#allocation3 + $0x188] sm:$0xff] %v559
        %592 = vst [vmem:[#allocation3 + $0x1d0] sm:$0xff] %v560
        %593 = vst [vmem:[#allocation3 + $0x218] sm:$0xff] %v561
        %594 = vst [vmem:[#allocation3 + $0x260] sm:$0xff] %v562
        %595 = vst [vmem:[#allocation3 + $0x2a8] sm:$0xff] %v563
        %596 = vst [vmem:[#allocation3 + $0x2f0] sm:$0xff] %v564
        %597 = vst [vmem:[#allocation3 + $0x338] sm:$0xff] %v565
        %598 = vst [vmem:[#allocation3 + $0x380] sm:$0xff] %v566
        %599 = vst [vmem:[#allocation3 + $0x3c8] sm:$0xff] %v567
        %600 = vst [vmem:[#allocation3 + $0x410] sm:$0xff] %v568
        %601 = vst [vmem:[#allocation3 + $0x458] sm:$0xff] %v569
        %602 = vst [vmem:[#allocation3 + $0x4a0] sm:$0xff] %v570
        %603 = vst [vmem:[#allocation3 + $0x4e8] sm:$0xff] %v571
        %604 = vst [vmem:[#allocation3 + $0x530] sm:$0xff] %v572
        %605 = vst [vmem:[#allocation3 + $0x578] sm:$0xff] %v573
        %606 = vst [vmem:[#allocation3 + $0x5c0] sm:$0xff] %v574
        %607 = vst [vmem:[#allocation3 + $0x608] sm:$0xff] %v575
        %608 = vst [vmem:[#allocation3 + $0x650] sm:$0xff] %v576
        %609 = vst [vmem:[#allocation3 + $0x698] sm:$0xff] %v577
        %610 = vst [vmem:[#allocation3 + $0x6e0] sm:$0xff] %v578
        %611 = vst [vmem:[#allocation3 + $0x728] sm:$0xff] %v579
        %612 = vst [vmem:[#allocation3 + $0x770] sm:$0xff] %v580
        %613 = vst [vmem:[#allocation3 + $0x7b8] sm:$0xff] %v581
        %614 = vst [vmem:[#allocation3 + $0x800] sm:$0xff] %v582
        %615 = vst [vmem:[#allocation3 + $0x848] sm:$0xff] %v583
        %616 = vst [vmem:[#allocation3 + $0x890] sm:$0xff] %v584
        %617 = vst [vmem:[#allocation3 + $0x8d8] sm:$0xff] %v585
        %v618 = vld [vmem:[%s489 + $0x2] sm:$0xff]
        %v619 = vld [vmem:[%s489 + $0xa] sm:$0xff]
        %v620 = vld [vmem:[%s489 + $0x1a] sm:$0xff]
        %v621 = vld [vmem:[%s489 + $0x22] sm:$0xff]
        %v622 = vld [vmem:[%s489 + $0x32] sm:$0xff]
        %v623 = vld [vmem:[%s489 + $0x3a] sm:$0xff]
        %v624 = vld [vmem:[%s489 + $0x4a] sm:$0xff]
        %v625 = vld [vmem:[%s489 + $0x52] sm:$0xff]
        %v626 = vld [vmem:[%s489 + $0x62] sm:$0xff]
        %v627 = vld [vmem:[%s489 + $0x6a] sm:$0xff]
        %v628 = vld [vmem:[%s489 + $0x7a] sm:$0xff]
        %v629 = vld [vmem:[%s489 + $0x82] sm:$0xff]
        %v630 = vld [vmem:[%s489 + $0x92] sm:$0xff]
        %v631 = vld [vmem:[%s489 + $0x9a] sm:$0xff]
        %v632 = vld [vmem:[%s489 + $0xaa] sm:$0xff]
        %v633 = vld [vmem:[%s489 + $0xb2] sm:$0xff]
        %v634 = vld [vmem:[%s489 + $0xc2] sm:$0xff]
        %v635 = vld [vmem:[%s489 + $0xca] sm:$0xff]
        %v636 = vld [vmem:[%s489 + $0xda] sm:$0xff]
        %v637 = vld [vmem:[%s489 + $0xe2] sm:$0xff]
        %v638 = vld [vmem:[%s489 + $0xf2] sm:$0xff]
        %v639 = vld [vmem:[%s489 + $0xfa] sm:$0xff]
        %v640 = vld [vmem:[%s489 + $0x10a] sm:$0xff]
        %v641 = vld [vmem:[%s489 + $0x112] sm:$0xff]
        %v642 = vld [vmem:[%s489 + $0x122] sm:$0xff]
        %v643 = vld [vmem:[%s489 + $0x12a] sm:$0xff]
        %v644 = vld [vmem:[%s489 + $0x13a] sm:$0xff]
        %v645 = vld [vmem:[%s489 + $0x142] sm:$0xff]
        %v646 = vld [vmem:[%s489 + $0x152] sm:$0xff]
        %v647 = vld [vmem:[%s489 + $0x15a] sm:$0xff]
        %v648 = vld [vmem:[%s489 + $0x16a] sm:$0xff]
        %v649 = vld [vmem:[%s489 + $0x172] sm:$0xff]
        %650 = vst [vmem:[#allocation3 + $0x28] sm:$0xff] %v618
        %651 = vst [vmem:[#allocation3 + $0x70] sm:$0xff] %v619
        %652 = vst [vmem:[#allocation3 + $0xb8] sm:$0xff] %v620
        %653 = vst [vmem:[#allocation3 + $0x100] sm:$0xff] %v621
        %654 = vst [vmem:[#allocation3 + $0x148] sm:$0xff] %v622
        %655 = vst [vmem:[#allocation3 + $0x190] sm:$0xff] %v623
        %656 = vst [vmem:[#allocation3 + $0x1d8] sm:$0xff] %v624
        %657 = vst [vmem:[#allocation3 + $0x220] sm:$0xff] %v625
        %658 = vst [vmem:[#allocation3 + $0x268] sm:$0xff] %v626
        %659 = vst [vmem:[#allocation3 + $0x2b0] sm:$0xff] %v627
        %660 = vst [vmem:[#allocation3 + $0x2f8] sm:$0xff] %v628
        %661 = vst [vmem:[#allocation3 + $0x340] sm:$0xff] %v629
        %662 = vst [vmem:[#allocation3 + $0x388] sm:$0xff] %v630
        %663 = vst [vmem:[#allocation3 + $0x3d0] sm:$0xff] %v631
        %664 = vst [vmem:[#allocation3 + $0x418] sm:$0xff] %v632
        %665 = vst [vmem:[#allocation3 + $0x460] sm:$0xff] %v633
        %666 = vst [vmem:[#allocation3 + $0x4a8] sm:$0xff] %v634
        %667 = vst [vmem:[#allocation3 + $0x4f0] sm:$0xff] %v635
        %668 = vst [vmem:[#allocation3 + $0x538] sm:$0xff] %v636
        %669 = vst [vmem:[#allocation3 + $0x580] sm:$0xff] %v637
        %670 = vst [vmem:[#allocation3 + $0x5c8] sm:$0xff] %v638
        %671 = vst [vmem:[#allocation3 + $0x610] sm:$0xff] %v639
        %672 = vst [vmem:[#allocation3 + $0x658] sm:$0xff] %v640
        %673 = vst [vmem:[#allocation3 + $0x6a0] sm:$0xff] %v641
        %674 = vst [vmem:[#allocation3 + $0x6e8] sm:$0xff] %v642
        %675 = vst [vmem:[#allocation3 + $0x730] sm:$0xff] %v643
        %676 = vst [vmem:[#allocation3 + $0x778] sm:$0xff] %v644
        %677 = vst [vmem:[#allocation3 + $0x7c0] sm:$0xff] %v645
        %678 = vst [vmem:[#allocation3 + $0x808] sm:$0xff] %v646
        %679 = vst [vmem:[#allocation3 + $0x850] sm:$0xff] %v647
        %680 = vst [vmem:[#allocation3 + $0x898] sm:$0xff] %v648
        %681 = vst [vmem:[#allocation3 + $0x8e0] sm:$0xff] %v649
        %s682 = scalar_lea.vmem %s254, 48 [#allocation4]
        %v683 = vld [vmem:[%s682] sm:$0xff]
        %v684 = vld [vmem:[%s682 + $0x8] sm:$0xff]
        %v685 = vld [vmem:[%s682 + $0x18] sm:$0xff]
        %v686 = vld [vmem:[%s682 + $0x20] sm:$0xff]
        %v687 = vld [vmem:[%s682 + $0x30] sm:$0xff]
        %v688 = vld [vmem:[%s682 + $0x38] sm:$0xff]
        %v689 = vld [vmem:[%s682 + $0x48] sm:$0xff]
        %v690 = vld [vmem:[%s682 + $0x50] sm:$0xff]
        %v691 = vld [vmem:[%s682 + $0x60] sm:$0xff]
        %v692 = vld [vmem:[%s682 + $0x68] sm:$0xff]
        %v693 = vld [vmem:[%s682 + $0x78] sm:$0xff]
        %v694 = vld [vmem:[%s682 + $0x80] sm:$0xff]
        %v695 = vld [vmem:[%s682 + $0x90] sm:$0xff]
        %v696 = vld [vmem:[%s682 + $0x98] sm:$0xff]
        %v697 = vld [vmem:[%s682 + $0xa8] sm:$0xff]
        %v698 = vld [vmem:[%s682 + $0xb0] sm:$0xff]
        %v699 = vld [vmem:[%s682 + $0xc0] sm:$0xff]
        %v700 = vld [vmem:[%s682 + $0xc8] sm:$0xff]
        %v701 = vld [vmem:[%s682 + $0xd8] sm:$0xff]
        %v702 = vld [vmem:[%s682 + $0xe0] sm:$0xff]
        %v703 = vld [vmem:[%s682 + $0xf0] sm:$0xff]
        %v704 = vld [vmem:[%s682 + $0xf8] sm:$0xff]
        %v705 = vld [vmem:[%s682 + $0x108] sm:$0xff]
        %v706 = vld [vmem:[%s682 + $0x110] sm:$0xff]
        %v707 = vld [vmem:[%s682 + $0x120] sm:$0xff]
        %v708 = vld [vmem:[%s682 + $0x128] sm:$0xff]
        %v709 = vld [vmem:[%s682 + $0x138] sm:$0xff]
        %v710 = vld [vmem:[%s682 + $0x140] sm:$0xff]
        %v711 = vld [vmem:[%s682 + $0x150] sm:$0xff]
        %v712 = vld [vmem:[%s682 + $0x158] sm:$0xff]
        %v713 = vld [vmem:[%s682 + $0x168] sm:$0xff]
        %v714 = vld [vmem:[%s682 + $0x170] sm:$0xff]
        %715 = vst [vmem:[#allocation3 + $0x30] sm:$0xff] %v683
        %716 = vst [vmem:[#allocation3 + $0x78] sm:$0xff] %v684
        %717 = vst [vmem:[#allocation3 + $0xc0] sm:$0xff] %v685
        %718 = vst [vmem:[#allocation3 + $0x108] sm:$0xff] %v686
        %719 = vst [vmem:[#allocation3 + $0x150] sm:$0xff] %v687
        %720 = vst [vmem:[#allocation3 + $0x198] sm:$0xff] %v688
        %721 = vst [vmem:[#allocation3 + $0x1e0] sm:$0xff] %v689
        %722 = vst [vmem:[#allocation3 + $0x228] sm:$0xff] %v690
        %723 = vst [vmem:[#allocation3 + $0x270] sm:$0xff] %v691
        %724 = vst [vmem:[#allocation3 + $0x2b8] sm:$0xff] %v692
        %725 = vst [vmem:[#allocation3 + $0x300] sm:$0xff] %v693
        %726 = vst [vmem:[#allocation3 + $0x348] sm:$0xff] %v694
        %727 = vst [vmem:[#allocation3 + $0x390] sm:$0xff] %v695
        %728 = vst [vmem:[#allocation3 + $0x3d8] sm:$0xff] %v696
        %729 = vst [vmem:[#allocation3 + $0x420] sm:$0xff] %v697
        %730 = vst [vmem:[#allocation3 + $0x468] sm:$0xff] %v698
        %731 = vst [vmem:[#allocation3 + $0x4b0] sm:$0xff] %v699
        %732 = vst [vmem:[#allocation3 + $0x4f8] sm:$0xff] %v700
        %733 = vst [vmem:[#allocation3 + $0x540] sm:$0xff] %v701
        %734 = vst [vmem:[#allocation3 + $0x588] sm:$0xff] %v702
        %735 = vst [vmem:[#allocation3 + $0x5d0] sm:$0xff] %v703
        %736 = vst [vmem:[#allocation3 + $0x618] sm:$0xff] %v704
        %737 = vst [vmem:[#allocation3 + $0x660] sm:$0xff] %v705
        %738 = vst [vmem:[#allocation3 + $0x6a8] sm:$0xff] %v706
        %739 = vst [vmem:[#allocation3 + $0x6f0] sm:$0xff] %v707
        %740 = vst [vmem:[#allocation3 + $0x738] sm:$0xff] %v708
        %741 = vst [vmem:[#allocation3 + $0x780] sm:$0xff] %v709
        %742 = vst [vmem:[#allocation3 + $0x7c8] sm:$0xff] %v710
        %743 = vst [vmem:[#allocation3 + $0x810] sm:$0xff] %v711
        %744 = vst [vmem:[#allocation3 + $0x858] sm:$0xff] %v712
        %745 = vst [vmem:[#allocation3 + $0x8a0] sm:$0xff] %v713
        %746 = vst [vmem:[#allocation3 + $0x8e8] sm:$0xff] %v714
        %v747 = vld [vmem:[%s682 + $0x1] sm:$0xff]
        %v748 = vld [vmem:[%s682 + $0x9] sm:$0xff]
        %v749 = vld [vmem:[%s682 + $0x19] sm:$0xff]
        %v750 = vld [vmem:[%s682 + $0x21] sm:$0xff]
        %v751 = vld [vmem:[%s682 + $0x31] sm:$0xff]
        %v752 = vld [vmem:[%s682 + $0x39] sm:$0xff]
        %v753 = vld [vmem:[%s682 + $0x49] sm:$0xff]
        %v754 = vld [vmem:[%s682 + $0x51] sm:$0xff]
        %v755 = vld [vmem:[%s682 + $0x61] sm:$0xff]
        %v756 = vld [vmem:[%s682 + $0x69] sm:$0xff]
        %v757 = vld [vmem:[%s682 + $0x79] sm:$0xff]
        %v758 = vld [vmem:[%s682 + $0x81] sm:$0xff]
        %v759 = vld [vmem:[%s682 + $0x91] sm:$0xff]
        %v760 = vld [vmem:[%s682 + $0x99] sm:$0xff]
        %v761 = vld [vmem:[%s682 + $0xa9] sm:$0xff]
        %v762 = vld [vmem:[%s682 + $0xb1] sm:$0xff]
        %v763 = vld [vmem:[%s682 + $0xc1] sm:$0xff]
        %v764 = vld [vmem:[%s682 + $0xc9] sm:$0xff]
        %v765 = vld [vmem:[%s682 + $0xd9] sm:$0xff]
        %v766 = vld [vmem:[%s682 + $0xe1] sm:$0xff]
        %v767 = vld [vmem:[%s682 + $0xf1] sm:$0xff]
        %v768 = vld [vmem:[%s682 + $0xf9] sm:$0xff]
        %v769 = vld [vmem:[%s682 + $0x109] sm:$0xff]
        %v770 = vld [vmem:[%s682 + $0x111] sm:$0xff]
        %v771 = vld [vmem:[%s682 + $0x121] sm:$0xff]
        %v772 = vld [vmem:[%s682 + $0x129] sm:$0xff]
        %v773 = vld [vmem:[%s682 + $0x139] sm:$0xff]
        %v774 = vld [vmem:[%s682 + $0x141] sm:$0xff]
        %v775 = vld [vmem:[%s682 + $0x151] sm:$0xff]
        %v776 = vld [vmem:[%s682 + $0x159] sm:$0xff]
        %v777 = vld [vmem:[%s682 + $0x169] sm:$0xff]
        %v778 = vld [vmem:[%s682 + $0x171] sm:$0xff]
        %779 = vst [vmem:[#allocation3 + $0x38] sm:$0xff] %v747
        %780 = vst [vmem:[#allocation3 + $0x80] sm:$0xff] %v748
        %781 = vst [vmem:[#allocation3 + $0xc8] sm:$0xff] %v749
        %782 = vst [vmem:[#allocation3 + $0x110] sm:$0xff] %v750
        %783 = vst [vmem:[#allocation3 + $0x158] sm:$0xff] %v751
        %784 = vst [vmem:[#allocation3 + $0x1a0] sm:$0xff] %v752
        %785 = vst [vmem:[#allocation3 + $0x1e8] sm:$0xff] %v753
        %786 = vst [vmem:[#allocation3 + $0x230] sm:$0xff] %v754
        %787 = vst [vmem:[#allocation3 + $0x278] sm:$0xff] %v755
        %788 = vst [vmem:[#allocation3 + $0x2c0] sm:$0xff] %v756
        %789 = vst [vmem:[#allocation3 + $0x308] sm:$0xff] %v757
        %790 = vst [vmem:[#allocation3 + $0x350] sm:$0xff] %v758
        %791 = vst [vmem:[#allocation3 + $0x398] sm:$0xff] %v759
        %792 = vst [vmem:[#allocation3 + $0x3e0] sm:$0xff] %v760
        %793 = vst [vmem:[#allocation3 + $0x428] sm:$0xff] %v761
        %794 = vst [vmem:[#allocation3 + $0x470] sm:$0xff] %v762
        %795 = vst [vmem:[#allocation3 + $0x4b8] sm:$0xff] %v763
        %796 = vst [vmem:[#allocation3 + $0x500] sm:$0xff] %v764
        %797 = vst [vmem:[#allocation3 + $0x548] sm:$0xff] %v765
        %798 = vst [vmem:[#allocation3 + $0x590] sm:$0xff] %v766
        %799 = vst [vmem:[#allocation3 + $0x5d8] sm:$0xff] %v767
        %800 = vst [vmem:[#allocation3 + $0x620] sm:$0xff] %v768
        %801 = vst [vmem:[#allocation3 + $0x668] sm:$0xff] %v769
        %802 = vst [vmem:[#allocation3 + $0x6b0] sm:$0xff] %v770
        %803 = vst [vmem:[#allocation3 + $0x6f8] sm:$0xff] %v771
        %804 = vst [vmem:[#allocation3 + $0x740] sm:$0xff] %v772
        %805 = vst [vmem:[#allocation3 + $0x788] sm:$0xff] %v773
        %806 = vst [vmem:[#allocation3 + $0x7d0] sm:$0xff] %v774
        %807 = vst [vmem:[#allocation3 + $0x818] sm:$0xff] %v775
        %808 = vst [vmem:[#allocation3 + $0x860] sm:$0xff] %v776
        %809 = vst [vmem:[#allocation3 + $0x8a8] sm:$0xff] %v777
        %810 = vst [vmem:[#allocation3 + $0x8f0] sm:$0xff] %v778
        %v811 = vld [vmem:[%s682 + $0x2] sm:$0xff]
        %v812 = vld [vmem:[%s682 + $0xa] sm:$0xff]
        %v813 = vld [vmem:[%s682 + $0x1a] sm:$0xff]
        %v814 = vld [vmem:[%s682 + $0x22] sm:$0xff]
        %v815 = vld [vmem:[%s682 + $0x32] sm:$0xff]
        %v816 = vld [vmem:[%s682 + $0x3a] sm:$0xff]
        %v817 = vld [vmem:[%s682 + $0x4a] sm:$0xff]
        %v818 = vld [vmem:[%s682 + $0x52] sm:$0xff]
        %v819 = vld [vmem:[%s682 + $0x62] sm:$0xff]
        %v820 = vld [vmem:[%s682 + $0x6a] sm:$0xff]
        %v821 = vld [vmem:[%s682 + $0x7a] sm:$0xff]
        %v822 = vld [vmem:[%s682 + $0x82] sm:$0xff]
        %v823 = vld [vmem:[%s682 + $0x92] sm:$0xff]
        %v824 = vld [vmem:[%s682 + $0x9a] sm:$0xff]
        %v825 = vld [vmem:[%s682 + $0xaa] sm:$0xff]
        %v826 = vld [vmem:[%s682 + $0xb2] sm:$0xff]
        %v827 = vld [vmem:[%s682 + $0xc2] sm:$0xff]
        %v828 = vld [vmem:[%s682 + $0xca] sm:$0xff]
        %v829 = vld [vmem:[%s682 + $0xda] sm:$0xff]
        %v830 = vld [vmem:[%s682 + $0xe2] sm:$0xff]
        %v831 = vld [vmem:[%s682 + $0xf2] sm:$0xff]
        %v832 = vld [vmem:[%s682 + $0xfa] sm:$0xff]
        %v833 = vld [vmem:[%s682 + $0x10a] sm:$0xff]
        %v834 = vld [vmem:[%s682 + $0x112] sm:$0xff]
        %v835 = vld [vmem:[%s682 + $0x122] sm:$0xff]
        %v836 = vld [vmem:[%s682 + $0x12a] sm:$0xff]
        %v837 = vld [vmem:[%s682 + $0x13a] sm:$0xff]
        %v838 = vld [vmem:[%s682 + $0x142] sm:$0xff]
        %v839 = vld [vmem:[%s682 + $0x152] sm:$0xff]
        %v840 = vld [vmem:[%s682 + $0x15a] sm:$0xff]
        %v841 = vld [vmem:[%s682 + $0x16a] sm:$0xff]
        %v842 = vld [vmem:[%s682 + $0x172] sm:$0xff]
        %843 = vst [vmem:[#allocation3 + $0x40] sm:$0xff] %v811
        %844 = vst [vmem:[#allocation3 + $0x88] sm:$0xff] %v812
        %845 = vst [vmem:[#allocation3 + $0xd0] sm:$0xff] %v813
        %846 = vst [vmem:[#allocation3 + $0x118] sm:$0xff] %v814
        %847 = vst [vmem:[#allocation3 + $0x160] sm:$0xff] %v815
        %848 = vst [vmem:[#allocation3 + $0x1a8] sm:$0xff] %v816
        %849 = vst [vmem:[#allocation3 + $0x1f0] sm:$0xff] %v817
        %850 = vst [vmem:[#allocation3 + $0x238] sm:$0xff] %v818
        %851 = vst [vmem:[#allocation3 + $0x280] sm:$0xff] %v819
        %852 = vst [vmem:[#allocation3 + $0x2c8] sm:$0xff] %v820
        %853 = vst [vmem:[#allocation3 + $0x310] sm:$0xff] %v821
        %854 = vst [vmem:[#allocation3 + $0x358] sm:$0xff] %v822
        %855 = vst [vmem:[#allocation3 + $0x3a0] sm:$0xff] %v823
        %856 = vst [vmem:[#allocation3 + $0x3e8] sm:$0xff] %v824
        %857 = vst [vmem:[#allocation3 + $0x430] sm:$0xff] %v825
        %858 = vst [vmem:[#allocation3 + $0x478] sm:$0xff] %v826
        %859 = vst [vmem:[#allocation3 + $0x4c0] sm:$0xff] %v827
        %860 = vst [vmem:[#allocation3 + $0x508] sm:$0xff] %v828
        %861 = vst [vmem:[#allocation3 + $0x550] sm:$0xff] %v829
        %862 = vst [vmem:[#allocation3 + $0x598] sm:$0xff] %v830
        %863 = vst [vmem:[#allocation3 + $0x5e0] sm:$0xff] %v831
        %864 = vst [vmem:[#allocation3 + $0x628] sm:$0xff] %v832
        %865 = vst [vmem:[#allocation3 + $0x670] sm:$0xff] %v833
        %866 = vst [vmem:[#allocation3 + $0x6b8] sm:$0xff] %v834
        %867 = vst [vmem:[#allocation3 + $0x700] sm:$0xff] %v835
        %868 = vst [vmem:[#allocation3 + $0x748] sm:$0xff] %v836
        %869 = vst [vmem:[#allocation3 + $0x790] sm:$0xff] %v837
        %870 = vst [vmem:[#allocation3 + $0x7d8] sm:$0xff] %v838
        %871 = vst [vmem:[#allocation3 + $0x820] sm:$0xff] %v839
        %872 = vst [vmem:[#allocation3 + $0x868] sm:$0xff] %v840
        %873 = vst [vmem:[#allocation3 + $0x8b0] sm:$0xff] %v841
        %874 = vst [vmem:[#allocation3 + $0x8f8] sm:$0xff] %v842
        %v875 = vld [vmem:[#allocation3] sm:$0xff]
        %v876 = vld [vmem:[#allocation3 + $0x8] sm:$0xff]
        %v877 = vld [vmem:[#allocation3 + $0x10] sm:$0xff]
        %v878 = vld [vmem:[#allocation3 + $0x18] sm:$0xff]
        %v879 = vld [vmem:[#allocation3 + $0x20] sm:$0xff]
        %v880 = vld [vmem:[#allocation3 + $0x28] sm:$0xff]
        %v881 = vld [vmem:[#allocation3 + $0x30] sm:$0xff]
        %v882 = vld [vmem:[#allocation3 + $0x38] sm:$0xff]
        %v883 = vld [vmem:[#allocation3 + $0x40] sm:$0xff]
        %v884 = vld [vmem:[#allocation3 + $0x48] sm:$0xff]
        %v885 = vld [vmem:[#allocation3 + $0x50] sm:$0xff]
        %v886 = vld [vmem:[#allocation3 + $0x58] sm:$0xff]
        %v887 = vld [vmem:[#allocation3 + $0x60] sm:$0xff]
        %v888 = vld [vmem:[#allocation3 + $0x68] sm:$0xff]
        %v889 = vld [vmem:[#allocation3 + $0x70] sm:$0xff]
        %v890 = vld [vmem:[#allocation3 + $0x78] sm:$0xff]
        %v891 = vld [vmem:[#allocation3 + $0x80] sm:$0xff]
        %v892 = vld [vmem:[#allocation3 + $0x88] sm:$0xff]
        %v893 = vld [vmem:[#allocation3 + $0x90] sm:$0xff]
        %v894 = vld [vmem:[#allocation3 + $0x98] sm:$0xff]
        %v895 = vld [vmem:[#allocation3 + $0xa0] sm:$0xff]
        %v896 = vld [vmem:[#allocation3 + $0xa8] sm:$0xff]
        %v897 = vld [vmem:[#allocation3 + $0xb0] sm:$0xff]
        %v898 = vld [vmem:[#allocation3 + $0xb8] sm:$0xff]
        %v899 = vld [vmem:[#allocation3 + $0xc0] sm:$0xff]
        %v900 = vld [vmem:[#allocation3 + $0xc8] sm:$0xff]
        %v901 = vld [vmem:[#allocation3 + $0xd0] sm:$0xff]
        %v902 = vld [vmem:[#allocation3 + $0xd8] sm:$0xff]
        %v903 = vld [vmem:[#allocation3 + $0xe0] sm:$0xff]
        %v904 = vld [vmem:[#allocation3 + $0xe8] sm:$0xff]
        %v905 = vld [vmem:[#allocation3 + $0xf0] sm:$0xff]
        %v906 = vld [vmem:[#allocation3 + $0xf8] sm:$0xff]
        %v907 = vld [vmem:[#allocation3 + $0x100] sm:$0xff]
        %v908 = vld [vmem:[#allocation3 + $0x108] sm:$0xff]
        %v909 = vld [vmem:[#allocation3 + $0x110] sm:$0xff]
        %v910 = vld [vmem:[#allocation3 + $0x118] sm:$0xff]
        %v911 = vld [vmem:[#allocation3 + $0x120] sm:$0xff]
        %v912 = vld [vmem:[#allocation3 + $0x128] sm:$0xff]
        %v913 = vld [vmem:[#allocation3 + $0x130] sm:$0xff]
        %v914 = vld [vmem:[#allocation3 + $0x138] sm:$0xff]
        %v915 = vld [vmem:[#allocation3 + $0x140] sm:$0xff]
        %v916 = vld [vmem:[#allocation3 + $0x148] sm:$0xff]
        %v917 = vld [vmem:[#allocation3 + $0x150] sm:$0xff]
        %v918 = vld [vmem:[#allocation3 + $0x158] sm:$0xff]
        %v919 = vld [vmem:[#allocation3 + $0x160] sm:$0xff]
        %v920 = vld [vmem:[#allocation3 + $0x168] sm:$0xff]
        %v921 = vld [vmem:[#allocation3 + $0x170] sm:$0xff]
        %v922 = vld [vmem:[#allocation3 + $0x178] sm:$0xff]
        %v923 = vld [vmem:[#allocation3 + $0x180] sm:$0xff]
        %v924 = vld [vmem:[#allocation3 + $0x188] sm:$0xff]
        %v925 = vld [vmem:[#allocation3 + $0x190] sm:$0xff]
        %v926 = vld [vmem:[#allocation3 + $0x198] sm:$0xff]
        %v927 = vld [vmem:[#allocation3 + $0x1a0] sm:$0xff]
        %v928 = vld [vmem:[#allocation3 + $0x1a8] sm:$0xff]
        %v929 = vld [vmem:[#allocation3 + $0x1b0] sm:$0xff]
        %v930 = vld [vmem:[#allocation3 + $0x1b8] sm:$0xff]
        %v931 = vld [vmem:[#allocation3 + $0x1c0] sm:$0xff]
        %v932 = vld [vmem:[#allocation3 + $0x1c8] sm:$0xff]
        %v933 = vld [vmem:[#allocation3 + $0x1d0] sm:$0xff]
        %v934 = vld [vmem:[#allocation3 + $0x1d8] sm:$0xff]
        %v935 = vld [vmem:[#allocation3 + $0x1e0] sm:$0xff]
        %v936 = vld [vmem:[#allocation3 + $0x1e8] sm:$0xff]
        %v937 = vld [vmem:[#allocation3 + $0x1f0] sm:$0xff]
        %v938 = vld [vmem:[#allocation3 + $0x1f8] sm:$0xff]
        %v939 = vld [vmem:[#allocation3 + $0x200] sm:$0xff]
        %v940 = vld [vmem:[#allocation3 + $0x208] sm:$0xff]
        %v941 = vld [vmem:[#allocation3 + $0x210] sm:$0xff]
        %v942 = vld [vmem:[#allocation3 + $0x218] sm:$0xff]
        %v943 = vld [vmem:[#allocation3 + $0x220] sm:$0xff]
        %v944 = vld [vmem:[#allocation3 + $0x228] sm:$0xff]
        %v945 = vld [vmem:[#allocation3 + $0x230] sm:$0xff]
        %v946 = vld [vmem:[#allocation3 + $0x238] sm:$0xff]
        %v947 = vld [vmem:[#allocation3 + $0x240] sm:$0xff]
        %v948 = vld [vmem:[#allocation3 + $0x248] sm:$0xff]
        %v949 = vld [vmem:[#allocation3 + $0x250] sm:$0xff]
        %v950 = vld [vmem:[#allocation3 + $0x258] sm:$0xff]
        %v951 = vld [vmem:[#allocation3 + $0x260] sm:$0xff]
        %v952 = vld [vmem:[#allocation3 + $0x268] sm:$0xff]
        %v953 = vld [vmem:[#allocation3 + $0x270] sm:$0xff]
        %v954 = vld [vmem:[#allocation3 + $0x278] sm:$0xff]
        %v955 = vld [vmem:[#allocation3 + $0x280] sm:$0xff]
        %v956 = vld [vmem:[#allocation3 + $0x288] sm:$0xff]
        %v957 = vld [vmem:[#allocation3 + $0x290] sm:$0xff]
        %v958 = vld [vmem:[#allocation3 + $0x298] sm:$0xff]
        %v959 = vld [vmem:[#allocation3 + $0x2a0] sm:$0xff]
        %v960 = vld [vmem:[#allocation3 + $0x2a8] sm:$0xff]
        %v961 = vld [vmem:[#allocation3 + $0x2b0] sm:$0xff]
        %v962 = vld [vmem:[#allocation3 + $0x2b8] sm:$0xff]
        %v963 = vld [vmem:[#allocation3 + $0x2c0] sm:$0xff]
        %v964 = vld [vmem:[#allocation3 + $0x2c8] sm:$0xff]
        %v965 = vld [vmem:[#allocation3 + $0x2d0] sm:$0xff]
        %v966 = vld [vmem:[#allocation3 + $0x2d8] sm:$0xff]
        %v967 = vld [vmem:[#allocation3 + $0x2e0] sm:$0xff]
        %v968 = vld [vmem:[#allocation3 + $0x2e8] sm:$0xff]
        %v969 = vld [vmem:[#allocation3 + $0x2f0] sm:$0xff]
        %v970 = vld [vmem:[#allocation3 + $0x2f8] sm:$0xff]
        %v971 = vld [vmem:[#allocation3 + $0x300] sm:$0xff]
        %v972 = vld [vmem:[#allocation3 + $0x308] sm:$0xff]
        %v973 = vld [vmem:[#allocation3 + $0x310] sm:$0xff]
        %v974 = vld [vmem:[#allocation3 + $0x318] sm:$0xff]
        %v975 = vld [vmem:[#allocation3 + $0x320] sm:$0xff]
        %v976 = vld [vmem:[#allocation3 + $0x328] sm:$0xff]
        %v977 = vld [vmem:[#allocation3 + $0x330] sm:$0xff]
        %v978 = vld [vmem:[#allocation3 + $0x338] sm:$0xff]
        %v979 = vld [vmem:[#allocation3 + $0x340] sm:$0xff]
        %v980 = vld [vmem:[#allocation3 + $0x348] sm:$0xff]
        %v981 = vld [vmem:[#allocation3 + $0x350] sm:$0xff]
        %v982 = vld [vmem:[#allocation3 + $0x358] sm:$0xff]
        %v983 = vld [vmem:[#allocation3 + $0x360] sm:$0xff]
        %v984 = vld [vmem:[#allocation3 + $0x368] sm:$0xff]
        %v985 = vld [vmem:[#allocation3 + $0x370] sm:$0xff]
        %v986 = vld [vmem:[#allocation3 + $0x378] sm:$0xff]
        %v987 = vld [vmem:[#allocation3 + $0x380] sm:$0xff]
        %v988 = vld [vmem:[#allocation3 + $0x388] sm:$0xff]
        %v989 = vld [vmem:[#allocation3 + $0x390] sm:$0xff]
        %v990 = vld [vmem:[#allocation3 + $0x398] sm:$0xff]
        %v991 = vld [vmem:[#allocation3 + $0x3a0] sm:$0xff]
        %v992 = vld [vmem:[#allocation3 + $0x3a8] sm:$0xff]
        %v993 = vld [vmem:[#allocation3 + $0x3b0] sm:$0xff]
        %v994 = vld [vmem:[#allocation3 + $0x3b8] sm:$0xff]
        %v995 = vld [vmem:[#allocation3 + $0x3c0] sm:$0xff]
        %v996 = vld [vmem:[#allocation3 + $0x3c8] sm:$0xff]
        %v997 = vld [vmem:[#allocation3 + $0x3d0] sm:$0xff]
        %v998 = vld [vmem:[#allocation3 + $0x3d8] sm:$0xff]
        %v999 = vld [vmem:[#allocation3 + $0x3e0] sm:$0xff]
        %v1000 = vld [vmem:[#allocation3 + $0x3e8] sm:$0xff]
        %v1001 = vld [vmem:[#allocation3 + $0x3f0] sm:$0xff]
        %v1002 = vld [vmem:[#allocation3 + $0x3f8] sm:$0xff]
        %v1003 = vld [vmem:[#allocation3 + $0x400] sm:$0xff]
        %v1004 = vld [vmem:[#allocation3 + $0x408] sm:$0xff]
        %v1005 = vld [vmem:[#allocation3 + $0x410] sm:$0xff]
        %v1006 = vld [vmem:[#allocation3 + $0x418] sm:$0xff]
        %v1007 = vld [vmem:[#allocation3 + $0x420] sm:$0xff]
        %v1008 = vld [vmem:[#allocation3 + $0x428] sm:$0xff]
        %v1009 = vld [vmem:[#allocation3 + $0x430] sm:$0xff]
        %v1010 = vld [vmem:[#allocation3 + $0x438] sm:$0xff]
        %v1011 = vld [vmem:[#allocation3 + $0x440] sm:$0xff]
        %v1012 = vld [vmem:[#allocation3 + $0x448] sm:$0xff]
        %v1013 = vld [vmem:[#allocation3 + $0x450] sm:$0xff]
        %v1014 = vld [vmem:[#allocation3 + $0x458] sm:$0xff]
        %v1015 = vld [vmem:[#allocation3 + $0x460] sm:$0xff]
        %v1016 = vld [vmem:[#allocation3 + $0x468] sm:$0xff]
        %v1017 = vld [vmem:[#allocation3 + $0x470] sm:$0xff]
        %v1018 = vld [vmem:[#allocation3 + $0x478] sm:$0xff]
        %v1019 = vld [vmem:[#allocation3 + $0x480] sm:$0xff]
        %v1020 = vld [vmem:[#allocation3 + $0x488] sm:$0xff]
        %v1021 = vld [vmem:[#allocation3 + $0x490] sm:$0xff]
        %v1022 = vld [vmem:[#allocation3 + $0x498] sm:$0xff]
        %v1023 = vld [vmem:[#allocation3 + $0x4a0] sm:$0xff]
        %v1024 = vld [vmem:[#allocation3 + $0x4a8] sm:$0xff]
        %v1025 = vld [vmem:[#allocation3 + $0x4b0] sm:$0xff]
        %v1026 = vld [vmem:[#allocation3 + $0x4b8] sm:$0xff]
        %v1027 = vld [vmem:[#allocation3 + $0x4c0] sm:$0xff]
        %v1028 = vld [vmem:[#allocation3 + $0x4c8] sm:$0xff]
        %v1029 = vld [vmem:[#allocation3 + $0x4d0] sm:$0xff]
        %v1030 = vld [vmem:[#allocation3 + $0x4d8] sm:$0xff]
        %v1031 = vld [vmem:[#allocation3 + $0x4e0] sm:$0xff]
        %v1032 = vld [vmem:[#allocation3 + $0x4e8] sm:$0xff]
        %v1033 = vld [vmem:[#allocation3 + $0x4f0] sm:$0xff]
        %v1034 = vld [vmem:[#allocation3 + $0x4f8] sm:$0xff]
        %v1035 = vld [vmem:[#allocation3 + $0x500] sm:$0xff]
        %v1036 = vld [vmem:[#allocation3 + $0x508] sm:$0xff]
        %v1037 = vld [vmem:[#allocation3 + $0x510] sm:$0xff]
        %v1038 = vld [vmem:[#allocation3 + $0x518] sm:$0xff]
        %v1039 = vld [vmem:[#allocation3 + $0x520] sm:$0xff]
        %v1040 = vld [vmem:[#allocation3 + $0x528] sm:$0xff]
        %v1041 = vld [vmem:[#allocation3 + $0x530] sm:$0xff]
        %v1042 = vld [vmem:[#allocation3 + $0x538] sm:$0xff]
        %v1043 = vld [vmem:[#allocation3 + $0x540] sm:$0xff]
        %v1044 = vld [vmem:[#allocation3 + $0x548] sm:$0xff]
        %v1045 = vld [vmem:[#allocation3 + $0x550] sm:$0xff]
        %v1046 = vld [vmem:[#allocation3 + $0x558] sm:$0xff]
        %v1047 = vld [vmem:[#allocation3 + $0x560] sm:$0xff]
        %v1048 = vld [vmem:[#allocation3 + $0x568] sm:$0xff]
        %v1049 = vld [vmem:[#allocation3 + $0x570] sm:$0xff]
        %v1050 = vld [vmem:[#allocation3 + $0x578] sm:$0xff]
        %v1051 = vld [vmem:[#allocation3 + $0x580] sm:$0xff]
        %v1052 = vld [vmem:[#allocation3 + $0x588] sm:$0xff]
        %v1053 = vld [vmem:[#allocation3 + $0x590] sm:$0xff]
        %v1054 = vld [vmem:[#allocation3 + $0x598] sm:$0xff]
        %v1055 = vld [vmem:[#allocation3 + $0x5a0] sm:$0xff]
        %v1056 = vld [vmem:[#allocation3 + $0x5a8] sm:$0xff]
        %v1057 = vld [vmem:[#allocation3 + $0x5b0] sm:$0xff]
        %v1058 = vld [vmem:[#allocation3 + $0x5b8] sm:$0xff]
        %v1059 = vld [vmem:[#allocation3 + $0x5c0] sm:$0xff]
        %v1060 = vld [vmem:[#allocation3 + $0x5c8] sm:$0xff]
        %v1061 = vld [vmem:[#allocation3 + $0x5d0] sm:$0xff]
        %v1062 = vld [vmem:[#allocation3 + $0x5d8] sm:$0xff]
        %v1063 = vld [vmem:[#allocation3 + $0x5e0] sm:$0xff]
        %v1064 = vld [vmem:[#allocation3 + $0x5e8] sm:$0xff]
        %v1065 = vld [vmem:[#allocation3 + $0x5f0] sm:$0xff]
        %v1066 = vld [vmem:[#allocation3 + $0x5f8] sm:$0xff]
        %v1067 = vld [vmem:[#allocation3 + $0x600] sm:$0xff]
        %v1068 = vld [vmem:[#allocation3 + $0x608] sm:$0xff]
        %v1069 = vld [vmem:[#allocation3 + $0x610] sm:$0xff]
        %v1070 = vld [vmem:[#allocation3 + $0x618] sm:$0xff]
        %v1071 = vld [vmem:[#allocation3 + $0x620] sm:$0xff]
        %v1072 = vld [vmem:[#allocation3 + $0x628] sm:$0xff]
        %v1073 = vld [vmem:[#allocation3 + $0x630] sm:$0xff]
        %v1074 = vld [vmem:[#allocation3 + $0x638] sm:$0xff]
        %v1075 = vld [vmem:[#allocation3 + $0x640] sm:$0xff]
        %v1076 = vld [vmem:[#allocation3 + $0x648] sm:$0xff]
        %v1077 = vld [vmem:[#allocation3 + $0x650] sm:$0xff]
        %v1078 = vld [vmem:[#allocation3 + $0x658] sm:$0xff]
        %v1079 = vld [vmem:[#allocation3 + $0x660] sm:$0xff]
        %v1080 = vld [vmem:[#allocation3 + $0x668] sm:$0xff]
        %v1081 = vld [vmem:[#allocation3 + $0x670] sm:$0xff]
        %v1082 = vld [vmem:[#allocation3 + $0x678] sm:$0xff]
        %v1083 = vld [vmem:[#allocation3 + $0x680] sm:$0xff]
        %v1084 = vld [vmem:[#allocation3 + $0x688] sm:$0xff]
        %v1085 = vld [vmem:[#allocation3 + $0x690] sm:$0xff]
        %v1086 = vld [vmem:[#allocation3 + $0x698] sm:$0xff]
        %v1087 = vld [vmem:[#allocation3 + $0x6a0] sm:$0xff]
        %v1088 = vld [vmem:[#allocation3 + $0x6a8] sm:$0xff]
        %v1089 = vld [vmem:[#allocation3 + $0x6b0] sm:$0xff]
        %v1090 = vld [vmem:[#allocation3 + $0x6b8] sm:$0xff]
        %v1091 = vld [vmem:[#allocation3 + $0x6c0] sm:$0xff]
        %v1092 = vld [vmem:[#allocation3 + $0x6c8] sm:$0xff]
        %v1093 = vld [vmem:[#allocation3 + $0x6d0] sm:$0xff]
        %v1094 = vld [vmem:[#allocation3 + $0x6d8] sm:$0xff]
        %v1095 = vld [vmem:[#allocation3 + $0x6e0] sm:$0xff]
        %v1096 = vld [vmem:[#allocation3 + $0x6e8] sm:$0xff]
        %v1097 = vld [vmem:[#allocation3 + $0x6f0] sm:$0xff]
        %v1098 = vld [vmem:[#allocation3 + $0x6f8] sm:$0xff]
        %v1099 = vld [vmem:[#allocation3 + $0x700] sm:$0xff]
        %v1100 = vld [vmem:[#allocation3 + $0x708] sm:$0xff]
        %v1101 = vld [vmem:[#allocation3 + $0x710] sm:$0xff]
        %v1102 = vld [vmem:[#allocation3 + $0x718] sm:$0xff]
        %v1103 = vld [vmem:[#allocation3 + $0x720] sm:$0xff]
        %v1104 = vld [vmem:[#allocation3 + $0x728] sm:$0xff]
        %v1105 = vld [vmem:[#allocation3 + $0x730] sm:$0xff]
        %v1106 = vld [vmem:[#allocation3 + $0x738] sm:$0xff]
        %v1107 = vld [vmem:[#allocation3 + $0x740] sm:$0xff]
        %v1108 = vld [vmem:[#allocation3 + $0x748] sm:$0xff]
        %v1109 = vld [vmem:[#allocation3 + $0x750] sm:$0xff]
        %v1110 = vld [vmem:[#allocation3 + $0x758] sm:$0xff]
        %v1111 = vld [vmem:[#allocation3 + $0x760] sm:$0xff]
        %v1112 = vld [vmem:[#allocation3 + $0x768] sm:$0xff]
        %v1113 = vld [vmem:[#allocation3 + $0x770] sm:$0xff]
        %v1114 = vld [vmem:[#allocation3 + $0x778] sm:$0xff]
        %v1115 = vld [vmem:[#allocation3 + $0x780] sm:$0xff]
        %v1116 = vld [vmem:[#allocation3 + $0x788] sm:$0xff]
        %v1117 = vld [vmem:[#allocation3 + $0x790] sm:$0xff]
        %v1118 = vld [vmem:[#allocation3 + $0x798] sm:$0xff]
        %v1119 = vld [vmem:[#allocation3 + $0x7a0] sm:$0xff]
        %v1120 = vld [vmem:[#allocation3 + $0x7a8] sm:$0xff]
        %v1121 = vld [vmem:[#allocation3 + $0x7b0] sm:$0xff]
        %v1122 = vld [vmem:[#allocation3 + $0x7b8] sm:$0xff]
        %v1123 = vld [vmem:[#allocation3 + $0x7c0] sm:$0xff]
        %v1124 = vld [vmem:[#allocation3 + $0x7c8] sm:$0xff]
        %v1125 = vld [vmem:[#allocation3 + $0x7d0] sm:$0xff]
        %v1126 = vld [vmem:[#allocation3 + $0x7d8] sm:$0xff]
        %v1127 = vld [vmem:[#allocation3 + $0x7e0] sm:$0xff]
        %v1128 = vld [vmem:[#allocation3 + $0x7e8] sm:$0xff]
        %v1129 = vld [vmem:[#allocation3 + $0x7f0] sm:$0xff]
        %v1130 = vld [vmem:[#allocation3 + $0x7f8] sm:$0xff]
        %v1131 = vld [vmem:[#allocation3 + $0x800] sm:$0xff]
        %v1132 = vld [vmem:[#allocation3 + $0x808] sm:$0xff]
        %v1133 = vld [vmem:[#allocation3 + $0x810] sm:$0xff]
        %v1134 = vld [vmem:[#allocation3 + $0x818] sm:$0xff]
        %v1135 = vld [vmem:[#allocation3 + $0x820] sm:$0xff]
        %v1136 = vld [vmem:[#allocation3 + $0x828] sm:$0xff]
        %v1137 = vld [vmem:[#allocation3 + $0x830] sm:$0xff]
        %v1138 = vld [vmem:[#allocation3 + $0x838] sm:$0xff]
        %v1139 = vld [vmem:[#allocation3 + $0x840] sm:$0xff]
        %v1140 = vld [vmem:[#allocation3 + $0x848] sm:$0xff]
        %v1141 = vld [vmem:[#allocation3 + $0x850] sm:$0xff]
        %v1142 = vld [vmem:[#allocation3 + $0x858] sm:$0xff]
        %v1143 = vld [vmem:[#allocation3 + $0x860] sm:$0xff]
        %v1144 = vld [vmem:[#allocation3 + $0x868] sm:$0xff]
        %v1145 = vld [vmem:[#allocation3 + $0x870] sm:$0xff]
        %v1146 = vld [vmem:[#allocation3 + $0x878] sm:$0xff]
        %v1147 = vld [vmem:[#allocation3 + $0x880] sm:$0xff]
        %v1148 = vld [vmem:[#allocation3 + $0x888] sm:$0xff]
        %v1149 = vld [vmem:[#allocation3 + $0x890] sm:$0xff]
        %v1150 = vld [vmem:[#allocation3 + $0x898] sm:$0xff]
        %v1151 = vld [vmem:[#allocation3 + $0x8a0] sm:$0xff]
        %v1152 = vld [vmem:[#allocation3 + $0x8a8] sm:$0xff]
        %v1153 = vld [vmem:[#allocation3 + $0x8b0] sm:$0xff]
        %v1154 = vld [vmem:[#allocation3 + $0x8b8] sm:$0xff]
        %v1155 = vld [vmem:[#allocation3 + $0x8c0] sm:$0xff]
        %v1156 = vld [vmem:[#allocation3 + $0x8c8] sm:$0xff]
        %v1157 = vld [vmem:[#allocation3 + $0x8d0] sm:$0xff]
        %v1158 = vld [vmem:[#allocation3 + $0x8d8] sm:$0xff]
        %v1159 = vld [vmem:[#allocation3 + $0x8e0] sm:$0xff]
        %v1160 = vld [vmem:[#allocation3 + $0x8e8] sm:$0xff]
        %v1161 = vld [vmem:[#allocation3 + $0x8f0] sm:$0xff]
        %v1162 = vld [vmem:[#allocation3 + $0x8f8] sm:$0xff]
        %v1163 = vld [vmem:[#allocation7] sm:$0xff]
        %v1164 = vld [vmem:[#allocation7 + $0x8] sm:$0xff]
        %v1165 = vld [vmem:[#allocation7 + $0x10] sm:$0xff]
        %v1166 = vld [vmem:[#allocation7 + $0x18] sm:$0xff]
        %v1167 = vld [vmem:[#allocation7 + $0x20] sm:$0xff]
        %v1168 = vld [vmem:[#allocation7 + $0x28] sm:$0xff]
        %v1169 = vld [vmem:[#allocation7 + $0x30] sm:$0xff]
        %v1170 = vld [vmem:[#allocation7 + $0x38] sm:$0xff]
        %v1171 = vld [vmem:[#allocation7 + $0x40] sm:$0xff]
        %v1172 = vld [vmem:[#allocation7 + $0x48] sm:$0xff]
        %v1173 = vld [vmem:[#allocation7 + $0x50] sm:$0xff]
        %v1174 = vld [vmem:[#allocation7 + $0x58] sm:$0xff]
        %v1175 = vld [vmem:[#allocation7 + $0x60] sm:$0xff]
        %v1176 = vld [vmem:[#allocation7 + $0x68] sm:$0xff]
        %v1177 = vld [vmem:[#allocation7 + $0x70] sm:$0xff]
        %v1178 = vld [vmem:[#allocation7 + $0x78] sm:$0xff]
        %v1179 = vld [vmem:[#allocation7 + $0x80] sm:$0xff]
        %v1180 = vld [vmem:[#allocation7 + $0x88] sm:$0xff]
        %v1181 = vld [vmem:[#allocation7 + $0x90] sm:$0xff]
        %v1182 = vld [vmem:[#allocation7 + $0x98] sm:$0xff]
        %v1183 = vld [vmem:[#allocation7 + $0xa0] sm:$0xff]
        %v1184 = vld [vmem:[#allocation7 + $0xa8] sm:$0xff]
        %v1185 = vld [vmem:[#allocation7 + $0xb0] sm:$0xff]
        %v1186 = vld [vmem:[#allocation7 + $0xb8] sm:$0xff]
        %v1187 = vld [vmem:[#allocation7 + $0xc0] sm:$0xff]
        %v1188 = vld [vmem:[#allocation7 + $0xc8] sm:$0xff]
        %v1189 = vld [vmem:[#allocation7 + $0xd0] sm:$0xff]
        %v1190 = vld [vmem:[#allocation7 + $0xd8] sm:$0xff]
        %v1191 = vld [vmem:[#allocation7 + $0xe0] sm:$0xff]
        %v1192 = vld [vmem:[#allocation7 + $0xe8] sm:$0xff]
        %v1193 = vld [vmem:[#allocation7 + $0xf0] sm:$0xff]
        %v1194 = vld [vmem:[#allocation7 + $0xf8] sm:$0xff]
        %v1195 = vld [vmem:[#allocation7 + $0x100] sm:$0xff]
        %v1196 = vld [vmem:[#allocation7 + $0x108] sm:$0xff]
        %v1197 = vld [vmem:[#allocation7 + $0x110] sm:$0xff]
        %v1198 = vld [vmem:[#allocation7 + $0x118] sm:$0xff]
        %v1199 = vld [vmem:[#allocation7 + $0x120] sm:$0xff]
        %v1200 = vld [vmem:[#allocation7 + $0x128] sm:$0xff]
        %v1201 = vld [vmem:[#allocation7 + $0x130] sm:$0xff]
        %v1202 = vld [vmem:[#allocation7 + $0x138] sm:$0xff]
        %v1203 = vld [vmem:[#allocation7 + $0x140] sm:$0xff]
        %v1204 = vld [vmem:[#allocation7 + $0x148] sm:$0xff]
        %v1205 = vld [vmem:[#allocation7 + $0x150] sm:$0xff]
        %v1206 = vld [vmem:[#allocation7 + $0x158] sm:$0xff]
        %v1207 = vld [vmem:[#allocation7 + $0x160] sm:$0xff]
        %v1208 = vld [vmem:[#allocation7 + $0x168] sm:$0xff]
        %v1209 = vld [vmem:[#allocation7 + $0x170] sm:$0xff]
        %v1210 = vld [vmem:[#allocation7 + $0x178] sm:$0xff]
        %v1211 = vld [vmem:[#allocation7 + $0x180] sm:$0xff]
        %v1212 = vld [vmem:[#allocation7 + $0x188] sm:$0xff]
        %v1213 = vld [vmem:[#allocation7 + $0x190] sm:$0xff]
        %v1214 = vld [vmem:[#allocation7 + $0x198] sm:$0xff]
        %v1215 = vld [vmem:[#allocation7 + $0x1a0] sm:$0xff]
        %v1216 = vld [vmem:[#allocation7 + $0x1a8] sm:$0xff]
        %v1217 = vld [vmem:[#allocation7 + $0x1b0] sm:$0xff]
        %v1218 = vld [vmem:[#allocation7 + $0x1b8] sm:$0xff]
        %v1219 = vld [vmem:[#allocation7 + $0x1c0] sm:$0xff]
        %v1220 = vld [vmem:[#allocation7 + $0x1c8] sm:$0xff]
        %v1221 = vld [vmem:[#allocation7 + $0x1d0] sm:$0xff]
        %v1222 = vld [vmem:[#allocation7 + $0x1d8] sm:$0xff]
        %v1223 = vld [vmem:[#allocation7 + $0x1e0] sm:$0xff]
        %v1224 = vld [vmem:[#allocation7 + $0x1e8] sm:$0xff]
        %v1225 = vld [vmem:[#allocation7 + $0x1f0] sm:$0xff]
        %v1226 = vld [vmem:[#allocation7 + $0x1f8] sm:$0xff]
        %v1227 = vld [vmem:[#allocation7 + $0x200] sm:$0xff]
        %v1228 = vld [vmem:[#allocation7 + $0x208] sm:$0xff]
        %v1229 = vld [vmem:[#allocation7 + $0x210] sm:$0xff]
        %v1230 = vld [vmem:[#allocation7 + $0x218] sm:$0xff]
        %v1231 = vld [vmem:[#allocation7 + $0x220] sm:$0xff]
        %v1232 = vld [vmem:[#allocation7 + $0x228] sm:$0xff]
        %v1233 = vld [vmem:[#allocation7 + $0x230] sm:$0xff]
        %v1234 = vld [vmem:[#allocation7 + $0x238] sm:$0xff]
        %v1235 = vld [vmem:[#allocation7 + $0x240] sm:$0xff]
        %v1236 = vld [vmem:[#allocation7 + $0x248] sm:$0xff]
        %v1237 = vld [vmem:[#allocation7 + $0x250] sm:$0xff]
        %v1238 = vld [vmem:[#allocation7 + $0x258] sm:$0xff]
        %v1239 = vld [vmem:[#allocation7 + $0x260] sm:$0xff]
        %v1240 = vld [vmem:[#allocation7 + $0x268] sm:$0xff]
        %v1241 = vld [vmem:[#allocation7 + $0x270] sm:$0xff]
        %v1242 = vld [vmem:[#allocation7 + $0x278] sm:$0xff]
        %v1243 = vld [vmem:[#allocation7 + $0x280] sm:$0xff]
        %v1244 = vld [vmem:[#allocation7 + $0x288] sm:$0xff]
        %v1245 = vld [vmem:[#allocation7 + $0x290] sm:$0xff]
        %v1246 = vld [vmem:[#allocation7 + $0x298] sm:$0xff]
        %v1247 = vld [vmem:[#allocation7 + $0x2a0] sm:$0xff]
        %v1248 = vld [vmem:[#allocation7 + $0x2a8] sm:$0xff]
        %v1249 = vld [vmem:[#allocation7 + $0x2b0] sm:$0xff]
        %v1250 = vld [vmem:[#allocation7 + $0x2b8] sm:$0xff]
        %v1251 = vld [vmem:[#allocation7 + $0x2c0] sm:$0xff]
        %v1252 = vld [vmem:[#allocation7 + $0x2c8] sm:$0xff]
        %v1253 = vld [vmem:[#allocation7 + $0x2d0] sm:$0xff]
        %v1254 = vld [vmem:[#allocation7 + $0x2d8] sm:$0xff]
        %v1255 = vld [vmem:[#allocation7 + $0x2e0] sm:$0xff]
        %v1256 = vld [vmem:[#allocation7 + $0x2e8] sm:$0xff]
        %v1257 = vld [vmem:[#allocation7 + $0x2f0] sm:$0xff]
        %v1258 = vld [vmem:[#allocation7 + $0x2f8] sm:$0xff]
        %v1259 = vld [vmem:[#allocation7 + $0x300] sm:$0xff]
        %v1260 = vld [vmem:[#allocation7 + $0x308] sm:$0xff]
        %v1261 = vld [vmem:[#allocation7 + $0x310] sm:$0xff]
        %v1262 = vld [vmem:[#allocation7 + $0x318] sm:$0xff]
        %v1263 = vld [vmem:[#allocation7 + $0x320] sm:$0xff]
        %v1264 = vld [vmem:[#allocation7 + $0x328] sm:$0xff]
        %v1265 = vld [vmem:[#allocation7 + $0x330] sm:$0xff]
        %v1266 = vld [vmem:[#allocation7 + $0x338] sm:$0xff]
        %v1267 = vld [vmem:[#allocation7 + $0x340] sm:$0xff]
        %v1268 = vld [vmem:[#allocation7 + $0x348] sm:$0xff]
        %v1269 = vld [vmem:[#allocation7 + $0x350] sm:$0xff]
        %v1270 = vld [vmem:[#allocation7 + $0x358] sm:$0xff]
        %v1271 = vld [vmem:[#allocation7 + $0x360] sm:$0xff]
        %v1272 = vld [vmem:[#allocation7 + $0x368] sm:$0xff]
        %v1273 = vld [vmem:[#allocation7 + $0x370] sm:$0xff]
        %v1274 = vld [vmem:[#allocation7 + $0x378] sm:$0xff]
        %v1275 = vld [vmem:[#allocation7 + $0x380] sm:$0xff]
        %v1276 = vld [vmem:[#allocation7 + $0x388] sm:$0xff]
        %v1277 = vld [vmem:[#allocation7 + $0x390] sm:$0xff]
        %v1278 = vld [vmem:[#allocation7 + $0x398] sm:$0xff]
        %v1279 = vld [vmem:[#allocation7 + $0x3a0] sm:$0xff]
        %v1280 = vld [vmem:[#allocation7 + $0x3a8] sm:$0xff]
        %v1281 = vld [vmem:[#allocation7 + $0x3b0] sm:$0xff]
        %v1282 = vld [vmem:[#allocation7 + $0x3b8] sm:$0xff]
        %v1283 = vld [vmem:[#allocation7 + $0x3c0] sm:$0xff]
        %v1284 = vld [vmem:[#allocation7 + $0x3c8] sm:$0xff]
        %v1285 = vld [vmem:[#allocation7 + $0x3d0] sm:$0xff]
        %v1286 = vld [vmem:[#allocation7 + $0x3d8] sm:$0xff]
        %v1287 = vld [vmem:[#allocation7 + $0x3e0] sm:$0xff]
        %v1288 = vld [vmem:[#allocation7 + $0x3e8] sm:$0xff]
        %v1289 = vld [vmem:[#allocation7 + $0x3f0] sm:$0xff]
        %v1290 = vld [vmem:[#allocation7 + $0x3f8] sm:$0xff]
        %v1291 = vld [vmem:[#allocation7 + $0x400] sm:$0xff]
        %v1292 = vld [vmem:[#allocation7 + $0x408] sm:$0xff]
        %v1293 = vld [vmem:[#allocation7 + $0x410] sm:$0xff]
        %v1294 = vld [vmem:[#allocation7 + $0x418] sm:$0xff]
        %v1295 = vld [vmem:[#allocation7 + $0x420] sm:$0xff]
        %v1296 = vld [vmem:[#allocation7 + $0x428] sm:$0xff]
        %v1297 = vld [vmem:[#allocation7 + $0x430] sm:$0xff]
        %v1298 = vld [vmem:[#allocation7 + $0x438] sm:$0xff]
        %v1299 = vld [vmem:[#allocation7 + $0x440] sm:$0xff]
        %v1300 = vld [vmem:[#allocation7 + $0x448] sm:$0xff]
        %v1301 = vld [vmem:[#allocation7 + $0x450] sm:$0xff]
        %v1302 = vld [vmem:[#allocation7 + $0x458] sm:$0xff]
        %v1303 = vld [vmem:[#allocation7 + $0x460] sm:$0xff]
        %v1304 = vld [vmem:[#allocation7 + $0x468] sm:$0xff]
        %v1305 = vld [vmem:[#allocation7 + $0x470] sm:$0xff]
        %v1306 = vld [vmem:[#allocation7 + $0x478] sm:$0xff]
        %v1307 = vld [vmem:[#allocation9] sm:$0x1]
        %v1309 = vlaneseq
        %v1310 = vshrl.u32 %v1309, 7
        %v1311 = vsub.s32 0, %v1310
        %v1312 = vrot.slane %v1307, %v1311
        %1314 = vmatprep.subr.mxu0 0.0
        %1315 = vmatpush1.msra.mxu0 %v1163
        %1316 = vmatprep.subr.mxu0 0.0
        %1317 = vmatpush1.msra.mxu0 %v1164
        %1318 = vmatprep.subr.mxu0 0.0
        %1319 = vmatpush1.msra.mxu0 %v1165
        %1320 = vmatprep.subr.mxu0 0.0
        %1321 = vmatpush1.msra.mxu0 %v1166
        %1322 = vmatprep.subr.mxu0 0.0
        %1323 = vmatpush1.msra.mxu0 %v1167
        %1324 = vmatprep.subr.mxu0 0.0
        %1325 = vmatpush1.msra.mxu0 %v1168
        %1326 = vmatprep.subr.mxu0 0.0
        %1327 = vmatpush1.msra.mxu0 %v1169
        %1328 = vmatprep.subr.mxu0 0.0
        %1329 = vmatpush1.msra.mxu0 %v1170
        %1330 = vmatprep.subr.mxu0 0.0
        %1331 = vmatpush1.msra.mxu0 %v1171
        %1332 = vmatprep.subr.mxu0 0.0
        %1333 = vmatpush1.msra.mxu0 %v1172
        %1334 = vmatprep.subr.mxu0 0.0
        %1335 = vmatpush1.msra.mxu0 %v1173
        %1336 = vmatprep.subr.mxu0 0.0
        %1337 = vmatpush1.msra.mxu0 %v1174
        %1338 = vmatprep.subr.mxu0 0.0
        %1339 = vmatpush1.msra.mxu0 %v1175
        %1340 = vmatprep.subr.mxu0 0.0
        %1341 = vmatpush1.msra.mxu0 %v1176
        %1342 = vmatprep.subr.mxu0 0.0
        %1343 = vmatpush1.msra.mxu0 %v1177
        %1344 = vmatprep.subr.mxu0 0.0
        %1345 = vmatpush1.msra.mxu0 %v1178
        %1346 = vmatprep.subr.mxu0 0.0
        %1347 = vmatpush1.msra.mxu0 %v1179
        %1348 = vmatprep.subr.mxu0 0.0
        %1349 = vmatpush1.msra.mxu0 %v1180
        %1350 = vmatprep.subr.mxu0 0.0
        %1351 = vmatpush1.msra.mxu0 %v1181
        %1352 = vmatprep.subr.mxu0 0.0
        %1353 = vmatpush1.msra.mxu0 %v1182
        %1354 = vmatprep.subr.mxu0 0.0
        %1355 = vmatpush1.msra.mxu0 %v1183
        %1356 = vmatprep.subr.mxu0 0.0
        %1357 = vmatpush1.msra.mxu0 %v1184
        %1358 = vmatprep.subr.mxu0 0.0
        %1359 = vmatpush1.msra.mxu0 %v1185
        %1360 = vmatprep.subr.mxu0 0.0
        %1361 = vmatpush1.msra.mxu0 %v1186
        %1362 = vmatprep.subr.mxu0 0.0
        %1363 = vmatpush1.msra.mxu0 %v1187
        %1364 = vmatprep.subr.mxu0 0.0
        %1365 = vmatpush1.msra.mxu0 %v1188
        %1366 = vmatprep.subr.mxu0 0.0
        %1367 = vmatpush1.msra.mxu0 %v1189
        %1368 = vmatprep.subr.mxu0 0.0
        %1369 = vmatpush1.msra.mxu0 %v1190
        %1370 = vmatprep.subr.mxu0 0.0
        %1371 = vmatpush1.msra.mxu0 %v1191
        %1372 = vmatprep.subr.mxu0 0.0
        %1373 = vmatpush1.msra.mxu0 %v1192
        %1374 = vmatprep.subr.mxu0 0.0
        %1375 = vmatpush1.msra.mxu0 %v1193
        %1376 = vmatprep.subr.mxu0 0.0
        %1377 = vmatpush1.msra.mxu0 %v1194
        %1378 = vmatprep.mubr.f32.mxu0 %v876
        %1379 = vmatmul.mubr.f32.gmra.mrb[0].mxu0 %v875
        %v1380 = vpop.f32.mrb[0].mxu0
        %v1381 = vadd.f32 %v1312, %v1380
        %v1382 = vpop.f32.mrb[0].mxu0
        %1383 = vmatprep.mubr.f32.mxu0 %v885
        %1384 = vmatmul.mubr.f32.gmra.mrb[0].mxu0 %v884
        %v1385 = vpop.f32.mrb[0].mxu0
        %v1386 = vadd.f32 %v1312, %v1385
        %v1387 = vpop.f32.mrb[0].mxu0
        %1388 = vmatprep.mubr.f32.mxu0 %v894
        %1389 = vmatmul.mubr.f32.gmra.mrb[0].mxu0 %v893
        %v1390 = vpop.f32.mrb[0].mxu0
        %v1391 = vadd.f32 %v1312, %v1390
        %v1392 = vpop.f32.mrb[0].mxu0
        %1393 = vmatprep.mubr.f32.mxu0 %v903
        %1394 = vmatmul.mubr.f32.gmra.mrb[0].mxu0 %v902
        %v1395 = vpop.f32.mrb[0].mxu0
        %v1396 = vadd.f32 %v1312, %v1395
        %v1397 = vpop.f32.mrb[0].mxu0
        %1398 = vmatprep.mubr.f32.mxu0 %v912
        %1399 = vmatmul.mubr.f32.gmra.mrb[0].mxu0 %v911
        %v1400 = vpop.f32.mrb[0].mxu0
        %v1401 = vadd.f32 %v1312, %v1400
        %v1402 = vpop.f32.mrb[0].mxu0
        %1403 = vmatprep.mubr.f32.mxu0 %v921
        %1404 = vmatmul.mubr.f32.gmra.mrb[0].mxu0 %v920
        %v1405 = vpop.f32.mrb[0].mxu0
        %v1406 = vadd.f32 %v1312, %v1405
        %v1407 = vpop.f32.mrb[0].mxu0
        %1408 = vmatprep.mubr.f32.mxu0 %v930
        %1409 = vmatmul.mubr.f32.gmra.mrb[0].mxu0 %v929
        %v1410 = vpop.f32.mrb[0].mxu0
        %v1411 = vadd.f32 %v1312, %v1410
        %v1412 = vpop.f32.mrb[0].mxu0
        %1413 = vmatprep.mubr.f32.mxu0 %v939
        %1414 = vmatmul.mubr.f32.gmra.mrb[0].mxu0 %v938
        %v1415 = vpop.f32.mrb[0].mxu0
        %v1416 = vadd.f32 %v1312, %v1415
        %v1417 = vpop.f32.mrb[0].mxu0
        %1418 = vmatprep.mubr.f32.mxu0 %v948
        %1419 = vmatmul.mubr.f32.gmra.mrb[0].mxu0 %v947
        %v1420 = vpop.f32.mrb[0].mxu0
        %v1421 = vadd.f32 %v1312, %v1420
        %v1422 = vpop.f32.mrb[0].mxu0
        %1423 = vmatprep.mubr.f32.mxu0 %v957
        %1424 = vmatmul.mubr.f32.gmra.mrb[0].mxu0 %v956
        %v1425 = vpop.f32.mrb[0].mxu0
        %v1426 = vadd.f32 %v1312, %v1425
        %v1427 = vpop.f32.mrb[0].mxu0
        %1428 = vmatprep.mubr.f32.mxu0 %v966
        %1429 = vmatmul.mubr.f32.gmra.mrb[0].mxu0 %v965
        %v1430 = vpop.f32.mrb[0].mxu0
        %v1431 = vadd.f32 %v1312, %v1430
        %v1432 = vpop.f32.mrb[0].mxu0
        %1433 = vmatprep.mubr.f32.mxu0 %v975
        %1434 = vmatmul.mubr.f32.gmra.mrb[0].mxu0 %v974
        %v1435 = vpop.f32.mrb[0].mxu0
        %v1436 = vadd.f32 %v1312, %v1435
        %v1437 = vpop.f32.mrb[0].mxu0
        %1438 = vmatprep.mubr.f32.mxu0 %v984
        %1439 = vmatmul.mubr.f32.gmra.mrb[0].mxu0 %v983
        %v1440 = vpop.f32.mrb[0].mxu0
        %v1441 = vadd.f32 %v1312, %v1440
        %v1442 = vpop.f32.mrb[0].mxu0
        %1443 = vmatprep.mubr.f32.mxu0 %v993
        %1444 = vmatmul.mubr.f32.gmra.mrb[0].mxu0 %v992
        %v1445 = vpop.f32.mrb[0].mxu0
        %v1446 = vadd.f32 %v1312, %v1445
        %v1447 = vpop.f32.mrb[0].mxu0
        %1448 = vmatprep.mubr.f32.mxu0 %v1002
        %1449 = vmatmul.mubr.f32.gmra.mrb[0].mxu0 %v1001
        %v1450 = vpop.f32.mrb[0].mxu0
        %v1451 = vadd.f32 %v1312, %v1450
        %v1452 = vpop.f32.mrb[0].mxu0
        %1453 = vmatprep.mubr.f32.mxu0 %v1011
        %1454 = vmatmul.mubr.f32.gmra.mrb[0].mxu0 %v1010
        %v1455 = vpop.f32.mrb[0].mxu0
        %v1456 = vadd.f32 %v1312, %v1455
        %v1457 = vpop.f32.mrb[0].mxu0
        %1458 = vmatprep.mubr.f32.mxu0 %v1020
        %1459 = vmatmul.mubr.f32.gmra.mrb[0].mxu0 %v1019
        %v1460 = vpop.f32.mrb[0].mxu0
        %v1461 = vadd.f32 %v1312, %v1460
        %v1462 = vpop.f32.mrb[0].mxu0
        %1463 = vmatprep.mubr.f32.mxu0 %v1029
        %1464 = vmatmul.mubr.f32.gmra.mrb[0].mxu0 %v1028
        %v1465 = vpop.f32.mrb[0].mxu0
        %v1466 = vadd.f32 %v1312, %v1465
        %v1467 = vpop.f32.mrb[0].mxu0
        %1468 = vmatprep.mubr.f32.mxu0 %v1038
        %1469 = vmatmul.mubr.f32.gmra.mrb[0].mxu0 %v1037
        %v1470 = vpop.f32.mrb[0].mxu0
        %v1471 = vadd.f32 %v1312, %v1470
        %v1472 = vpop.f32.mrb[0].mxu0
        %1473 = vmatprep.mubr.f32.mxu0 %v1047
        %1474 = vmatmul.mubr.f32.gmra.mrb[0].mxu0 %v1046
        %v1475 = vpop.f32.mrb[0].mxu0
        %v1476 = vadd.f32 %v1312, %v1475
        %v1477 = vpop.f32.mrb[0].mxu0
        %1478 = vmatprep.mubr.f32.mxu0 %v1056
        %1479 = vmatmul.mubr.f32.gmra.mrb[0].mxu0 %v1055
        %v1480 = vpop.f32.mrb[0].mxu0
        %v1481 = vadd.f32 %v1312, %v1480
        %v1482 = vpop.f32.mrb[0].mxu0
        %1483 = vmatprep.mubr.f32.mxu0 %v1065
        %1484 = vmatmul.mubr.f32.gmra.mrb[0].mxu0 %v1064
        %v1485 = vpop.f32.mrb[0].mxu0
        %v1486 = vadd.f32 %v1312, %v1485
        %v1487 = vpop.f32.mrb[0].mxu0
        %1488 = vmatprep.mubr.f32.mxu0 %v1074
        %1489 = vmatmul.mubr.f32.gmra.mrb[0].mxu0 %v1073
        %v1490 = vpop.f32.mrb[0].mxu0
        %v1491 = vadd.f32 %v1312, %v1490
        %v1492 = vpop.f32.mrb[0].mxu0
        %1493 = vmatprep.mubr.f32.mxu0 %v1083
        %1494 = vmatmul.mubr.f32.gmra.mrb[0].mxu0 %v1082
        %v1495 = vpop.f32.mrb[0].mxu0
        %v1496 = vadd.f32 %v1312, %v1495
        %v1497 = vpop.f32.mrb[0].mxu0
        %1498 = vmatprep.mubr.f32.mxu0 %v1092
        %1499 = vmatmul.mubr.f32.gmra.mrb[0].mxu0 %v1091
        %v1500 = vpop.f32.mrb[0].mxu0
        %v1501 = vadd.f32 %v1312, %v1500
        %v1502 = vpop.f32.mrb[0].mxu0
        %1503 = vmatprep.mubr.f32.mxu0 %v1101
        %1504 = vmatmul.mubr.f32.gmra.mrb[0].mxu0 %v1100
        %v1505 = vpop.f32.mrb[0].mxu0
        %v1506 = vadd.f32 %v1312, %v1505
        %v1507 = vpop.f32.mrb[0].mxu0
        %1508 = vmatprep.mubr.f32.mxu0 %v1110
        %1509 = vmatmul.mubr.f32.gmra.mrb[0].mxu0 %v1109
        %v1510 = vpop.f32.mrb[0].mxu0
        %v1511 = vadd.f32 %v1312, %v1510
        %v1512 = vpop.f32.mrb[0].mxu0
        %1513 = vmatprep.mubr.f32.mxu0 %v1119
        %1514 = vmatmul.mubr.f32.gmra.mrb[0].mxu0 %v1118
        %v1515 = vpop.f32.mrb[0].mxu0
        %v1516 = vadd.f32 %v1312, %v1515
        %v1517 = vpop.f32.mrb[0].mxu0
        %1518 = vmatprep.mubr.f32.mxu0 %v1128
        %1519 = vmatmul.mubr.f32.gmra.mrb[0].mxu0 %v1127
        %v1520 = vpop.f32.mrb[0].mxu0
        %v1521 = vadd.f32 %v1312, %v1520
        %v1522 = vpop.f32.mrb[0].mxu0
        %1523 = vmatprep.mubr.f32.mxu0 %v1137
        %1524 = vmatmul.mubr.f32.gmra.mrb[0].mxu0 %v1136
        %v1525 = vpop.f32.mrb[0].mxu0
        %v1526 = vadd.f32 %v1312, %v1525
        %v1527 = vpop.f32.mrb[0].mxu0
        %1528 = vmatprep.mubr.f32.mxu0 %v1146
        %1529 = vmatmul.mubr.f32.gmra.mrb[0].mxu0 %v1145
        %v1530 = vpop.f32.mrb[0].mxu0
        %v1531 = vadd.f32 %v1312, %v1530
        %v1532 = vpop.f32.mrb[0].mxu0
        %1533 = vmatprep.mubr.f32.mxu0 %v1155
        %1534 = vmatmul.mubr.f32.gmra.mrb[0].mxu0 %v1154
        %v1535 = vpop.f32.mrb[0].mxu0
        %v1536 = vadd.f32 %v1312, %v1535
        %v1537 = vpop.f32.mrb[0].mxu0
        %1538 = vdwg.mxu0
        %1539 = vmatprep.subr.mxu0 0.0
        %1540 = vmatpush1.msra.mxu0 %v1195
        %1541 = vmatprep.subr.mxu0 0.0
        %1542 = vmatpush1.msra.mxu0 %v1196
        %1543 = vmatprep.subr.mxu0 0.0
        %1544 = vmatpush1.msra.mxu0 %v1197
        %1545 = vmatprep.subr.mxu0 0.0
        %1546 = vmatpush1.msra.mxu0 %v1198
        %1547 = vmatprep.subr.mxu0 0.0
        %1548 = vmatpush1.msra.mxu0 %v1199
        %1549 = vmatprep.subr.mxu0 0.0
        %1550 = vmatpush1.msra.mxu0 %v1200
        %1551 = vmatprep.subr.mxu0 0.0
        %1552 = vmatpush1.msra.mxu0 %v1201
        %1553 = vmatprep.subr.mxu0 0.0
        %1554 = vmatpush1.msra.mxu0 %v1202
        %1555 = vmatprep.subr.mxu0 0.0
        %1556 = vmatpush1.msra.mxu0 %v1203
        %1557 = vmatprep.subr.mxu0 0.0
        %1558 = vmatpush1.msra.mxu0 %v1204
        %1559 = vmatprep.subr.mxu0 0.0
        %1560 = vmatpush1.msra.mxu0 %v1205
        %1561 = vmatprep.subr.mxu0 0.0
        %1562 = vmatpush1.msra.mxu0 %v1206
        %1563 = vmatprep.subr.mxu0 0.0
        %1564 = vmatpush1.msra.mxu0 %v1207
        %1565 = vmatprep.subr.mxu0 0.0
        %1566 = vmatpush1.msra.mxu0 %v1208
        %1567 = vmatprep.subr.mxu0 0.0
        %1568 = vmatpush1.msra.mxu0 %v1209
        %1569 = vmatprep.subr.mxu0 0.0
        %1570 = vmatpush1.msra.mxu0 %v1210
        %1571 = vmatprep.subr.mxu0 0.0
        %1572 = vmatpush1.msra.mxu0 %v1211
        %1573 = vmatprep.subr.mxu0 0.0
        %1574 = vmatpush1.msra.mxu0 %v1212
        %1575 = vmatprep.subr.mxu0 0.0
        %1576 = vmatpush1.msra.mxu0 %v1213
        %1577 = vmatprep.subr.mxu0 0.0
        %1578 = vmatpush1.msra.mxu0 %v1214
        %1579 = vmatprep.subr.mxu0 0.0
        %1580 = vmatpush1.msra.mxu0 %v1215
        %1581 = vmatprep.subr.mxu0 0.0
        %1582 = vmatpush1.msra.mxu0 %v1216
        %1583 = vmatprep.subr.mxu0 0.0
        %1584 = vmatpush1.msra.mxu0 %v1217
        %1585 = vmatprep.subr.mxu0 0.0
        %1586 = vmatpush1.msra.mxu0 %v1218
        %1587 = vmatprep.subr.mxu0 0.0
        %1588 = vmatpush1.msra.mxu0 %v1219
        %1589 = vmatprep.subr.mxu0 0.0
        %1590 = vmatpush1.msra.mxu0 %v1220
        %1591 = vmatprep.subr.mxu0 0.0
        %1592 = vmatpush1.msra.mxu0 %v1221
        %1593 = vmatprep.subr.mxu0 0.0
        %1594 = vmatpush1.msra.mxu0 %v1222
        %1595 = vmatprep.subr.mxu0 0.0
        %1596 = vmatpush1.msra.mxu0 %v1223
        %1597 = vmatprep.subr.mxu0 0.0
        %1598 = vmatpush1.msra.mxu0 %v1224
        %1599 = vmatprep.subr.mxu0 0.0
        %1600 = vmatpush1.msra.mxu0 %v1225
        %1601 = vmatprep.subr.mxu0 0.0
        %1602 = vmatpush1.msra.mxu0 %v1226
        %1603 = vmatprep.mubr.f32.mxu0 %v878
        %1604 = vmatmul.mubr.f32.gmra.mrb[0].mxu0 %v877
        %v1605 = vpop.f32.mrb[0].mxu0
        %v1606 = vadd.f32 %v1381, %v1605
        %v1607 = vpop.f32.mrb[0].mxu0
        %1608 = vmatprep.mubr.f32.mxu0 %v887
        %1609 = vmatmul.mubr.f32.gmra.mrb[0].mxu0 %v886
        %v1610 = vpop.f32.mrb[0].mxu0
        %v1611 = vadd.f32 %v1386, %v1610
        %v1612 = vpop.f32.mrb[0].mxu0
        %1613 = vmatprep.mubr.f32.mxu0 %v896
        %1614 = vmatmul.mubr.f32.gmra.mrb[0].mxu0 %v895
        %v1615 = vpop.f32.mrb[0].mxu0
        %v1616 = vadd.f32 %v1391, %v1615
        %v1617 = vpop.f32.mrb[0].mxu0
        %1618 = vmatprep.mubr.f32.mxu0 %v905
        %1619 = vmatmul.mubr.f32.gmra.mrb[0].mxu0 %v904
        %v1620 = vpop.f32.mrb[0].mxu0
        %v1621 = vadd.f32 %v1396, %v1620
        %v1622 = vpop.f32.mrb[0].mxu0
        %1623 = vmatprep.mubr.f32.mxu0 %v914
        %1624 = vmatmul.mubr.f32.gmra.mrb[0].mxu0 %v913
        %v1625 = vpop.f32.mrb[0].mxu0
        %v1626 = vadd.f32 %v1401, %v1625
        %v1627 = vpop.f32.mrb[0].mxu0
        %1628 = vmatprep.mubr.f32.mxu0 %v923
        %1629 = vmatmul.mubr.f32.gmra.mrb[0].mxu0 %v922
        %v1630 = vpop.f32.mrb[0].mxu0
        %v1631 = vadd.f32 %v1406, %v1630
        %v1632 = vpop.f32.mrb[0].mxu0
        %1633 = vmatprep.mubr.f32.mxu0 %v932
        %1634 = vmatmul.mubr.f32.gmra.mrb[0].mxu0 %v931
        %v1635 = vpop.f32.mrb[0].mxu0
        %v1636 = vadd.f32 %v1411, %v1635
        %v1637 = vpop.f32.mrb[0].mxu0
        %1638 = vmatprep.mubr.f32.mxu0 %v941
        %1639 = vmatmul.mubr.f32.gmra.mrb[0].mxu0 %v940
        %v1640 = vpop.f32.mrb[0].mxu0
        %v1641 = vadd.f32 %v1416, %v1640
        %v1642 = vpop.f32.mrb[0].mxu0
        %1643 = vmatprep.mubr.f32.mxu0 %v950
        %1644 = vmatmul.mubr.f32.gmra.mrb[0].mxu0 %v949
        %v1645 = vpop.f32.mrb[0].mxu0
        %v1646 = vadd.f32 %v1421, %v1645
        %v1647 = vpop.f32.mrb[0].mxu0
        %1648 = vmatprep.mubr.f32.mxu0 %v959
        %1649 = vmatmul.mubr.f32.gmra.mrb[0].mxu0 %v958
        %v1650 = vpop.f32.mrb[0].mxu0
        %v1651 = vadd.f32 %v1426, %v1650
        %v1652 = vpop.f32.mrb[0].mxu0
        %1653 = vmatprep.mubr.f32.mxu0 %v968
        %1654 = vmatmul.mubr.f32.gmra.mrb[0].mxu0 %v967
        %v1655 = vpop.f32.mrb[0].mxu0
        %v1656 = vadd.f32 %v1431, %v1655
        %v1657 = vpop.f32.mrb[0].mxu0
        %1658 = vmatprep.mubr.f32.mxu0 %v977
        %1659 = vmatmul.mubr.f32.gmra.mrb[0].mxu0 %v976
        %v1660 = vpop.f32.mrb[0].mxu0
        %v1661 = vadd.f32 %v1436, %v1660
        %v1662 = vpop.f32.mrb[0].mxu0
        %1663 = vmatprep.mubr.f32.mxu0 %v986
        %1664 = vmatmul.mubr.f32.gmra.mrb[0].mxu0 %v985
        %v1665 = vpop.f32.mrb[0].mxu0
        %v1666 = vadd.f32 %v1441, %v1665
        %v1667 = vpop.f32.mrb[0].mxu0
        %1668 = vmatprep.mubr.f32.mxu0 %v995
        %1669 = vmatmul.mubr.f32.gmra.mrb[0].mxu0 %v994
        %v1670 = vpop.f32.mrb[0].mxu0
        %v1671 = vadd.f32 %v1446, %v1670
        %v1672 = vpop.f32.mrb[0].mxu0
        %1673 = vmatprep.mubr.f32.mxu0 %v1004
        %1674 = vmatmul.mubr.f32.gmra.mrb[0].mxu0 %v1003
        %v1675 = vpop.f32.mrb[0].mxu0
        %v1676 = vadd.f32 %v1451, %v1675
        %v1677 = vpop.f32.mrb[0].mxu0
        %1678 = vmatprep.mubr.f32.mxu0 %v1013
        %1679 = vmatmul.mubr.f32.gmra.mrb[0].mxu0 %v1012
        %v1680 = vpop.f32.mrb[0].mxu0
        %v1681 = vadd.f32 %v1456, %v1680
        %v1682 = vpop.f32.mrb[0].mxu0
        %1683 = vmatprep.mubr.f32.mxu0 %v1022
        %1684 = vmatmul.mubr.f32.gmra.mrb[0].mxu0 %v1021
        %v1685 = vpop.f32.mrb[0].mxu0
        %v1686 = vadd.f32 %v1461, %v1685
        %v1687 = vpop.f32.mrb[0].mxu0
        %1688 = vmatprep.mubr.f32.mxu0 %v1031
        %1689 = vmatmul.mubr.f32.gmra.mrb[0].mxu0 %v1030
        %v1690 = vpop.f32.mrb[0].mxu0
        %v1691 = vadd.f32 %v1466, %v1690
        %v1692 = vpop.f32.mrb[0].mxu0
        %1693 = vmatprep.mubr.f32.mxu0 %v1040
        %1694 = vmatmul.mubr.f32.gmra.mrb[0].mxu0 %v1039
        %v1695 = vpop.f32.mrb[0].mxu0
        %v1696 = vadd.f32 %v1471, %v1695
        %v1697 = vpop.f32.mrb[0].mxu0
        %1698 = vmatprep.mubr.f32.mxu0 %v1049
        %1699 = vmatmul.mubr.f32.gmra.mrb[0].mxu0 %v1048
        %v1700 = vpop.f32.mrb[0].mxu0
        %v1701 = vadd.f32 %v1476, %v1700
        %v1702 = vpop.f32.mrb[0].mxu0
        %1703 = vmatprep.mubr.f32.mxu0 %v1058
        %1704 = vmatmul.mubr.f32.gmra.mrb[0].mxu0 %v1057
        %v1705 = vpop.f32.mrb[0].mxu0
        %v1706 = vadd.f32 %v1481, %v1705
        %v1707 = vpop.f32.mrb[0].mxu0
        %1708 = vmatprep.mubr.f32.mxu0 %v1067
        %1709 = vmatmul.mubr.f32.gmra.mrb[0].mxu0 %v1066
        %v1710 = vpop.f32.mrb[0].mxu0
        %v1711 = vadd.f32 %v1486, %v1710
        %v1712 = vpop.f32.mrb[0].mxu0
        %1713 = vmatprep.mubr.f32.mxu0 %v1076
        %1714 = vmatmul.mubr.f32.gmra.mrb[0].mxu0 %v1075
        %v1715 = vpop.f32.mrb[0].mxu0
        %v1716 = vadd.f32 %v1491, %v1715
        %v1717 = vpop.f32.mrb[0].mxu0
        %1718 = vmatprep.mubr.f32.mxu0 %v1085
        %1719 = vmatmul.mubr.f32.gmra.mrb[0].mxu0 %v1084
        %v1720 = vpop.f32.mrb[0].mxu0
        %v1721 = vadd.f32 %v1496, %v1720
        %v1722 = vpop.f32.mrb[0].mxu0
        %1723 = vmatprep.mubr.f32.mxu0 %v1094
        %1724 = vmatmul.mubr.f32.gmra.mrb[0].mxu0 %v1093
        %v1725 = vpop.f32.mrb[0].mxu0
        %v1726 = vadd.f32 %v1501, %v1725
        %v1727 = vpop.f32.mrb[0].mxu0
        %1728 = vmatprep.mubr.f32.mxu0 %v1103
        %1729 = vmatmul.mubr.f32.gmra.mrb[0].mxu0 %v1102
        %v1730 = vpop.f32.mrb[0].mxu0
        %v1731 = vadd.f32 %v1506, %v1730
        %v1732 = vpop.f32.mrb[0].mxu0
        %1733 = vmatprep.mubr.f32.mxu0 %v1112
        %1734 = vmatmul.mubr.f32.gmra.mrb[0].mxu0 %v1111
        %v1735 = vpop.f32.mrb[0].mxu0
        %v1736 = vadd.f32 %v1511, %v1735
        %v1737 = vpop.f32.mrb[0].mxu0
        %1738 = vmatprep.mubr.f32.mxu0 %v1121
        %1739 = vmatmul.mubr.f32.gmra.mrb[0].mxu0 %v1120
        %v1740 = vpop.f32.mrb[0].mxu0
        %v1741 = vadd.f32 %v1516, %v1740
        %v1742 = vpop.f32.mrb[0].mxu0
        %1743 = vmatprep.mubr.f32.mxu0 %v1130
        %1744 = vmatmul.mubr.f32.gmra.mrb[0].mxu0 %v1129
        %v1745 = vpop.f32.mrb[0].mxu0
        %v1746 = vadd.f32 %v1521, %v1745
        %v1747 = vpop.f32.mrb[0].mxu0
        %1748 = vmatprep.mubr.f32.mxu0 %v1139
        %1749 = vmatmul.mubr.f32.gmra.mrb[0].mxu0 %v1138
        %v1750 = vpop.f32.mrb[0].mxu0
        %v1751 = vadd.f32 %v1526, %v1750
        %v1752 = vpop.f32.mrb[0].mxu0
        %1753 = vmatprep.mubr.f32.mxu0 %v1148
        %1754 = vmatmul.mubr.f32.gmra.mrb[0].mxu0 %v1147
        %v1755 = vpop.f32.mrb[0].mxu0
        %v1756 = vadd.f32 %v1531, %v1755
        %v1757 = vpop.f32.mrb[0].mxu0
        %1758 = vmatprep.mubr.f32.mxu0 %v1157
        %1759 = vmatmul.mubr.f32.gmra.mrb[0].mxu0 %v1156
        %v1760 = vpop.f32.mrb[0].mxu0
        %v1761 = vadd.f32 %v1536, %v1760
        %v1762 = vpop.f32.mrb[0].mxu0
        %1763 = vdwg.mxu0
        %1764 = vmatprep.subr.mxu0 0.0
        %1765 = vmatpush1.msra.mxu0 %v1227
        %1766 = vmatprep.subr.mxu0 0.0
        %1767 = vmatpush1.msra.mxu0 %v1228
        %1768 = vmatprep.subr.mxu0 0.0
        %1769 = vmatpush1.msra.mxu0 %v1229
        %1770 = vmatprep.subr.mxu0 0.0
        %1771 = vmatpush1.msra.mxu0 %v1230
        %1772 = vmatprep.subr.mxu0 0.0
        %1773 = vmatpush1.msra.mxu0 %v1231
        %1774 = vmatprep.subr.mxu0 0.0
        %1775 = vmatpush1.msra.mxu0 %v1232
        %1776 = vmatprep.subr.mxu0 0.0
        %1777 = vmatpush1.msra.mxu0 %v1233
        %1778 = vmatprep.subr.mxu0 0.0
        %1779 = vmatpush1.msra.mxu0 %v1234
        %1780 = vmatprep.subr.mxu0 0.0
        %1781 = vmatpush1.msra.mxu0 %v1235
        %1782 = vmatprep.subr.mxu0 0.0
        %1783 = vmatpush1.msra.mxu0 %v1236
        %1784 = vmatprep.subr.mxu0 0.0
        %1785 = vmatpush1.msra.mxu0 %v1237
        %1786 = vmatprep.subr.mxu0 0.0
        %1787 = vmatpush1.msra.mxu0 %v1238
        %1788 = vmatprep.subr.mxu0 0.0
        %1789 = vmatpush1.msra.mxu0 %v1239
        %1790 = vmatprep.subr.mxu0 0.0
        %1791 = vmatpush1.msra.mxu0 %v1240
        %1792 = vmatprep.subr.mxu0 0.0
        %1793 = vmatpush1.msra.mxu0 %v1241
        %1794 = vmatprep.subr.mxu0 0.0
        %1795 = vmatpush1.msra.mxu0 %v1242
        %1796 = vmatprep.subr.mxu0 0.0
        %1797 = vmatpush1.msra.mxu0 %v1243
        %1798 = vmatprep.subr.mxu0 0.0
        %1799 = vmatpush1.msra.mxu0 %v1244
        %1800 = vmatprep.subr.mxu0 0.0
        %1801 = vmatpush1.msra.mxu0 %v1245
        %1802 = vmatprep.subr.mxu0 0.0
        %1803 = vmatpush1.msra.mxu0 %v1246
        %1804 = vmatprep.subr.mxu0 0.0
        %1805 = vmatpush1.msra.mxu0 %v1247
        %1806 = vmatprep.subr.mxu0 0.0
        %1807 = vmatpush1.msra.mxu0 %v1248
        %1808 = vmatprep.subr.mxu0 0.0
        %1809 = vmatpush1.msra.mxu0 %v1249
        %1810 = vmatprep.subr.mxu0 0.0
        %1811 = vmatpush1.msra.mxu0 %v1250
        %1812 = vmatprep.subr.mxu0 0.0
        %1813 = vmatpush1.msra.mxu0 %v1251
        %1814 = vmatprep.subr.mxu0 0.0
        %1815 = vmatpush1.msra.mxu0 %v1252
        %1816 = vmatprep.subr.mxu0 0.0
        %1817 = vmatpush1.msra.mxu0 %v1253
        %1818 = vmatprep.subr.mxu0 0.0
        %1819 = vmatpush1.msra.mxu0 %v1254
        %1820 = vmatprep.subr.mxu0 0.0
        %1821 = vmatpush1.msra.mxu0 %v1255
        %1822 = vmatprep.subr.mxu0 0.0
        %1823 = vmatpush1.msra.mxu0 %v1256
        %1824 = vmatprep.subr.mxu0 0.0
        %1825 = vmatpush1.msra.mxu0 %v1257
        %1826 = vmatprep.subr.mxu0 0.0
        %1827 = vmatpush1.msra.mxu0 %v1258
        %1828 = vmatprep.mubr.f32.mxu0 %v880
        %1829 = vmatmul.mubr.f32.gmra.mrb[0].mxu0 %v879
        %v1830 = vpop.f32.mrb[0].mxu0
        %v1831 = vadd.f32 %v1606, %v1830
        %v1832 = vpop.f32.mrb[0].mxu0
        %1833 = vmatprep.mubr.f32.mxu0 %v889
        %1834 = vmatmul.mubr.f32.gmra.mrb[0].mxu0 %v888
        %v1835 = vpop.f32.mrb[0].mxu0
        %v1836 = vadd.f32 %v1611, %v1835
        %v1837 = vpop.f32.mrb[0].mxu0
        %1838 = vmatprep.mubr.f32.mxu0 %v898
        %1839 = vmatmul.mubr.f32.gmra.mrb[0].mxu0 %v897
        %v1840 = vpop.f32.mrb[0].mxu0
        %v1841 = vadd.f32 %v1616, %v1840
        %v1842 = vpop.f32.mrb[0].mxu0
        %1843 = vmatprep.mubr.f32.mxu0 %v907
        %1844 = vmatmul.mubr.f32.gmra.mrb[0].mxu0 %v906
        %v1845 = vpop.f32.mrb[0].mxu0
        %v1846 = vadd.f32 %v1621, %v1845
        %v1847 = vpop.f32.mrb[0].mxu0
        %1848 = vmatprep.mubr.f32.mxu0 %v916
        %1849 = vmatmul.mubr.f32.gmra.mrb[0].mxu0 %v915
        %v1850 = vpop.f32.mrb[0].mxu0
        %v1851 = vadd.f32 %v1626, %v1850
        %v1852 = vpop.f32.mrb[0].mxu0
        %1853 = vmatprep.mubr.f32.mxu0 %v925
        %1854 = vmatmul.mubr.f32.gmra.mrb[0].mxu0 %v924
        %v1855 = vpop.f32.mrb[0].mxu0
        %v1856 = vadd.f32 %v1631, %v1855
        %v1857 = vpop.f32.mrb[0].mxu0
        %1858 = vmatprep.mubr.f32.mxu0 %v934
        %1859 = vmatmul.mubr.f32.gmra.mrb[0].mxu0 %v933
        %v1860 = vpop.f32.mrb[0].mxu0
        %v1861 = vadd.f32 %v1636, %v1860
        %v1862 = vpop.f32.mrb[0].mxu0
        %1863 = vmatprep.mubr.f32.mxu0 %v943
        %1864 = vmatmul.mubr.f32.gmra.mrb[0].mxu0 %v942
        %v1865 = vpop.f32.mrb[0].mxu0
        %v1866 = vadd.f32 %v1641, %v1865
        %v1867 = vpop.f32.mrb[0].mxu0
        %1868 = vmatprep.mubr.f32.mxu0 %v952
        %1869 = vmatmul.mubr.f32.gmra.mrb[0].mxu0 %v951
        %v1870 = vpop.f32.mrb[0].mxu0
        %v1871 = vadd.f32 %v1646, %v1870
        %v1872 = vpop.f32.mrb[0].mxu0
        %1873 = vmatprep.mubr.f32.mxu0 %v961
        %1874 = vmatmul.mubr.f32.gmra.mrb[0].mxu0 %v960
        %v1875 = vpop.f32.mrb[0].mxu0
        %v1876 = vadd.f32 %v1651, %v1875
        %v1877 = vpop.f32.mrb[0].mxu0
        %1878 = vmatprep.mubr.f32.mxu0 %v970
        %1879 = vmatmul.mubr.f32.gmra.mrb[0].mxu0 %v969
        %v1880 = vpop.f32.mrb[0].mxu0
        %v1881 = vadd.f32 %v1656, %v1880
        %v1882 = vpop.f32.mrb[0].mxu0
        %1883 = vmatprep.mubr.f32.mxu0 %v979
        %1884 = vmatmul.mubr.f32.gmra.mrb[0].mxu0 %v978
        %v1885 = vpop.f32.mrb[0].mxu0
        %v1886 = vadd.f32 %v1661, %v1885
        %v1887 = vpop.f32.mrb[0].mxu0
        %1888 = vmatprep.mubr.f32.mxu0 %v988
        %1889 = vmatmul.mubr.f32.gmra.mrb[0].mxu0 %v987
        %v1890 = vpop.f32.mrb[0].mxu0
        %v1891 = vadd.f32 %v1666, %v1890
        %v1892 = vpop.f32.mrb[0].mxu0
        %1893 = vmatprep.mubr.f32.mxu0 %v997
        %1894 = vmatmul.mubr.f32.gmra.mrb[0].mxu0 %v996
        %v1895 = vpop.f32.mrb[0].mxu0
        %v1896 = vadd.f32 %v1671, %v1895
        %v1897 = vpop.f32.mrb[0].mxu0
        %1898 = vmatprep.mubr.f32.mxu0 %v1006
        %1899 = vmatmul.mubr.f32.gmra.mrb[0].mxu0 %v1005
        %v1900 = vpop.f32.mrb[0].mxu0
        %v1901 = vadd.f32 %v1676, %v1900
        %v1902 = vpop.f32.mrb[0].mxu0
        %1903 = vmatprep.mubr.f32.mxu0 %v1015
        %1904 = vmatmul.mubr.f32.gmra.mrb[0].mxu0 %v1014
        %v1905 = vpop.f32.mrb[0].mxu0
        %v1906 = vadd.f32 %v1681, %v1905
        %v1907 = vpop.f32.mrb[0].mxu0
        %1908 = vmatprep.mubr.f32.mxu0 %v1024
        %1909 = vmatmul.mubr.f32.gmra.mrb[0].mxu0 %v1023
        %v1910 = vpop.f32.mrb[0].mxu0
        %v1911 = vadd.f32 %v1686, %v1910
        %v1912 = vpop.f32.mrb[0].mxu0
        %1913 = vmatprep.mubr.f32.mxu0 %v1033
        %1914 = vmatmul.mubr.f32.gmra.mrb[0].mxu0 %v1032
        %v1915 = vpop.f32.mrb[0].mxu0
        %v1916 = vadd.f32 %v1691, %v1915
        %v1917 = vpop.f32.mrb[0].mxu0
        %1918 = vmatprep.mubr.f32.mxu0 %v1042
        %1919 = vmatmul.mubr.f32.gmra.mrb[0].mxu0 %v1041
        %v1920 = vpop.f32.mrb[0].mxu0
        %v1921 = vadd.f32 %v1696, %v1920
        %v1922 = vpop.f32.mrb[0].mxu0
        %1923 = vmatprep.mubr.f32.mxu0 %v1051
        %1924 = vmatmul.mubr.f32.gmra.mrb[0].mxu0 %v1050
        %v1925 = vpop.f32.mrb[0].mxu0
        %v1926 = vadd.f32 %v1701, %v1925
        %v1927 = vpop.f32.mrb[0].mxu0
        %1928 = vmatprep.mubr.f32.mxu0 %v1060
        %1929 = vmatmul.mubr.f32.gmra.mrb[0].mxu0 %v1059
        %v1930 = vpop.f32.mrb[0].mxu0
        %v1931 = vadd.f32 %v1706, %v1930
        %v1932 = vpop.f32.mrb[0].mxu0
        %1933 = vmatprep.mubr.f32.mxu0 %v1069
        %1934 = vmatmul.mubr.f32.gmra.mrb[0].mxu0 %v1068
        %v1935 = vpop.f32.mrb[0].mxu0
        %v1936 = vadd.f32 %v1711, %v1935
        %v1937 = vpop.f32.mrb[0].mxu0
        %1938 = vmatprep.mubr.f32.mxu0 %v1078
        %1939 = vmatmul.mubr.f32.gmra.mrb[0].mxu0 %v1077
        %v1940 = vpop.f32.mrb[0].mxu0
        %v1941 = vadd.f32 %v1716, %v1940
        %v1942 = vpop.f32.mrb[0].mxu0
        %1943 = vmatprep.mubr.f32.mxu0 %v1087
        %1944 = vmatmul.mubr.f32.gmra.mrb[0].mxu0 %v1086
        %v1945 = vpop.f32.mrb[0].mxu0
        %v1946 = vadd.f32 %v1721, %v1945
        %v1947 = vpop.f32.mrb[0].mxu0
        %1948 = vmatprep.mubr.f32.mxu0 %v1096
        %1949 = vmatmul.mubr.f32.gmra.mrb[0].mxu0 %v1095
        %v1950 = vpop.f32.mrb[0].mxu0
        %v1951 = vadd.f32 %v1726, %v1950
        %v1952 = vpop.f32.mrb[0].mxu0
        %1953 = vmatprep.mubr.f32.mxu0 %v1105
        %1954 = vmatmul.mubr.f32.gmra.mrb[0].mxu0 %v1104
        %v1955 = vpop.f32.mrb[0].mxu0
        %v1956 = vadd.f32 %v1731, %v1955
        %v1957 = vpop.f32.mrb[0].mxu0
        %1958 = vmatprep.mubr.f32.mxu0 %v1114
        %1959 = vmatmul.mubr.f32.gmra.mrb[0].mxu0 %v1113
        %v1960 = vpop.f32.mrb[0].mxu0
        %v1961 = vadd.f32 %v1736, %v1960
        %v1962 = vpop.f32.mrb[0].mxu0
        %1963 = vmatprep.mubr.f32.mxu0 %v1123
        %1964 = vmatmul.mubr.f32.gmra.mrb[0].mxu0 %v1122
        %v1965 = vpop.f32.mrb[0].mxu0
        %v1966 = vadd.f32 %v1741, %v1965
        %v1967 = vpop.f32.mrb[0].mxu0
        %1968 = vmatprep.mubr.f32.mxu0 %v1132
        %1969 = vmatmul.mubr.f32.gmra.mrb[0].mxu0 %v1131
        %v1970 = vpop.f32.mrb[0].mxu0
        %v1971 = vadd.f32 %v1746, %v1970
        %v1972 = vpop.f32.mrb[0].mxu0
        %1973 = vmatprep.mubr.f32.mxu0 %v1141
        %1974 = vmatmul.mubr.f32.gmra.mrb[0].mxu0 %v1140
        %v1975 = vpop.f32.mrb[0].mxu0
        %v1976 = vadd.f32 %v1751, %v1975
        %v1977 = vpop.f32.mrb[0].mxu0
        %1978 = vmatprep.mubr.f32.mxu0 %v1150
        %1979 = vmatmul.mubr.f32.gmra.mrb[0].mxu0 %v1149
        %v1980 = vpop.f32.mrb[0].mxu0
        %v1981 = vadd.f32 %v1756, %v1980
        %v1982 = vpop.f32.mrb[0].mxu0
        %1983 = vmatprep.mubr.f32.mxu0 %v1159
        %1984 = vmatmul.mubr.f32.gmra.mrb[0].mxu0 %v1158
        %v1985 = vpop.f32.mrb[0].mxu0
        %v1986 = vadd.f32 %v1761, %v1985
        %v1987 = vpop.f32.mrb[0].mxu0
        %1988 = vdwg.mxu0
        %1989 = vmatprep.subr.mxu0 0.0
        %1990 = vmatpush1.msra.mxu0 %v1259
        %1991 = vmatprep.subr.mxu0 0.0
        %1992 = vmatpush1.msra.mxu0 %v1260
        %1993 = vmatprep.subr.mxu0 0.0
        %1994 = vmatpush1.msra.mxu0 %v1261
        %1995 = vmatprep.subr.mxu0 0.0
        %1996 = vmatpush1.msra.mxu0 %v1262
        %1997 = vmatprep.subr.mxu0 0.0
        %1998 = vmatpush1.msra.mxu0 %v1263
        %1999 = vmatprep.subr.mxu0 0.0
        %2000 = vmatpush1.msra.mxu0 %v1264
        %2001 = vmatprep.subr.mxu0 0.0
        %2002 = vmatpush1.msra.mxu0 %v1265
        %2003 = vmatprep.subr.mxu0 0.0
        %2004 = vmatpush1.msra.mxu0 %v1266
        %2005 = vmatprep.subr.mxu0 0.0
        %2006 = vmatpush1.msra.mxu0 %v1267
        %2007 = vmatprep.subr.mxu0 0.0
        %2008 = vmatpush1.msra.mxu0 %v1268
        %2009 = vmatprep.subr.mxu0 0.0
        %2010 = vmatpush1.msra.mxu0 %v1269
        %2011 = vmatprep.subr.mxu0 0.0
        %2012 = vmatpush1.msra.mxu0 %v1270
        %2013 = vmatprep.subr.mxu0 0.0
        %2014 = vmatpush1.msra.mxu0 %v1271
        %2015 = vmatprep.subr.mxu0 0.0
        %2016 = vmatpush1.msra.mxu0 %v1272
        %2017 = vmatprep.subr.mxu0 0.0
        %2018 = vmatpush1.msra.mxu0 %v1273
        %2019 = vmatprep.subr.mxu0 0.0
        %2020 = vmatpush1.msra.mxu0 %v1274
        %2021 = vmatprep.subr.mxu0 0.0
        %2022 = vmatpush1.msra.mxu0 %v1275
        %2023 = vmatprep.subr.mxu0 0.0
        %2024 = vmatpush1.msra.mxu0 %v1276
        %2025 = vmatprep.subr.mxu0 0.0
        %2026 = vmatpush1.msra.mxu0 %v1277
        %2027 = vmatprep.subr.mxu0 0.0
        %2028 = vmatpush1.msra.mxu0 %v1278
        %2029 = vmatprep.subr.mxu0 0.0
        %2030 = vmatpush1.msra.mxu0 %v1279
        %2031 = vmatprep.subr.mxu0 0.0
        %2032 = vmatpush1.msra.mxu0 %v1280
        %2033 = vmatprep.subr.mxu0 0.0
        %2034 = vmatpush1.msra.mxu0 %v1281
        %2035 = vmatprep.subr.mxu0 0.0
        %2036 = vmatpush1.msra.mxu0 %v1282
        %2037 = vmatprep.subr.mxu0 0.0
        %2038 = vmatpush1.msra.mxu0 %v1283
        %2039 = vmatprep.subr.mxu0 0.0
        %2040 = vmatpush1.msra.mxu0 %v1284
        %2041 = vmatprep.subr.mxu0 0.0
        %2042 = vmatpush1.msra.mxu0 %v1285
        %2043 = vmatprep.subr.mxu0 0.0
        %2044 = vmatpush1.msra.mxu0 %v1286
        %2045 = vmatprep.subr.mxu0 0.0
        %2046 = vmatpush1.msra.mxu0 %v1287
        %2047 = vmatprep.subr.mxu0 0.0
        %2048 = vmatpush1.msra.mxu0 %v1288
        %2049 = vmatprep.subr.mxu0 0.0
        %2050 = vmatpush1.msra.mxu0 %v1289
        %2051 = vmatprep.subr.mxu0 0.0
        %2052 = vmatpush1.msra.mxu0 %v1290
        %2053 = vmatprep.mubr.f32.mxu0 %v882
        %2054 = vmatmul.mubr.f32.gmra.mrb[0].mxu0 %v881
        %v2055 = vpop.f32.mrb[0].mxu0
        %v2056 = vadd.f32 %v1831, %v2055
        %v2057 = vpop.f32.mrb[0].mxu0
        %2058 = vmatprep.mubr.f32.mxu0 %v891
        %2059 = vmatmul.mubr.f32.gmra.mrb[0].mxu0 %v890
        %v2060 = vpop.f32.mrb[0].mxu0
        %v2061 = vadd.f32 %v1836, %v2060
        %v2062 = vpop.f32.mrb[0].mxu0
        %2063 = vmatprep.mubr.f32.mxu0 %v900
        %2064 = vmatmul.mubr.f32.gmra.mrb[0].mxu0 %v899
        %v2065 = vpop.f32.mrb[0].mxu0
        %v2066 = vadd.f32 %v1841, %v2065
        %v2067 = vpop.f32.mrb[0].mxu0
        %2068 = vmatprep.mubr.f32.mxu0 %v909
        %2069 = vmatmul.mubr.f32.gmra.mrb[0].mxu0 %v908
        %v2070 = vpop.f32.mrb[0].mxu0
        %v2071 = vadd.f32 %v1846, %v2070
        %v2072 = vpop.f32.mrb[0].mxu0
        %2073 = vmatprep.mubr.f32.mxu0 %v918
        %2074 = vmatmul.mubr.f32.gmra.mrb[0].mxu0 %v917
        %v2075 = vpop.f32.mrb[0].mxu0
        %v2076 = vadd.f32 %v1851, %v2075
        %v2077 = vpop.f32.mrb[0].mxu0
        %2078 = vmatprep.mubr.f32.mxu0 %v927
        %2079 = vmatmul.mubr.f32.gmra.mrb[0].mxu0 %v926
        %v2080 = vpop.f32.mrb[0].mxu0
        %v2081 = vadd.f32 %v1856, %v2080
        %v2082 = vpop.f32.mrb[0].mxu0
        %2083 = vmatprep.mubr.f32.mxu0 %v936
        %2084 = vmatmul.mubr.f32.gmra.mrb[0].mxu0 %v935
        %v2085 = vpop.f32.mrb[0].mxu0
        %v2086 = vadd.f32 %v1861, %v2085
        %v2087 = vpop.f32.mrb[0].mxu0
        %2088 = vmatprep.mubr.f32.mxu0 %v945
        %2089 = vmatmul.mubr.f32.gmra.mrb[0].mxu0 %v944
        %v2090 = vpop.f32.mrb[0].mxu0
        %v2091 = vadd.f32 %v1866, %v2090
        %v2092 = vpop.f32.mrb[0].mxu0
        %2093 = vmatprep.mubr.f32.mxu0 %v954
        %2094 = vmatmul.mubr.f32.gmra.mrb[0].mxu0 %v953
        %v2095 = vpop.f32.mrb[0].mxu0
        %v2096 = vadd.f32 %v1871, %v2095
        %v2097 = vpop.f32.mrb[0].mxu0
        %2098 = vmatprep.mubr.f32.mxu0 %v963
        %2099 = vmatmul.mubr.f32.gmra.mrb[0].mxu0 %v962
        %v2100 = vpop.f32.mrb[0].mxu0
        %v2101 = vadd.f32 %v1876, %v2100
        %v2102 = vpop.f32.mrb[0].mxu0
        %2103 = vmatprep.mubr.f32.mxu0 %v972
        %2104 = vmatmul.mubr.f32.gmra.mrb[0].mxu0 %v971
        %v2105 = vpop.f32.mrb[0].mxu0
        %v2106 = vadd.f32 %v1881, %v2105
        %v2107 = vpop.f32.mrb[0].mxu0
        %2108 = vmatprep.mubr.f32.mxu0 %v981
        %2109 = vmatmul.mubr.f32.gmra.mrb[0].mxu0 %v980
        %v2110 = vpop.f32.mrb[0].mxu0
        %v2111 = vadd.f32 %v1886, %v2110
        %v2112 = vpop.f32.mrb[0].mxu0
        %2113 = vmatprep.mubr.f32.mxu0 %v990
        %2114 = vmatmul.mubr.f32.gmra.mrb[0].mxu0 %v989
        %v2115 = vpop.f32.mrb[0].mxu0
        %v2116 = vadd.f32 %v1891, %v2115
        %v2117 = vpop.f32.mrb[0].mxu0
        %2118 = vmatprep.mubr.f32.mxu0 %v999
        %2119 = vmatmul.mubr.f32.gmra.mrb[0].mxu0 %v998
        %v2120 = vpop.f32.mrb[0].mxu0
        %v2121 = vadd.f32 %v1896, %v2120
        %v2122 = vpop.f32.mrb[0].mxu0
        %2123 = vmatprep.mubr.f32.mxu0 %v1008
        %2124 = vmatmul.mubr.f32.gmra.mrb[0].mxu0 %v1007
        %v2125 = vpop.f32.mrb[0].mxu0
        %v2126 = vadd.f32 %v1901, %v2125
        %v2127 = vpop.f32.mrb[0].mxu0
        %2128 = vmatprep.mubr.f32.mxu0 %v1017
        %2129 = vmatmul.mubr.f32.gmra.mrb[0].mxu0 %v1016
        %v2130 = vpop.f32.mrb[0].mxu0
        %v2131 = vadd.f32 %v1906, %v2130
        %v2132 = vpop.f32.mrb[0].mxu0
        %2133 = vmatprep.mubr.f32.mxu0 %v1026
        %2134 = vmatmul.mubr.f32.gmra.mrb[0].mxu0 %v1025
        %v2135 = vpop.f32.mrb[0].mxu0
        %v2136 = vadd.f32 %v1911, %v2135
        %v2137 = vpop.f32.mrb[0].mxu0
        %2138 = vmatprep.mubr.f32.mxu0 %v1035
        %2139 = vmatmul.mubr.f32.gmra.mrb[0].mxu0 %v1034
        %v2140 = vpop.f32.mrb[0].mxu0
        %v2141 = vadd.f32 %v1916, %v2140
        %v2142 = vpop.f32.mrb[0].mxu0
        %2143 = vmatprep.mubr.f32.mxu0 %v1044
        %2144 = vmatmul.mubr.f32.gmra.mrb[0].mxu0 %v1043
        %v2145 = vpop.f32.mrb[0].mxu0
        %v2146 = vadd.f32 %v1921, %v2145
        %v2147 = vpop.f32.mrb[0].mxu0
        %2148 = vmatprep.mubr.f32.mxu0 %v1053
        %2149 = vmatmul.mubr.f32.gmra.mrb[0].mxu0 %v1052
        %v2150 = vpop.f32.mrb[0].mxu0
        %v2151 = vadd.f32 %v1926, %v2150
        %v2152 = vpop.f32.mrb[0].mxu0
        %2153 = vmatprep.mubr.f32.mxu0 %v1062
        %2154 = vmatmul.mubr.f32.gmra.mrb[0].mxu0 %v1061
        %v2155 = vpop.f32.mrb[0].mxu0
        %v2156 = vadd.f32 %v1931, %v2155
        %v2157 = vpop.f32.mrb[0].mxu0
        %2158 = vmatprep.mubr.f32.mxu0 %v1071
        %2159 = vmatmul.mubr.f32.gmra.mrb[0].mxu0 %v1070
        %v2160 = vpop.f32.mrb[0].mxu0
        %v2161 = vadd.f32 %v1936, %v2160
        %v2162 = vpop.f32.mrb[0].mxu0
        %2163 = vmatprep.mubr.f32.mxu0 %v1080
        %2164 = vmatmul.mubr.f32.gmra.mrb[0].mxu0 %v1079
        %v2165 = vpop.f32.mrb[0].mxu0
        %v2166 = vadd.f32 %v1941, %v2165
        %v2167 = vpop.f32.mrb[0].mxu0
        %2168 = vmatprep.mubr.f32.mxu0 %v1089
        %2169 = vmatmul.mubr.f32.gmra.mrb[0].mxu0 %v1088
        %v2170 = vpop.f32.mrb[0].mxu0
        %v2171 = vadd.f32 %v1946, %v2170
        %v2172 = vpop.f32.mrb[0].mxu0
        %2173 = vmatprep.mubr.f32.mxu0 %v1098
        %2174 = vmatmul.mubr.f32.gmra.mrb[0].mxu0 %v1097
        %v2175 = vpop.f32.mrb[0].mxu0
        %v2176 = vadd.f32 %v1951, %v2175
        %v2177 = vpop.f32.mrb[0].mxu0
        %2178 = vmatprep.mubr.f32.mxu0 %v1107
        %2179 = vmatmul.mubr.f32.gmra.mrb[0].mxu0 %v1106
        %v2180 = vpop.f32.mrb[0].mxu0
        %v2181 = vadd.f32 %v1956, %v2180
        %v2182 = vpop.f32.mrb[0].mxu0
        %2183 = vmatprep.mubr.f32.mxu0 %v1116
        %2184 = vmatmul.mubr.f32.gmra.mrb[0].mxu0 %v1115
        %v2185 = vpop.f32.mrb[0].mxu0
        %v2186 = vadd.f32 %v1961, %v2185
        %v2187 = vpop.f32.mrb[0].mxu0
        %2188 = vmatprep.mubr.f32.mxu0 %v1125
        %2189 = vmatmul.mubr.f32.gmra.mrb[0].mxu0 %v1124
        %v2190 = vpop.f32.mrb[0].mxu0
        %v2191 = vadd.f32 %v1966, %v2190
        %v2192 = vpop.f32.mrb[0].mxu0
        %2193 = vmatprep.mubr.f32.mxu0 %v1134
        %2194 = vmatmul.mubr.f32.gmra.mrb[0].mxu0 %v1133
        %v2195 = vpop.f32.mrb[0].mxu0
        %v2196 = vadd.f32 %v1971, %v2195
        %v2197 = vpop.f32.mrb[0].mxu0
        %2198 = vmatprep.mubr.f32.mxu0 %v1143
        %2199 = vmatmul.mubr.f32.gmra.mrb[0].mxu0 %v1142
        %v2200 = vpop.f32.mrb[0].mxu0
        %v2201 = vadd.f32 %v1976, %v2200
        %v2202 = vpop.f32.mrb[0].mxu0
        %2203 = vmatprep.mubr.f32.mxu0 %v1152
        %2204 = vmatmul.mubr.f32.gmra.mrb[0].mxu0 %v1151
        %v2205 = vpop.f32.mrb[0].mxu0
        %v2206 = vadd.f32 %v1981, %v2205
        %v2207 = vpop.f32.mrb[0].mxu0
        %2208 = vmatprep.mubr.f32.mxu0 %v1161
        %2209 = vmatmul.mubr.f32.gmra.mrb[0].mxu0 %v1160
        %v2210 = vpop.f32.mrb[0].mxu0
        %v2211 = vadd.f32 %v1986, %v2210
        %v2212 = vpop.f32.mrb[0].mxu0
        %2213 = vdwg.mxu0
        %2214 = vmatprep.subr.mxu0 0.0
        %2215 = vmatpush1.msra.mxu0 %v1291
        %2216 = vmatprep.subr.mxu0 0.0
        %2217 = vmatpush1.msra.mxu0 %v1292
        %2218 = vmatprep.subr.mxu0 0.0
        %2219 = vmatpush1.msra.mxu0 %v1293
        %2220 = vmatprep.subr.mxu0 0.0
        %2221 = vmatpush1.msra.mxu0 %v1294
        %2222 = vmatprep.subr.mxu0 0.0
        %2223 = vmatpush1.msra.mxu0 %v1295
        %2224 = vmatprep.subr.mxu0 0.0
        %2225 = vmatpush1.msra.mxu0 %v1296
        %2226 = vmatprep.subr.mxu0 0.0
        %2227 = vmatpush1.msra.mxu0 %v1297
        %2228 = vmatprep.subr.mxu0 0.0
        %2229 = vmatpush1.msra.mxu0 %v1298
        %2230 = vmatprep.subr.mxu0 0.0
        %2231 = vmatpush1.msra.mxu0 %v1299
        %2232 = vmatprep.subr.mxu0 0.0
        %2233 = vmatpush1.msra.mxu0 %v1300
        %2234 = vmatprep.subr.mxu0 0.0
        %2235 = vmatpush1.msra.mxu0 %v1301
        %2236 = vmatprep.subr.mxu0 0.0
        %2237 = vmatpush1.msra.mxu0 %v1302
        %2238 = vmatprep.subr.mxu0 0.0
        %2239 = vmatpush1.msra.mxu0 %v1303
        %2240 = vmatprep.subr.mxu0 0.0
        %2241 = vmatpush1.msra.mxu0 %v1304
        %2242 = vmatprep.subr.mxu0 0.0
        %2243 = vmatpush1.msra.mxu0 %v1305
        %2244 = vmatprep.subr.mxu0 0.0
        %2245 = vmatpush1.msra.mxu0 %v1306
        %2246 = vmatprep.subr.mxu0 0.0
        %2247 = vmatpush1.msra.mxu0 0.0
        %2248 = vmatprep.subr.mxu0 0.0
        %2249 = vmatpush1.msra.mxu0 0.0
        %2250 = vmatprep.subr.mxu0 0.0
        %2251 = vmatpush1.msra.mxu0 0.0
        %2252 = vmatprep.subr.mxu0 0.0
        %2253 = vmatpush1.msra.mxu0 0.0
        %2254 = vmatprep.subr.mxu0 0.0
        %2255 = vmatpush1.msra.mxu0 0.0
        %2256 = vmatprep.subr.mxu0 0.0
        %2257 = vmatpush1.msra.mxu0 0.0
        %2258 = vmatprep.subr.mxu0 0.0
        %2259 = vmatpush1.msra.mxu0 0.0
        %2260 = vmatprep.subr.mxu0 0.0
        %2261 = vmatpush1.msra.mxu0 0.0
        %2262 = vmatprep.subr.mxu0 0.0
        %2263 = vmatpush1.msra.mxu0 0.0
        %2264 = vmatprep.subr.mxu0 0.0
        %2265 = vmatpush1.msra.mxu0 0.0
        %2266 = vmatprep.subr.mxu0 0.0
        %2267 = vmatpush1.msra.mxu0 0.0
        %2268 = vmatprep.subr.mxu0 0.0
        %2269 = vmatpush1.msra.mxu0 0.0
        %2270 = vmatprep.subr.mxu0 0.0
        %2271 = vmatpush1.msra.mxu0 0.0
        %2272 = vmatprep.subr.mxu0 0.0
        %2273 = vmatpush1.msra.mxu0 0.0
        %2274 = vmatprep.subr.mxu0 0.0
        %2275 = vmatpush1.msra.mxu0 0.0
        %2276 = vmatprep.subr.mxu0 0.0
        %2277 = vmatpush1.msra.mxu0 0.0
        %2278 = vmatprep.mubr.f32.mxu0 0.0
        %2279 = vmatmul.mubr.f32.gmra.mrb[0].mxu0 %v883
        %v2280 = vpop.f32.mrb[0].mxu0
        %v2281 = vadd.f32 %v2056, %v2280
        %v2282 = vpop.f32.mrb[0].mxu0
        %2283 = vmatprep.mubr.f32.mxu0 0.0
        %2284 = vmatmul.mubr.f32.gmra.mrb[0].mxu0 %v892
        %v2285 = vpop.f32.mrb[0].mxu0
        %v2286 = vadd.f32 %v2061, %v2285
        %v2287 = vpop.f32.mrb[0].mxu0
        %2288 = vmatprep.mubr.f32.mxu0 0.0
        %2289 = vmatmul.mubr.f32.gmra.mrb[0].mxu0 %v901
        %v2290 = vpop.f32.mrb[0].mxu0
        %v2291 = vadd.f32 %v2066, %v2290
        %v2292 = vpop.f32.mrb[0].mxu0
        %2293 = vmatprep.mubr.f32.mxu0 0.0
        %2294 = vmatmul.mubr.f32.gmra.mrb[0].mxu0 %v910
        %v2295 = vpop.f32.mrb[0].mxu0
        %v2296 = vadd.f32 %v2071, %v2295
        %v2297 = vpop.f32.mrb[0].mxu0
        %2298 = vmatprep.mubr.f32.mxu0 0.0
        %2299 = vmatmul.mubr.f32.gmra.mrb[0].mxu0 %v919
        %v2300 = vpop.f32.mrb[0].mxu0
        %v2301 = vadd.f32 %v2076, %v2300
        %v2302 = vpop.f32.mrb[0].mxu0
        %2303 = vmatprep.mubr.f32.mxu0 0.0
        %2304 = vmatmul.mubr.f32.gmra.mrb[0].mxu0 %v928
        %v2305 = vpop.f32.mrb[0].mxu0
        %v2306 = vadd.f32 %v2081, %v2305
        %v2307 = vpop.f32.mrb[0].mxu0
        %2308 = vmatprep.mubr.f32.mxu0 0.0
        %2309 = vmatmul.mubr.f32.gmra.mrb[0].mxu0 %v937
        %v2310 = vpop.f32.mrb[0].mxu0
        %v2311 = vadd.f32 %v2086, %v2310
        %v2312 = vpop.f32.mrb[0].mxu0
        %2313 = vmatprep.mubr.f32.mxu0 0.0
        %2314 = vmatmul.mubr.f32.gmra.mrb[0].mxu0 %v946
        %v2315 = vpop.f32.mrb[0].mxu0
        %v2316 = vadd.f32 %v2091, %v2315
        %v2317 = vpop.f32.mrb[0].mxu0
        %2318 = vmatprep.mubr.f32.mxu0 0.0
        %2319 = vmatmul.mubr.f32.gmra.mrb[0].mxu0 %v955
        %v2320 = vpop.f32.mrb[0].mxu0
        %v2321 = vadd.f32 %v2096, %v2320
        %v2322 = vpop.f32.mrb[0].mxu0
        %2323 = vmatprep.mubr.f32.mxu0 0.0
        %2324 = vmatmul.mubr.f32.gmra.mrb[0].mxu0 %v964
        %v2325 = vpop.f32.mrb[0].mxu0
        %v2326 = vadd.f32 %v2101, %v2325
        %v2327 = vpop.f32.mrb[0].mxu0
        %2328 = vmatprep.mubr.f32.mxu0 0.0
        %2329 = vmatmul.mubr.f32.gmra.mrb[0].mxu0 %v973
        %v2330 = vpop.f32.mrb[0].mxu0
        %v2331 = vadd.f32 %v2106, %v2330
        %v2332 = vpop.f32.mrb[0].mxu0
        %2333 = vmatprep.mubr.f32.mxu0 0.0
        %2334 = vmatmul.mubr.f32.gmra.mrb[0].mxu0 %v982
        %v2335 = vpop.f32.mrb[0].mxu0
        %v2336 = vadd.f32 %v2111, %v2335
        %v2337 = vpop.f32.mrb[0].mxu0
        %2338 = vmatprep.mubr.f32.mxu0 0.0
        %2339 = vmatmul.mubr.f32.gmra.mrb[0].mxu0 %v991
        %v2340 = vpop.f32.mrb[0].mxu0
        %v2341 = vadd.f32 %v2116, %v2340
        %v2342 = vpop.f32.mrb[0].mxu0
        %2343 = vmatprep.mubr.f32.mxu0 0.0
        %2344 = vmatmul.mubr.f32.gmra.mrb[0].mxu0 %v1000
        %v2345 = vpop.f32.mrb[0].mxu0
        %v2346 = vadd.f32 %v2121, %v2345
        %v2347 = vpop.f32.mrb[0].mxu0
        %2348 = vmatprep.mubr.f32.mxu0 0.0
        %2349 = vmatmul.mubr.f32.gmra.mrb[0].mxu0 %v1009
        %v2350 = vpop.f32.mrb[0].mxu0
        %v2351 = vadd.f32 %v2126, %v2350
        %v2352 = vpop.f32.mrb[0].mxu0
        %2353 = vmatprep.mubr.f32.mxu0 0.0
        %2354 = vmatmul.mubr.f32.gmra.mrb[0].mxu0 %v1018
        %v2355 = vpop.f32.mrb[0].mxu0
        %v2356 = vadd.f32 %v2131, %v2355
        %v2357 = vpop.f32.mrb[0].mxu0
        %2358 = vmatprep.mubr.f32.mxu0 0.0
        %2359 = vmatmul.mubr.f32.gmra.mrb[0].mxu0 %v1027
        %v2360 = vpop.f32.mrb[0].mxu0
        %v2361 = vadd.f32 %v2136, %v2360
        %v2362 = vpop.f32.mrb[0].mxu0
        %2363 = vmatprep.mubr.f32.mxu0 0.0
        %2364 = vmatmul.mubr.f32.gmra.mrb[0].mxu0 %v1036
        %v2365 = vpop.f32.mrb[0].mxu0
        %v2366 = vadd.f32 %v2141, %v2365
        %v2367 = vpop.f32.mrb[0].mxu0
        %2368 = vmatprep.mubr.f32.mxu0 0.0
        %2369 = vmatmul.mubr.f32.gmra.mrb[0].mxu0 %v1045
        %v2370 = vpop.f32.mrb[0].mxu0
        %v2371 = vadd.f32 %v2146, %v2370
        %v2372 = vpop.f32.mrb[0].mxu0
        %2373 = vmatprep.mubr.f32.mxu0 0.0
        %2374 = vmatmul.mubr.f32.gmra.mrb[0].mxu0 %v1054
        %v2375 = vpop.f32.mrb[0].mxu0
        %v2376 = vadd.f32 %v2151, %v2375
        %v2377 = vpop.f32.mrb[0].mxu0
        %2378 = vmatprep.mubr.f32.mxu0 0.0
        %2379 = vmatmul.mubr.f32.gmra.mrb[0].mxu0 %v1063
        %v2380 = vpop.f32.mrb[0].mxu0
        %v2381 = vadd.f32 %v2156, %v2380
        %v2382 = vpop.f32.mrb[0].mxu0
        %2383 = vmatprep.mubr.f32.mxu0 0.0
        %2384 = vmatmul.mubr.f32.gmra.mrb[0].mxu0 %v1072
        %v2385 = vpop.f32.mrb[0].mxu0
        %v2386 = vadd.f32 %v2161, %v2385
        %v2387 = vpop.f32.mrb[0].mxu0
        %2388 = vmatprep.mubr.f32.mxu0 0.0
        %2389 = vmatmul.mubr.f32.gmra.mrb[0].mxu0 %v1081
        %v2390 = vpop.f32.mrb[0].mxu0
        %v2391 = vadd.f32 %v2166, %v2390
        %v2392 = vpop.f32.mrb[0].mxu0
        %2393 = vmatprep.mubr.f32.mxu0 0.0
        %2394 = vmatmul.mubr.f32.gmra.mrb[0].mxu0 %v1090
        %v2395 = vpop.f32.mrb[0].mxu0
        %v2396 = vadd.f32 %v2171, %v2395
        %v2397 = vpop.f32.mrb[0].mxu0
        %2398 = vmatprep.mubr.f32.mxu0 0.0
        %2399 = vmatmul.mubr.f32.gmra.mrb[0].mxu0 %v1099
        %v2400 = vpop.f32.mrb[0].mxu0
        %v2401 = vadd.f32 %v2176, %v2400
        %v2402 = vpop.f32.mrb[0].mxu0
        %2403 = vmatprep.mubr.f32.mxu0 0.0
        %2404 = vmatmul.mubr.f32.gmra.mrb[0].mxu0 %v1108
        %v2405 = vpop.f32.mrb[0].mxu0
        %v2406 = vadd.f32 %v2181, %v2405
        %v2407 = vpop.f32.mrb[0].mxu0
        %2408 = vmatprep.mubr.f32.mxu0 0.0
        %2409 = vmatmul.mubr.f32.gmra.mrb[0].mxu0 %v1117
        %v2410 = vpop.f32.mrb[0].mxu0
        %v2411 = vadd.f32 %v2186, %v2410
        %v2412 = vpop.f32.mrb[0].mxu0
        %2413 = vmatprep.mubr.f32.mxu0 0.0
        %2414 = vmatmul.mubr.f32.gmra.mrb[0].mxu0 %v1126
        %v2415 = vpop.f32.mrb[0].mxu0
        %v2416 = vadd.f32 %v2191, %v2415
        %v2417 = vpop.f32.mrb[0].mxu0
        %2418 = vmatprep.mubr.f32.mxu0 0.0
        %2419 = vmatmul.mubr.f32.gmra.mrb[0].mxu0 %v1135
        %v2420 = vpop.f32.mrb[0].mxu0
        %v2421 = vadd.f32 %v2196, %v2420
        %v2422 = vpop.f32.mrb[0].mxu0
        %2423 = vmatprep.mubr.f32.mxu0 0.0
        %2424 = vmatmul.mubr.f32.gmra.mrb[0].mxu0 %v1144
        %v2425 = vpop.f32.mrb[0].mxu0
        %v2426 = vadd.f32 %v2201, %v2425
        %v2427 = vpop.f32.mrb[0].mxu0
        %2428 = vmatprep.mubr.f32.mxu0 0.0
        %2429 = vmatmul.mubr.f32.gmra.mrb[0].mxu0 %v1153
        %v2430 = vpop.f32.mrb[0].mxu0
        %v2431 = vadd.f32 %v2206, %v2430
        %v2432 = vpop.f32.mrb[0].mxu0
        %2433 = vmatprep.mubr.f32.mxu0 0.0
        %2434 = vmatmul.mubr.f32.gmra.mrb[0].mxu0 %v1162
        %v2435 = vpop.f32.mrb[0].mxu0
        %v2436 = vadd.f32 %v2211, %v2435
        %v2437 = vpop.f32.mrb[0].mxu0
        %2438 = vdwg.mxu0
        %v2439 = vmax.f32 %v2281, 0.0
        %v2440 = vmax.f32 %v2286, 0.0
        %v2441 = vmax.f32 %v2291, 0.0
        %v2442 = vmax.f32 %v2296, 0.0
        %v2443 = vmax.f32 %v2301, 0.0
        %v2444 = vmax.f32 %v2306, 0.0
        %v2445 = vmax.f32 %v2311, 0.0
        %v2446 = vmax.f32 %v2316, 0.0
        %v2447 = vmax.f32 %v2321, 0.0
        %v2448 = vmax.f32 %v2326, 0.0
        %v2449 = vmax.f32 %v2331, 0.0
        %v2450 = vmax.f32 %v2336, 0.0
        %v2451 = vmax.f32 %v2341, 0.0
        %v2452 = vmax.f32 %v2346, 0.0
        %v2453 = vmax.f32 %v2351, 0.0
        %v2454 = vmax.f32 %v2356, 0.0
        %v2455 = vmax.f32 %v2361, 0.0
        %v2456 = vmax.f32 %v2366, 0.0
        %v2457 = vmax.f32 %v2371, 0.0
        %v2458 = vmax.f32 %v2376, 0.0
        %v2459 = vmax.f32 %v2381, 0.0
        %v2460 = vmax.f32 %v2386, 0.0
        %v2461 = vmax.f32 %v2391, 0.0
        %v2462 = vmax.f32 %v2396, 0.0
        %v2463 = vmax.f32 %v2401, 0.0
        %v2464 = vmax.f32 %v2406, 0.0
        %v2465 = vmax.f32 %v2411, 0.0
        %v2466 = vmax.f32 %v2416, 0.0
        %v2467 = vmax.f32 %v2421, 0.0
        %v2468 = vmax.f32 %v2426, 0.0
        %v2469 = vmax.f32 %v2431, 0.0
        %v2470 = vmax.f32 %v2436, 0.0
        %2471 = vst [vmem:[#allocation2] sm:$0xff] 0.0
        %2472 = vst [vmem:[#allocation2 + $0x8] sm:$0xff] 0.0
        %2473 = vst [vmem:[#allocation2 + $0x10] sm:$0x3] 0.0
        %s2474 = scalar_lea.vmem [#allocation2], 408
        %2475 = vst [vmem:[%s2474] sm:$0xff] 0.0
        %2476 = vst [vmem:[%s2474 + $0x8] sm:$0xff] 0.0
        %2477 = vst [vmem:[%s2474 + $0x10] sm:$0x3] 0.0
        %2478 = vst [vmem:[#allocation2] sm:$0x1] 0.0
        %2479 = vst [vmem:[#allocation2 + $0x18] sm:$0x1] 0.0
        %2480 = vst [vmem:[#allocation2 + $0x30] sm:$0x1] 0.0
        %2481 = vst [vmem:[#allocation2 + $0x48] sm:$0x1] 0.0
        %2482 = vst [vmem:[#allocation2 + $0x60] sm:$0x1] 0.0
        %2483 = vst [vmem:[#allocation2 + $0x78] sm:$0x1] 0.0
        %2484 = vst [vmem:[#allocation2 + $0x90] sm:$0x1] 0.0
        %2485 = vst [vmem:[#allocation2 + $0xa8] sm:$0x1] 0.0
        %2486 = vst [vmem:[#allocation2 + $0xc0] sm:$0x1] 0.0
        %2487 = vst [vmem:[#allocation2 + $0xd8] sm:$0x1] 0.0
        %2488 = vst [vmem:[#allocation2 + $0xf0] sm:$0x1] 0.0
        %2489 = vst [vmem:[#allocation2 + $0x108] sm:$0x1] 0.0
        %2490 = vst [vmem:[#allocation2 + $0x120] sm:$0x1] 0.0
        %2491 = vst [vmem:[#allocation2 + $0x138] sm:$0x1] 0.0
        %2492 = vst [vmem:[#allocation2 + $0x150] sm:$0x1] 0.0
        %2493 = vst [vmem:[#allocation2 + $0x168] sm:$0x1] 0.0
        %2494 = vst [vmem:[#allocation2 + $0x180] sm:$0x1] 0.0
        %2495 = vst [vmem:[#allocation2 + $0x198] sm:$0x1] 0.0
        %2496 = vst [vmem:[#allocation2 + $0x11] sm:$0x1] 0.0
        %2497 = vst [vmem:[#allocation2 + $0x29] sm:$0x1] 0.0
        %2498 = vst [vmem:[#allocation2 + $0x41] sm:$0x1] 0.0
        %2499 = vst [vmem:[#allocation2 + $0x59] sm:$0x1] 0.0
        %2500 = vst [vmem:[#allocation2 + $0x71] sm:$0x1] 0.0
        %2501 = vst [vmem:[#allocation2 + $0x89] sm:$0x1] 0.0
        %2502 = vst [vmem:[#allocation2 + $0xa1] sm:$0x1] 0.0
        %2503 = vst [vmem:[#allocation2 + $0xb9] sm:$0x1] 0.0
        %2504 = vst [vmem:[#allocation2 + $0xd1] sm:$0x1] 0.0
        %2505 = vst [vmem:[#allocation2 + $0xe9] sm:$0x1] 0.0
        %2506 = vst [vmem:[#allocation2 + $0x101] sm:$0x1] 0.0
        %2507 = vst [vmem:[#allocation2 + $0x119] sm:$0x1] 0.0
        %2508 = vst [vmem:[#allocation2 + $0x131] sm:$0x1] 0.0
        %2509 = vst [vmem:[#allocation2 + $0x149] sm:$0x1] 0.0
        %2510 = vst [vmem:[#allocation2 + $0x161] sm:$0x1] 0.0
        %2511 = vst [vmem:[#allocation2 + $0x179] sm:$0x1] 0.0
        %2512 = vst [vmem:[#allocation2 + $0x191] sm:$0x1] 0.0
        %2513 = vst [vmem:[#allocation2 + $0x1a9] sm:$0x1] 0.0
        %s2514 = scalar_lea.vmem [#allocation2], 24
        %2515 = vst [vmem:[%s2514 + $0x1] sm:$0xff] %v2439
        %2516 = vst [vmem:[%s2514 + $0x9] sm:$0xff] %v2440
        %2517 = vst [vmem:[%s2514 + $0x19] sm:$0xff] %v2441
        %2518 = vst [vmem:[%s2514 + $0x21] sm:$0xff] %v2442
        %2519 = vst [vmem:[%s2514 + $0x31] sm:$0xff] %v2443
        %2520 = vst [vmem:[%s2514 + $0x39] sm:$0xff] %v2444
        %2521 = vst [vmem:[%s2514 + $0x49] sm:$0xff] %v2445
        %2522 = vst [vmem:[%s2514 + $0x51] sm:$0xff] %v2446
        %2523 = vst [vmem:[%s2514 + $0x61] sm:$0xff] %v2447
        %2524 = vst [vmem:[%s2514 + $0x69] sm:$0xff] %v2448
        %2525 = vst [vmem:[%s2514 + $0x79] sm:$0xff] %v2449
        %2526 = vst [vmem:[%s2514 + $0x81] sm:$0xff] %v2450
        %2527 = vst [vmem:[%s2514 + $0x91] sm:$0xff] %v2451
        %2528 = vst [vmem:[%s2514 + $0x99] sm:$0xff] %v2452
        %2529 = vst [vmem:[%s2514 + $0xa9] sm:$0xff] %v2453
        %2530 = vst [vmem:[%s2514 + $0xb1] sm:$0xff] %v2454
        %2531 = vst [vmem:[%s2514 + $0xc1] sm:$0xff] %v2455
        %2532 = vst [vmem:[%s2514 + $0xc9] sm:$0xff] %v2456
        %2533 = vst [vmem:[%s2514 + $0xd9] sm:$0xff] %v2457
        %2534 = vst [vmem:[%s2514 + $0xe1] sm:$0xff] %v2458
        %2535 = vst [vmem:[%s2514 + $0xf1] sm:$0xff] %v2459
        %2536 = vst [vmem:[%s2514 + $0xf9] sm:$0xff] %v2460
        %2537 = vst [vmem:[%s2514 + $0x109] sm:$0xff] %v2461
        %2538 = vst [vmem:[%s2514 + $0x111] sm:$0xff] %v2462
        %2539 = vst [vmem:[%s2514 + $0x121] sm:$0xff] %v2463
        %2540 = vst [vmem:[%s2514 + $0x129] sm:$0xff] %v2464
        %2541 = vst [vmem:[%s2514 + $0x139] sm:$0xff] %v2465
        %2542 = vst [vmem:[%s2514 + $0x141] sm:$0xff] %v2466
        %2543 = vst [vmem:[%s2514 + $0x151] sm:$0xff] %v2467
        %2544 = vst [vmem:[%s2514 + $0x159] sm:$0xff] %v2468
        %2545 = vst [vmem:[%s2514 + $0x169] sm:$0xff] %v2469
        %2546 = vst [vmem:[%s2514 + $0x171] sm:$0xff] %v2470
        %v2547 = vld [vmem:[#allocation2] sm:$0xff]
        %v2548 = vld [vmem:[#allocation2 + $0x8] sm:$0xff]
        %v2549 = vld [vmem:[#allocation2 + $0x18] sm:$0xff]
        %v2550 = vld [vmem:[#allocation2 + $0x20] sm:$0xff]
        %v2551 = vld [vmem:[#allocation2 + $0x30] sm:$0xff]
        %v2552 = vld [vmem:[#allocation2 + $0x38] sm:$0xff]
        %v2553 = vld [vmem:[#allocation2 + $0x48] sm:$0xff]
        %v2554 = vld [vmem:[#allocation2 + $0x50] sm:$0xff]
        %v2555 = vld [vmem:[#allocation2 + $0x60] sm:$0xff]
        %v2556 = vld [vmem:[#allocation2 + $0x68] sm:$0xff]
        %v2557 = vld [vmem:[#allocation2 + $0x78] sm:$0xff]
        %v2558 = vld [vmem:[#allocation2 + $0x80] sm:$0xff]
        %v2559 = vld [vmem:[#allocation2 + $0x90] sm:$0xff]
        %v2560 = vld [vmem:[#allocation2 + $0x98] sm:$0xff]
        %v2561 = vld [vmem:[#allocation2 + $0xa8] sm:$0xff]
        %v2562 = vld [vmem:[#allocation2 + $0xb0] sm:$0xff]
        %v2563 = vld [vmem:[#allocation2 + $0xc0] sm:$0xff]
        %v2564 = vld [vmem:[#allocation2 + $0xc8] sm:$0xff]
        %v2565 = vld [vmem:[#allocation2 + $0xd8] sm:$0xff]
        %v2566 = vld [vmem:[#allocation2 + $0xe0] sm:$0xff]
        %v2567 = vld [vmem:[#allocation2 + $0xf0] sm:$0xff]
        %v2568 = vld [vmem:[#allocation2 + $0xf8] sm:$0xff]
        %v2569 = vld [vmem:[#allocation2 + $0x108] sm:$0xff]
        %v2570 = vld [vmem:[#allocation2 + $0x110] sm:$0xff]
        %v2571 = vld [vmem:[#allocation2 + $0x120] sm:$0xff]
        %v2572 = vld [vmem:[#allocation2 + $0x128] sm:$0xff]
        %v2573 = vld [vmem:[#allocation2 + $0x138] sm:$0xff]
        %v2574 = vld [vmem:[#allocation2 + $0x140] sm:$0xff]
        %v2575 = vld [vmem:[#allocation2 + $0x150] sm:$0xff]
        %v2576 = vld [vmem:[#allocation2 + $0x158] sm:$0xff]
        %v2577 = vld [vmem:[#allocation2 + $0x168] sm:$0xff]
        %v2578 = vld [vmem:[#allocation2 + $0x170] sm:$0xff]
        %2579 = vst [vmem:[#allocation3] sm:$0xff] %v2547
        %2580 = vst [vmem:[#allocation3 + $0x48] sm:$0xff] %v2548
        %2581 = vst [vmem:[#allocation3 + $0x90] sm:$0xff] %v2549
        %2582 = vst [vmem:[#allocation3 + $0xd8] sm:$0xff] %v2550
        %2583 = vst [vmem:[#allocation3 + $0x120] sm:$0xff] %v2551
        %2584 = vst [vmem:[#allocation3 + $0x168] sm:$0xff] %v2552
        %2585 = vst [vmem:[#allocation3 + $0x1b0] sm:$0xff] %v2553
        %2586 = vst [vmem:[#allocation3 + $0x1f8] sm:$0xff] %v2554
        %2587 = vst [vmem:[#allocation3 + $0x240] sm:$0xff] %v2555
        %2588 = vst [vmem:[#allocation3 + $0x288] sm:$0xff] %v2556
        %2589 = vst [vmem:[#allocation3 + $0x2d0] sm:$0xff] %v2557
        %2590 = vst [vmem:[#allocation3 + $0x318] sm:$0xff] %v2558
        %2591 = vst [vmem:[#allocation3 + $0x360] sm:$0xff] %v2559
        %2592 = vst [vmem:[#allocation3 + $0x3a8] sm:$0xff] %v2560
        %2593 = vst [vmem:[#allocation3 + $0x3f0] sm:$0xff] %v2561
        %2594 = vst [vmem:[#allocation3 + $0x438] sm:$0xff] %v2562
        %2595 = vst [vmem:[#allocation3 + $0x480] sm:$0xff] %v2563
        %2596 = vst [vmem:[#allocation3 + $0x4c8] sm:$0xff] %v2564
        %2597 = vst [vmem:[#allocation3 + $0x510] sm:$0xff] %v2565
        %2598 = vst [vmem:[#allocation3 + $0x558] sm:$0xff] %v2566
        %2599 = vst [vmem:[#allocation3 + $0x5a0] sm:$0xff] %v2567
        %2600 = vst [vmem:[#allocation3 + $0x5e8] sm:$0xff] %v2568
        %2601 = vst [vmem:[#allocation3 + $0x630] sm:$0xff] %v2569
        %2602 = vst [vmem:[#allocation3 + $0x678] sm:$0xff] %v2570
        %2603 = vst [vmem:[#allocation3 + $0x6c0] sm:$0xff] %v2571
        %2604 = vst [vmem:[#allocation3 + $0x708] sm:$0xff] %v2572
        %2605 = vst [vmem:[#allocation3 + $0x750] sm:$0xff] %v2573
        %2606 = vst [vmem:[#allocation3 + $0x798] sm:$0xff] %v2574
        %2607 = vst [vmem:[#allocation3 + $0x7e0] sm:$0xff] %v2575
        %2608 = vst [vmem:[#allocation3 + $0x828] sm:$0xff] %v2576
        %2609 = vst [vmem:[#allocation3 + $0x870] sm:$0xff] %v2577
        %2610 = vst [vmem:[#allocation3 + $0x8b8] sm:$0xff] %v2578
        %v2611 = vld [vmem:[#allocation2 + $0x1] sm:$0xff]
        %v2612 = vld [vmem:[#allocation2 + $0x9] sm:$0xff]
        %v2613 = vld [vmem:[#allocation2 + $0x19] sm:$0xff]
        %v2614 = vld [vmem:[#allocation2 + $0x21] sm:$0xff]
        %v2615 = vld [vmem:[#allocation2 + $0x31] sm:$0xff]
        %v2616 = vld [vmem:[#allocation2 + $0x39] sm:$0xff]
        %v2617 = vld [vmem:[#allocation2 + $0x49] sm:$0xff]
        %v2618 = vld [vmem:[#allocation2 + $0x51] sm:$0xff]
        %v2619 = vld [vmem:[#allocation2 + $0x61] sm:$0xff]
        %v2620 = vld [vmem:[#allocation2 + $0x69] sm:$0xff]
        %v2621 = vld [vmem:[#allocation2 + $0x79] sm:$0xff]
        %v2622 = vld [vmem:[#allocation2 + $0x81] sm:$0xff]
        %v2623 = vld [vmem:[#allocation2 + $0x91] sm:$0xff]
        %v2624 = vld [vmem:[#allocation2 + $0x99] sm:$0xff]
        %v2625 = vld [vmem:[#allocation2 + $0xa9] sm:$0xff]
        %v2626 = vld [vmem:[#allocation2 + $0xb1] sm:$0xff]
        %v2627 = vld [vmem:[#allocation2 + $0xc1] sm:$0xff]
        %v2628 = vld [vmem:[#allocation2 + $0xc9] sm:$0xff]
        %v2629 = vld [vmem:[#allocation2 + $0xd9] sm:$0xff]
        %v2630 = vld [vmem:[#allocation2 + $0xe1] sm:$0xff]
        %v2631 = vld [vmem:[#allocation2 + $0xf1] sm:$0xff]
        %v2632 = vld [vmem:[#allocation2 + $0xf9] sm:$0xff]
        %v2633 = vld [vmem:[#allocation2 + $0x109] sm:$0xff]
        %v2634 = vld [vmem:[#allocation2 + $0x111] sm:$0xff]
        %v2635 = vld [vmem:[#allocation2 + $0x121] sm:$0xff]
        %v2636 = vld [vmem:[#allocation2 + $0x129] sm:$0xff]
        %v2637 = vld [vmem:[#allocation2 + $0x139] sm:$0xff]
        %v2638 = vld [vmem:[#allocation2 + $0x141] sm:$0xff]
        %v2639 = vld [vmem:[#allocation2 + $0x151] sm:$0xff]
        %v2640 = vld [vmem:[#allocation2 + $0x159] sm:$0xff]
        %v2641 = vld [vmem:[#allocation2 + $0x169] sm:$0xff]
        %v2642 = vld [vmem:[#allocation2 + $0x171] sm:$0xff]
        %2643 = vst [vmem:[#allocation3 + $0x8] sm:$0xff] %v2611
        %2644 = vst [vmem:[#allocation3 + $0x50] sm:$0xff] %v2612
        %2645 = vst [vmem:[#allocation3 + $0x98] sm:$0xff] %v2613
        %2646 = vst [vmem:[#allocation3 + $0xe0] sm:$0xff] %v2614
        %2647 = vst [vmem:[#allocation3 + $0x128] sm:$0xff] %v2615
        %2648 = vst [vmem:[#allocation3 + $0x170] sm:$0xff] %v2616
        %2649 = vst [vmem:[#allocation3 + $0x1b8] sm:$0xff] %v2617
        %2650 = vst [vmem:[#allocation3 + $0x200] sm:$0xff] %v2618
        %2651 = vst [vmem:[#allocation3 + $0x248] sm:$0xff] %v2619
        %2652 = vst [vmem:[#allocation3 + $0x290] sm:$0xff] %v2620
        %2653 = vst [vmem:[#allocation3 + $0x2d8] sm:$0xff] %v2621
        %2654 = vst [vmem:[#allocation3 + $0x320] sm:$0xff] %v2622
        %2655 = vst [vmem:[#allocation3 + $0x368] sm:$0xff] %v2623
        %2656 = vst [vmem:[#allocation3 + $0x3b0] sm:$0xff] %v2624
        %2657 = vst [vmem:[#allocation3 + $0x3f8] sm:$0xff] %v2625
        %2658 = vst [vmem:[#allocation3 + $0x440] sm:$0xff] %v2626
        %2659 = vst [vmem:[#allocation3 + $0x488] sm:$0xff] %v2627
        %2660 = vst [vmem:[#allocation3 + $0x4d0] sm:$0xff] %v2628
        %2661 = vst [vmem:[#allocation3 + $0x518] sm:$0xff] %v2629
        %2662 = vst [vmem:[#allocation3 + $0x560] sm:$0xff] %v2630
        %2663 = vst [vmem:[#allocation3 + $0x5a8] sm:$0xff] %v2631
        %2664 = vst [vmem:[#allocation3 + $0x5f0] sm:$0xff] %v2632
        %2665 = vst [vmem:[#allocation3 + $0x638] sm:$0xff] %v2633
        %2666 = vst [vmem:[#allocation3 + $0x680] sm:$0xff] %v2634
        %2667 = vst [vmem:[#allocation3 + $0x6c8] sm:$0xff] %v2635
        %2668 = vst [vmem:[#allocation3 + $0x710] sm:$0xff] %v2636
        %2669 = vst [vmem:[#allocation3 + $0x758] sm:$0xff] %v2637
        %2670 = vst [vmem:[#allocation3 + $0x7a0] sm:$0xff] %v2638
        %2671 = vst [vmem:[#allocation3 + $0x7e8] sm:$0xff] %v2639
        %2672 = vst [vmem:[#allocation3 + $0x830] sm:$0xff] %v2640
        %2673 = vst [vmem:[#allocation3 + $0x878] sm:$0xff] %v2641
        %2674 = vst [vmem:[#allocation3 + $0x8c0] sm:$0xff] %v2642
        %v2675 = vld [vmem:[#allocation2 + $0x2] sm:$0xff]
        %v2676 = vld [vmem:[#allocation2 + $0xa] sm:$0xff]
        %v2677 = vld [vmem:[#allocation2 + $0x1a] sm:$0xff]
        %v2678 = vld [vmem:[#allocation2 + $0x22] sm:$0xff]
        %v2679 = vld [vmem:[#allocation2 + $0x32] sm:$0xff]
        %v2680 = vld [vmem:[#allocation2 + $0x3a] sm:$0xff]
        %v2681 = vld [vmem:[#allocation2 + $0x4a] sm:$0xff]
        %v2682 = vld [vmem:[#allocation2 + $0x52] sm:$0xff]
        %v2683 = vld [vmem:[#allocation2 + $0x62] sm:$0xff]
        %v2684 = vld [vmem:[#allocation2 + $0x6a] sm:$0xff]
        %v2685 = vld [vmem:[#allocation2 + $0x7a] sm:$0xff]
        %v2686 = vld [vmem:[#allocation2 + $0x82] sm:$0xff]
        %v2687 = vld [vmem:[#allocation2 + $0x92] sm:$0xff]
        %v2688 = vld [vmem:[#allocation2 + $0x9a] sm:$0xff]
        %v2689 = vld [vmem:[#allocation2 + $0xaa] sm:$0xff]
        %v2690 = vld [vmem:[#allocation2 + $0xb2] sm:$0xff]
        %v2691 = vld [vmem:[#allocation2 + $0xc2] sm:$0xff]
        %v2692 = vld [vmem:[#allocation2 + $0xca] sm:$0xff]
        %v2693 = vld [vmem:[#allocation2 + $0xda] sm:$0xff]
        %v2694 = vld [vmem:[#allocation2 + $0xe2] sm:$0xff]
        %v2695 = vld [vmem:[#allocation2 + $0xf2] sm:$0xff]
        %v2696 = vld [vmem:[#allocation2 + $0xfa] sm:$0xff]
        %v2697 = vld [vmem:[#allocation2 + $0x10a] sm:$0xff]
        %v2698 = vld [vmem:[#allocation2 + $0x112] sm:$0xff]
        %v2699 = vld [vmem:[#allocation2 + $0x122] sm:$0xff]
        %v2700 = vld [vmem:[#allocation2 + $0x12a] sm:$0xff]
        %v2701 = vld [vmem:[#allocation2 + $0x13a] sm:$0xff]
        %v2702 = vld [vmem:[#allocation2 + $0x142] sm:$0xff]
        %v2703 = vld [vmem:[#allocation2 + $0x152] sm:$0xff]
        %v2704 = vld [vmem:[#allocation2 + $0x15a] sm:$0xff]
        %v2705 = vld [vmem:[#allocation2 + $0x16a] sm:$0xff]
        %v2706 = vld [vmem:[#allocation2 + $0x172] sm:$0xff]
        %2707 = vst [vmem:[#allocation3 + $0x10] sm:$0xff] %v2675
        %2708 = vst [vmem:[#allocation3 + $0x58] sm:$0xff] %v2676
        %2709 = vst [vmem:[#allocation3 + $0xa0] sm:$0xff] %v2677
        %2710 = vst [vmem:[#allocation3 + $0xe8] sm:$0xff] %v2678
        %2711 = vst [vmem:[#allocation3 + $0x130] sm:$0xff] %v2679
        %2712 = vst [vmem:[#allocation3 + $0x178] sm:$0xff] %v2680
        %2713 = vst [vmem:[#allocation3 + $0x1c0] sm:$0xff] %v2681
        %2714 = vst [vmem:[#allocation3 + $0x208] sm:$0xff] %v2682
        %2715 = vst [vmem:[#allocation3 + $0x250] sm:$0xff] %v2683
        %2716 = vst [vmem:[#allocation3 + $0x298] sm:$0xff] %v2684
        %2717 = vst [vmem:[#allocation3 + $0x2e0] sm:$0xff] %v2685
        %2718 = vst [vmem:[#allocation3 + $0x328] sm:$0xff] %v2686
        %2719 = vst [vmem:[#allocation3 + $0x370] sm:$0xff] %v2687
        %2720 = vst [vmem:[#allocation3 + $0x3b8] sm:$0xff] %v2688
        %2721 = vst [vmem:[#allocation3 + $0x400] sm:$0xff] %v2689
        %2722 = vst [vmem:[#allocation3 + $0x448] sm:$0xff] %v2690
        %2723 = vst [vmem:[#allocation3 + $0x490] sm:$0xff] %v2691
        %2724 = vst [vmem:[#allocation3 + $0x4d8] sm:$0xff] %v2692
        %2725 = vst [vmem:[#allocation3 + $0x520] sm:$0xff] %v2693
        %2726 = vst [vmem:[#allocation3 + $0x568] sm:$0xff] %v2694
        %2727 = vst [vmem:[#allocation3 + $0x5b0] sm:$0xff] %v2695
        %2728 = vst [vmem:[#allocation3 + $0x5f8] sm:$0xff] %v2696
        %2729 = vst [vmem:[#allocation3 + $0x640] sm:$0xff] %v2697
        %2730 = vst [vmem:[#allocation3 + $0x688] sm:$0xff] %v2698
        %2731 = vst [vmem:[#allocation3 + $0x6d0] sm:$0xff] %v2699
        %2732 = vst [vmem:[#allocation3 + $0x718] sm:$0xff] %v2700
        %2733 = vst [vmem:[#allocation3 + $0x760] sm:$0xff] %v2701
        %2734 = vst [vmem:[#allocation3 + $0x7a8] sm:$0xff] %v2702
        %2735 = vst [vmem:[#allocation3 + $0x7f0] sm:$0xff] %v2703
        %2736 = vst [vmem:[#allocation3 + $0x838] sm:$0xff] %v2704
        %2737 = vst [vmem:[#allocation3 + $0x880] sm:$0xff] %v2705
        %2738 = vst [vmem:[#allocation3 + $0x8c8] sm:$0xff] %v2706
        %v2739 = vld [vmem:[%s2514] sm:$0xff]
        %v2740 = vld [vmem:[%s2514 + $0x8] sm:$0xff]
        %v2741 = vld [vmem:[%s2514 + $0x18] sm:$0xff]
        %v2742 = vld [vmem:[%s2514 + $0x20] sm:$0xff]
        %v2743 = vld [vmem:[%s2514 + $0x30] sm:$0xff]
        %v2744 = vld [vmem:[%s2514 + $0x38] sm:$0xff]
        %v2745 = vld [vmem:[%s2514 + $0x48] sm:$0xff]
        %v2746 = vld [vmem:[%s2514 + $0x50] sm:$0xff]
        %v2747 = vld [vmem:[%s2514 + $0x60] sm:$0xff]
        %v2748 = vld [vmem:[%s2514 + $0x68] sm:$0xff]
        %v2749 = vld [vmem:[%s2514 + $0x78] sm:$0xff]
        %v2750 = vld [vmem:[%s2514 + $0x80] sm:$0xff]
        %v2751 = vld [vmem:[%s2514 + $0x90] sm:$0xff]
        %v2752 = vld [vmem:[%s2514 + $0x98] sm:$0xff]
        %v2753 = vld [vmem:[%s2514 + $0xa8] sm:$0xff]
        %v2754 = vld [vmem:[%s2514 + $0xb0] sm:$0xff]
        %v2755 = vld [vmem:[%s2514 + $0xc0] sm:$0xff]
        %v2756 = vld [vmem:[%s2514 + $0xc8] sm:$0xff]
        %v2757 = vld [vmem:[%s2514 + $0xd8] sm:$0xff]
        %v2758 = vld [vmem:[%s2514 + $0xe0] sm:$0xff]
        %v2759 = vld [vmem:[%s2514 + $0xf0] sm:$0xff]
        %v2760 = vld [vmem:[%s2514 + $0xf8] sm:$0xff]
        %v2761 = vld [vmem:[%s2514 + $0x108] sm:$0xff]
        %v2762 = vld [vmem:[%s2514 + $0x110] sm:$0xff]
        %v2763 = vld [vmem:[%s2514 + $0x120] sm:$0xff]
        %v2764 = vld [vmem:[%s2514 + $0x128] sm:$0xff]
        %v2765 = vld [vmem:[%s2514 + $0x138] sm:$0xff]
        %v2766 = vld [vmem:[%s2514 + $0x140] sm:$0xff]
        %v2767 = vld [vmem:[%s2514 + $0x150] sm:$0xff]
        %v2768 = vld [vmem:[%s2514 + $0x158] sm:$0xff]
        %v2769 = vld [vmem:[%s2514 + $0x168] sm:$0xff]
        %v2770 = vld [vmem:[%s2514 + $0x170] sm:$0xff]
        %2771 = vst [vmem:[#allocation3 + $0x18] sm:$0xff] %v2739
        %2772 = vst [vmem:[#allocation3 + $0x60] sm:$0xff] %v2740
        %2773 = vst [vmem:[#allocation3 + $0xa8] sm:$0xff] %v2741
        %2774 = vst [vmem:[#allocation3 + $0xf0] sm:$0xff] %v2742
        %2775 = vst [vmem:[#allocation3 + $0x138] sm:$0xff] %v2743
        %2776 = vst [vmem:[#allocation3 + $0x180] sm:$0xff] %v2744
        %2777 = vst [vmem:[#allocation3 + $0x1c8] sm:$0xff] %v2745
        %2778 = vst [vmem:[#allocation3 + $0x210] sm:$0xff] %v2746
        %2779 = vst [vmem:[#allocation3 + $0x258] sm:$0xff] %v2747
        %2780 = vst [vmem:[#allocation3 + $0x2a0] sm:$0xff] %v2748
        %2781 = vst [vmem:[#allocation3 + $0x2e8] sm:$0xff] %v2749
        %2782 = vst [vmem:[#allocation3 + $0x330] sm:$0xff] %v2750
        %2783 = vst [vmem:[#allocation3 + $0x378] sm:$0xff] %v2751
        %2784 = vst [vmem:[#allocation3 + $0x3c0] sm:$0xff] %v2752
        %2785 = vst [vmem:[#allocation3 + $0x408] sm:$0xff] %v2753
        %2786 = vst [vmem:[#allocation3 + $0x450] sm:$0xff] %v2754
        %2787 = vst [vmem:[#allocation3 + $0x498] sm:$0xff] %v2755
        %2788 = vst [vmem:[#allocation3 + $0x4e0] sm:$0xff] %v2756
        %2789 = vst [vmem:[#allocation3 + $0x528] sm:$0xff] %v2757
        %2790 = vst [vmem:[#allocation3 + $0x570] sm:$0xff] %v2758
        %2791 = vst [vmem:[#allocation3 + $0x5b8] sm:$0xff] %v2759
        %2792 = vst [vmem:[#allocation3 + $0x600] sm:$0xff] %v2760
        %2793 = vst [vmem:[#allocation3 + $0x648] sm:$0xff] %v2761
        %2794 = vst [vmem:[#allocation3 + $0x690] sm:$0xff] %v2762
        %2795 = vst [vmem:[#allocation3 + $0x6d8] sm:$0xff] %v2763
        %2796 = vst [vmem:[#allocation3 + $0x720] sm:$0xff] %v2764
        %2797 = vst [vmem:[#allocation3 + $0x768] sm:$0xff] %v2765
        %2798 = vst [vmem:[#allocation3 + $0x7b0] sm:$0xff] %v2766
        %2799 = vst [vmem:[#allocation3 + $0x7f8] sm:$0xff] %v2767
        %2800 = vst [vmem:[#allocation3 + $0x840] sm:$0xff] %v2768
        %2801 = vst [vmem:[#allocation3 + $0x888] sm:$0xff] %v2769
        %2802 = vst [vmem:[#allocation3 + $0x8d0] sm:$0xff] %v2770
        %v2803 = vld [vmem:[%s2514 + $0x1] sm:$0xff]
        %v2804 = vld [vmem:[%s2514 + $0x9] sm:$0xff]
        %v2805 = vld [vmem:[%s2514 + $0x19] sm:$0xff]
        %v2806 = vld [vmem:[%s2514 + $0x21] sm:$0xff]
        %v2807 = vld [vmem:[%s2514 + $0x31] sm:$0xff]
        %v2808 = vld [vmem:[%s2514 + $0x39] sm:$0xff]
        %v2809 = vld [vmem:[%s2514 + $0x49] sm:$0xff]
        %v2810 = vld [vmem:[%s2514 + $0x51] sm:$0xff]
        %v2811 = vld [vmem:[%s2514 + $0x61] sm:$0xff]
        %v2812 = vld [vmem:[%s2514 + $0x69] sm:$0xff]
        %v2813 = vld [vmem:[%s2514 + $0x79] sm:$0xff]
        %v2814 = vld [vmem:[%s2514 + $0x81] sm:$0xff]
        %v2815 = vld [vmem:[%s2514 + $0x91] sm:$0xff]
        %v2816 = vld [vmem:[%s2514 + $0x99] sm:$0xff]
        %v2817 = vld [vmem:[%s2514 + $0xa9] sm:$0xff]
        %v2818 = vld [vmem:[%s2514 + $0xb1] sm:$0xff]
        %v2819 = vld [vmem:[%s2514 + $0xc1] sm:$0xff]
        %v2820 = vld [vmem:[%s2514 + $0xc9] sm:$0xff]
        %v2821 = vld [vmem:[%s2514 + $0xd9] sm:$0xff]
        %v2822 = vld [vmem:[%s2514 + $0xe1] sm:$0xff]
        %v2823 = vld [vmem:[%s2514 + $0xf1] sm:$0xff]
        %v2824 = vld [vmem:[%s2514 + $0xf9] sm:$0xff]
        %v2825 = vld [vmem:[%s2514 + $0x109] sm:$0xff]
        %v2826 = vld [vmem:[%s2514 + $0x111] sm:$0xff]
        %v2827 = vld [vmem:[%s2514 + $0x121] sm:$0xff]
        %v2828 = vld [vmem:[%s2514 + $0x129] sm:$0xff]
        %v2829 = vld [vmem:[%s2514 + $0x139] sm:$0xff]
        %v2830 = vld [vmem:[%s2514 + $0x141] sm:$0xff]
        %v2831 = vld [vmem:[%s2514 + $0x151] sm:$0xff]
        %v2832 = vld [vmem:[%s2514 + $0x159] sm:$0xff]
        %v2833 = vld [vmem:[%s2514 + $0x169] sm:$0xff]
        %v2834 = vld [vmem:[%s2514 + $0x171] sm:$0xff]
        %2835 = vst [vmem:[#allocation3 + $0x20] sm:$0xff] %v2803
        %2836 = vst [vmem:[#allocation3 + $0x68] sm:$0xff] %v2804
        %2837 = vst [vmem:[#allocation3 + $0xb0] sm:$0xff] %v2805
        %2838 = vst [vmem:[#allocation3 + $0xf8] sm:$0xff] %v2806
        %2839 = vst [vmem:[#allocation3 + $0x140] sm:$0xff] %v2807
        %2840 = vst [vmem:[#allocation3 + $0x188] sm:$0xff] %v2808
        %2841 = vst [vmem:[#allocation3 + $0x1d0] sm:$0xff] %v2809
        %2842 = vst [vmem:[#allocation3 + $0x218] sm:$0xff] %v2810
        %2843 = vst [vmem:[#allocation3 + $0x260] sm:$0xff] %v2811
        %2844 = vst [vmem:[#allocation3 + $0x2a8] sm:$0xff] %v2812
        %2845 = vst [vmem:[#allocation3 + $0x2f0] sm:$0xff] %v2813
        %2846 = vst [vmem:[#allocation3 + $0x338] sm:$0xff] %v2814
        %2847 = vst [vmem:[#allocation3 + $0x380] sm:$0xff] %v2815
        %2848 = vst [vmem:[#allocation3 + $0x3c8] sm:$0xff] %v2816
        %2849 = vst [vmem:[#allocation3 + $0x410] sm:$0xff] %v2817
        %2850 = vst [vmem:[#allocation3 + $0x458] sm:$0xff] %v2818
        %2851 = vst [vmem:[#allocation3 + $0x4a0] sm:$0xff] %v2819
        %2852 = vst [vmem:[#allocation3 + $0x4e8] sm:$0xff] %v2820
        %2853 = vst [vmem:[#allocation3 + $0x530] sm:$0xff] %v2821
        %2854 = vst [vmem:[#allocation3 + $0x578] sm:$0xff] %v2822
        %2855 = vst [vmem:[#allocation3 + $0x5c0] sm:$0xff] %v2823
        %2856 = vst [vmem:[#allocation3 + $0x608] sm:$0xff] %v2824
        %2857 = vst [vmem:[#allocation3 + $0x650] sm:$0xff] %v2825
        %2858 = vst [vmem:[#allocation3 + $0x698] sm:$0xff] %v2826
        %2859 = vst [vmem:[#allocation3 + $0x6e0] sm:$0xff] %v2827
        %2860 = vst [vmem:[#allocation3 + $0x728] sm:$0xff] %v2828
        %2861 = vst [vmem:[#allocation3 + $0x770] sm:$0xff] %v2829
        %2862 = vst [vmem:[#allocation3 + $0x7b8] sm:$0xff] %v2830
        %2863 = vst [vmem:[#allocation3 + $0x800] sm:$0xff] %v2831
        %2864 = vst [vmem:[#allocation3 + $0x848] sm:$0xff] %v2832
        %2865 = vst [vmem:[#allocation3 + $0x890] sm:$0xff] %v2833
        %2866 = vst [vmem:[#allocation3 + $0x8d8] sm:$0xff] %v2834
        %v2867 = vld [vmem:[%s2514 + $0x2] sm:$0xff]
        %v2868 = vld [vmem:[%s2514 + $0xa] sm:$0xff]
        %v2869 = vld [vmem:[%s2514 + $0x1a] sm:$0xff]
        %v2870 = vld [vmem:[%s2514 + $0x22] sm:$0xff]
        %v2871 = vld [vmem:[%s2514 + $0x32] sm:$0xff]
        %v2872 = vld [vmem:[%s2514 + $0x3a] sm:$0xff]
        %v2873 = vld [vmem:[%s2514 + $0x4a] sm:$0xff]
        %v2874 = vld [vmem:[%s2514 + $0x52] sm:$0xff]
        %v2875 = vld [vmem:[%s2514 + $0x62] sm:$0xff]
        %v2876 = vld [vmem:[%s2514 + $0x6a] sm:$0xff]
        %v2877 = vld [vmem:[%s2514 + $0x7a] sm:$0xff]
        %v2878 = vld [vmem:[%s2514 + $0x82] sm:$0xff]
        %v2879 = vld [vmem:[%s2514 + $0x92] sm:$0xff]
        %v2880 = vld [vmem:[%s2514 + $0x9a] sm:$0xff]
        %v2881 = vld [vmem:[%s2514 + $0xaa] sm:$0xff]
        %v2882 = vld [vmem:[%s2514 + $0xb2] sm:$0xff]
        %v2883 = vld [vmem:[%s2514 + $0xc2] sm:$0xff]
        %v2884 = vld [vmem:[%s2514 + $0xca] sm:$0xff]
        %v2885 = vld [vmem:[%s2514 + $0xda] sm:$0xff]
        %v2886 = vld [vmem:[%s2514 + $0xe2] sm:$0xff]
        %v2887 = vld [vmem:[%s2514 + $0xf2] sm:$0xff]
        %v2888 = vld [vmem:[%s2514 + $0xfa] sm:$0xff]
        %v2889 = vld [vmem:[%s2514 + $0x10a] sm:$0xff]
        %v2890 = vld [vmem:[%s2514 + $0x112] sm:$0xff]
        %v2891 = vld [vmem:[%s2514 + $0x122] sm:$0xff]
        %v2892 = vld [vmem:[%s2514 + $0x12a] sm:$0xff]
        %v2893 = vld [vmem:[%s2514 + $0x13a] sm:$0xff]
        %v2894 = vld [vmem:[%s2514 + $0x142] sm:$0xff]
        %v2895 = vld [vmem:[%s2514 + $0x152] sm:$0xff]
        %v2896 = vld [vmem:[%s2514 + $0x15a] sm:$0xff]
        %v2897 = vld [vmem:[%s2514 + $0x16a] sm:$0xff]
        %v2898 = vld [vmem:[%s2514 + $0x172] sm:$0xff]
        %2899 = vst [vmem:[#allocation3 + $0x28] sm:$0xff] %v2867
        %2900 = vst [vmem:[#allocation3 + $0x70] sm:$0xff] %v2868
        %2901 = vst [vmem:[#allocation3 + $0xb8] sm:$0xff] %v2869
        %2902 = vst [vmem:[#allocation3 + $0x100] sm:$0xff] %v2870
        %2903 = vst [vmem:[#allocation3 + $0x148] sm:$0xff] %v2871
        %2904 = vst [vmem:[#allocation3 + $0x190] sm:$0xff] %v2872
        %2905 = vst [vmem:[#allocation3 + $0x1d8] sm:$0xff] %v2873
        %2906 = vst [vmem:[#allocation3 + $0x220] sm:$0xff] %v2874
        %2907 = vst [vmem:[#allocation3 + $0x268] sm:$0xff] %v2875
        %2908 = vst [vmem:[#allocation3 + $0x2b0] sm:$0xff] %v2876
        %2909 = vst [vmem:[#allocation3 + $0x2f8] sm:$0xff] %v2877
        %2910 = vst [vmem:[#allocation3 + $0x340] sm:$0xff] %v2878
        %2911 = vst [vmem:[#allocation3 + $0x388] sm:$0xff] %v2879
        %2912 = vst [vmem:[#allocation3 + $0x3d0] sm:$0xff] %v2880
        %2913 = vst [vmem:[#allocation3 + $0x418] sm:$0xff] %v2881
        %2914 = vst [vmem:[#allocation3 + $0x460] sm:$0xff] %v2882
        %2915 = vst [vmem:[#allocation3 + $0x4a8] sm:$0xff] %v2883
        %2916 = vst [vmem:[#allocation3 + $0x4f0] sm:$0xff] %v2884
        %2917 = vst [vmem:[#allocation3 + $0x538] sm:$0xff] %v2885
        %2918 = vst [vmem:[#allocation3 + $0x580] sm:$0xff] %v2886
        %2919 = vst [vmem:[#allocation3 + $0x5c8] sm:$0xff] %v2887
        %2920 = vst [vmem:[#allocation3 + $0x610] sm:$0xff] %v2888
        %2921 = vst [vmem:[#allocation3 + $0x658] sm:$0xff] %v2889
        %2922 = vst [vmem:[#allocation3 + $0x6a0] sm:$0xff] %v2890
        %2923 = vst [vmem:[#allocation3 + $0x6e8] sm:$0xff] %v2891
        %2924 = vst [vmem:[#allocation3 + $0x730] sm:$0xff] %v2892
        %2925 = vst [vmem:[#allocation3 + $0x778] sm:$0xff] %v2893
        %2926 = vst [vmem:[#allocation3 + $0x7c0] sm:$0xff] %v2894
        %2927 = vst [vmem:[#allocation3 + $0x808] sm:$0xff] %v2895
        %2928 = vst [vmem:[#allocation3 + $0x850] sm:$0xff] %v2896
        %2929 = vst [vmem:[#allocation3 + $0x898] sm:$0xff] %v2897
        %2930 = vst [vmem:[#allocation3 + $0x8e0] sm:$0xff] %v2898
        %s2931 = scalar_lea.vmem [#allocation2], 48
        %v2932 = vld [vmem:[%s2931] sm:$0xff]
        %v2933 = vld [vmem:[%s2931 + $0x8] sm:$0xff]
        %v2934 = vld [vmem:[%s2931 + $0x18] sm:$0xff]
        %v2935 = vld [vmem:[%s2931 + $0x20] sm:$0xff]
        %v2936 = vld [vmem:[%s2931 + $0x30] sm:$0xff]
        %v2937 = vld [vmem:[%s2931 + $0x38] sm:$0xff]
        %v2938 = vld [vmem:[%s2931 + $0x48] sm:$0xff]
        %v2939 = vld [vmem:[%s2931 + $0x50] sm:$0xff]
        %v2940 = vld [vmem:[%s2931 + $0x60] sm:$0xff]
        %v2941 = vld [vmem:[%s2931 + $0x68] sm:$0xff]
        %v2942 = vld [vmem:[%s2931 + $0x78] sm:$0xff]
        %v2943 = vld [vmem:[%s2931 + $0x80] sm:$0xff]
        %v2944 = vld [vmem:[%s2931 + $0x90] sm:$0xff]
        %v2945 = vld [vmem:[%s2931 + $0x98] sm:$0xff]
        %v2946 = vld [vmem:[%s2931 + $0xa8] sm:$0xff]
        %v2947 = vld [vmem:[%s2931 + $0xb0] sm:$0xff]
        %v2948 = vld [vmem:[%s2931 + $0xc0] sm:$0xff]
        %v2949 = vld [vmem:[%s2931 + $0xc8] sm:$0xff]
        %v2950 = vld [vmem:[%s2931 + $0xd8] sm:$0xff]
        %v2951 = vld [vmem:[%s2931 + $0xe0] sm:$0xff]
        %v2952 = vld [vmem:[%s2931 + $0xf0] sm:$0xff]
        %v2953 = vld [vmem:[%s2931 + $0xf8] sm:$0xff]
        %v2954 = vld [vmem:[%s2931 + $0x108] sm:$0xff]
        %v2955 = vld [vmem:[%s2931 + $0x110] sm:$0xff]
        %v2956 = vld [vmem:[%s2931 + $0x120] sm:$0xff]
        %v2957 = vld [vmem:[%s2931 + $0x128] sm:$0xff]
        %v2958 = vld [vmem:[%s2931 + $0x138] sm:$0xff]
        %v2959 = vld [vmem:[%s2931 + $0x140] sm:$0xff]
        %v2960 = vld [vmem:[%s2931 + $0x150] sm:$0xff]
        %v2961 = vld [vmem:[%s2931 + $0x158] sm:$0xff]
        %v2962 = vld [vmem:[%s2931 + $0x168] sm:$0xff]
        %v2963 = vld [vmem:[%s2931 + $0x170] sm:$0xff]
        %2964 = vst [vmem:[#allocation3 + $0x30] sm:$0xff] %v2932
        %2965 = vst [vmem:[#allocation3 + $0x78] sm:$0xff] %v2933
        %2966 = vst [vmem:[#allocation3 + $0xc0] sm:$0xff] %v2934
        %2967 = vst [vmem:[#allocation3 + $0x108] sm:$0xff] %v2935
        %2968 = vst [vmem:[#allocation3 + $0x150] sm:$0xff] %v2936
        %2969 = vst [vmem:[#allocation3 + $0x198] sm:$0xff] %v2937
        %2970 = vst [vmem:[#allocation3 + $0x1e0] sm:$0xff] %v2938
        %2971 = vst [vmem:[#allocation3 + $0x228] sm:$0xff] %v2939
        %2972 = vst [vmem:[#allocation3 + $0x270] sm:$0xff] %v2940
        %2973 = vst [vmem:[#allocation3 + $0x2b8] sm:$0xff] %v2941
        %2974 = vst [vmem:[#allocation3 + $0x300] sm:$0xff] %v2942
        %2975 = vst [vmem:[#allocation3 + $0x348] sm:$0xff] %v2943
        %2976 = vst [vmem:[#allocation3 + $0x390] sm:$0xff] %v2944
        %2977 = vst [vmem:[#allocation3 + $0x3d8] sm:$0xff] %v2945
        %2978 = vst [vmem:[#allocation3 + $0x420] sm:$0xff] %v2946
        %2979 = vst [vmem:[#allocation3 + $0x468] sm:$0xff] %v2947
        %2980 = vst [vmem:[#allocation3 + $0x4b0] sm:$0xff] %v2948
        %2981 = vst [vmem:[#allocation3 + $0x4f8] sm:$0xff] %v2949
        %2982 = vst [vmem:[#allocation3 + $0x540] sm:$0xff] %v2950
        %2983 = vst [vmem:[#allocation3 + $0x588] sm:$0xff] %v2951
        %2984 = vst [vmem:[#allocation3 + $0x5d0] sm:$0xff] %v2952
        %2985 = vst [vmem:[#allocation3 + $0x618] sm:$0xff] %v2953
        %2986 = vst [vmem:[#allocation3 + $0x660] sm:$0xff] %v2954
        %2987 = vst [vmem:[#allocation3 + $0x6a8] sm:$0xff] %v2955
        %2988 = vst [vmem:[#allocation3 + $0x6f0] sm:$0xff] %v2956
        %2989 = vst [vmem:[#allocation3 + $0x738] sm:$0xff] %v2957
        %2990 = vst [vmem:[#allocation3 + $0x780] sm:$0xff] %v2958
        %2991 = vst [vmem:[#allocation3 + $0x7c8] sm:$0xff] %v2959
        %2992 = vst [vmem:[#allocation3 + $0x810] sm:$0xff] %v2960
        %2993 = vst [vmem:[#allocation3 + $0x858] sm:$0xff] %v2961
        %2994 = vst [vmem:[#allocation3 + $0x8a0] sm:$0xff] %v2962
        %2995 = vst [vmem:[#allocation3 + $0x8e8] sm:$0xff] %v2963
        %v2996 = vld [vmem:[%s2931 + $0x1] sm:$0xff]
        %v2997 = vld [vmem:[%s2931 + $0x9] sm:$0xff]
        %v2998 = vld [vmem:[%s2931 + $0x19] sm:$0xff]
        %v2999 = vld [vmem:[%s2931 + $0x21] sm:$0xff]
        %v3000 = vld [vmem:[%s2931 + $0x31] sm:$0xff]
        %v3001 = vld [vmem:[%s2931 + $0x39] sm:$0xff]
        %v3002 = vld [vmem:[%s2931 + $0x49] sm:$0xff]
        %v3003 = vld [vmem:[%s2931 + $0x51] sm:$0xff]
        %v3004 = vld [vmem:[%s2931 + $0x61] sm:$0xff]
        %v3005 = vld [vmem:[%s2931 + $0x69] sm:$0xff]
        %v3006 = vld [vmem:[%s2931 + $0x79] sm:$0xff]
        %v3007 = vld [vmem:[%s2931 + $0x81] sm:$0xff]
        %v3008 = vld [vmem:[%s2931 + $0x91] sm:$0xff]
        %v3009 = vld [vmem:[%s2931 + $0x99] sm:$0xff]
        %v3010 = vld [vmem:[%s2931 + $0xa9] sm:$0xff]
        %v3011 = vld [vmem:[%s2931 + $0xb1] sm:$0xff]
        %v3012 = vld [vmem:[%s2931 + $0xc1] sm:$0xff]
        %v3013 = vld [vmem:[%s2931 + $0xc9] sm:$0xff]
        %v3014 = vld [vmem:[%s2931 + $0xd9] sm:$0xff]
        %v3015 = vld [vmem:[%s2931 + $0xe1] sm:$0xff]
        %v3016 = vld [vmem:[%s2931 + $0xf1] sm:$0xff]
        %v3017 = vld [vmem:[%s2931 + $0xf9] sm:$0xff]
        %v3018 = vld [vmem:[%s2931 + $0x109] sm:$0xff]
        %v3019 = vld [vmem:[%s2931 + $0x111] sm:$0xff]
        %v3020 = vld [vmem:[%s2931 + $0x121] sm:$0xff]
        %v3021 = vld [vmem:[%s2931 + $0x129] sm:$0xff]
        %v3022 = vld [vmem:[%s2931 + $0x139] sm:$0xff]
        %v3023 = vld [vmem:[%s2931 + $0x141] sm:$0xff]
        %v3024 = vld [vmem:[%s2931 + $0x151] sm:$0xff]
        %v3025 = vld [vmem:[%s2931 + $0x159] sm:$0xff]
        %v3026 = vld [vmem:[%s2931 + $0x169] sm:$0xff]
        %v3027 = vld [vmem:[%s2931 + $0x171] sm:$0xff]
        %3028 = vst [vmem:[#allocation3 + $0x38] sm:$0xff] %v2996
        %3029 = vst [vmem:[#allocation3 + $0x80] sm:$0xff] %v2997
        %3030 = vst [vmem:[#allocation3 + $0xc8] sm:$0xff] %v2998
        %3031 = vst [vmem:[#allocation3 + $0x110] sm:$0xff] %v2999
        %3032 = vst [vmem:[#allocation3 + $0x158] sm:$0xff] %v3000
        %3033 = vst [vmem:[#allocation3 + $0x1a0] sm:$0xff] %v3001
        %3034 = vst [vmem:[#allocation3 + $0x1e8] sm:$0xff] %v3002
        %3035 = vst [vmem:[#allocation3 + $0x230] sm:$0xff] %v3003
        %3036 = vst [vmem:[#allocation3 + $0x278] sm:$0xff] %v3004
        %3037 = vst [vmem:[#allocation3 + $0x2c0] sm:$0xff] %v3005
        %3038 = vst [vmem:[#allocation3 + $0x308] sm:$0xff] %v3006
        %3039 = vst [vmem:[#allocation3 + $0x350] sm:$0xff] %v3007
        %3040 = vst [vmem:[#allocation3 + $0x398] sm:$0xff] %v3008
        %3041 = vst [vmem:[#allocation3 + $0x3e0] sm:$0xff] %v3009
        %3042 = vst [vmem:[#allocation3 + $0x428] sm:$0xff] %v3010
        %3043 = vst [vmem:[#allocation3 + $0x470] sm:$0xff] %v3011
        %3044 = vst [vmem:[#allocation3 + $0x4b8] sm:$0xff] %v3012
        %3045 = vst [vmem:[#allocation3 + $0x500] sm:$0xff] %v3013
        %3046 = vst [vmem:[#allocation3 + $0x548] sm:$0xff] %v3014
        %3047 = vst [vmem:[#allocation3 + $0x590] sm:$0xff] %v3015
        %3048 = vst [vmem:[#allocation3 + $0x5d8] sm:$0xff] %v3016
        %3049 = vst [vmem:[#allocation3 + $0x620] sm:$0xff] %v3017
        %3050 = vst [vmem:[#allocation3 + $0x668] sm:$0xff] %v3018
        %3051 = vst [vmem:[#allocation3 + $0x6b0] sm:$0xff] %v3019
        %3052 = vst [vmem:[#allocation3 + $0x6f8] sm:$0xff] %v3020
        %3053 = vst [vmem:[#allocation3 + $0x740] sm:$0xff] %v3021
        %3054 = vst [vmem:[#allocation3 + $0x788] sm:$0xff] %v3022
        %3055 = vst [vmem:[#allocation3 + $0x7d0] sm:$0xff] %v3023
        %3056 = vst [vmem:[#allocation3 + $0x818] sm:$0xff] %v3024
        %3057 = vst [vmem:[#allocation3 + $0x860] sm:$0xff] %v3025
        %3058 = vst [vmem:[#allocation3 + $0x8a8] sm:$0xff] %v3026
        %3059 = vst [vmem:[#allocation3 + $0x8f0] sm:$0xff] %v3027
        %v3060 = vld [vmem:[%s2931 + $0x2] sm:$0xff]
        %v3061 = vld [vmem:[%s2931 + $0xa] sm:$0xff]
        %v3062 = vld [vmem:[%s2931 + $0x1a] sm:$0xff]
        %v3063 = vld [vmem:[%s2931 + $0x22] sm:$0xff]
        %v3064 = vld [vmem:[%s2931 + $0x32] sm:$0xff]
        %v3065 = vld [vmem:[%s2931 + $0x3a] sm:$0xff]
        %v3066 = vld [vmem:[%s2931 + $0x4a] sm:$0xff]
        %v3067 = vld [vmem:[%s2931 + $0x52] sm:$0xff]
        %v3068 = vld [vmem:[%s2931 + $0x62] sm:$0xff]
        %v3069 = vld [vmem:[%s2931 + $0x6a] sm:$0xff]
        %v3070 = vld [vmem:[%s2931 + $0x7a] sm:$0xff]
        %v3071 = vld [vmem:[%s2931 + $0x82] sm:$0xff]
        %v3072 = vld [vmem:[%s2931 + $0x92] sm:$0xff]
        %v3073 = vld [vmem:[%s2931 + $0x9a] sm:$0xff]
        %v3074 = vld [vmem:[%s2931 + $0xaa] sm:$0xff]
        %v3075 = vld [vmem:[%s2931 + $0xb2] sm:$0xff]
        %v3076 = vld [vmem:[%s2931 + $0xc2] sm:$0xff]
        %v3077 = vld [vmem:[%s2931 + $0xca] sm:$0xff]
        %v3078 = vld [vmem:[%s2931 + $0xda] sm:$0xff]
        %v3079 = vld [vmem:[%s2931 + $0xe2] sm:$0xff]
        %v3080 = vld [vmem:[%s2931 + $0xf2] sm:$0xff]
        %v3081 = vld [vmem:[%s2931 + $0xfa] sm:$0xff]
        %v3082 = vld [vmem:[%s2931 + $0x10a] sm:$0xff]
        %v3083 = vld [vmem:[%s2931 + $0x112] sm:$0xff]
        %v3084 = vld [vmem:[%s2931 + $0x122] sm:$0xff]
        %v3085 = vld [vmem:[%s2931 + $0x12a] sm:$0xff]
        %v3086 = vld [vmem:[%s2931 + $0x13a] sm:$0xff]
        %v3087 = vld [vmem:[%s2931 + $0x142] sm:$0xff]
        %v3088 = vld [vmem:[%s2931 + $0x152] sm:$0xff]
        %v3089 = vld [vmem:[%s2931 + $0x15a] sm:$0xff]
        %v3090 = vld [vmem:[%s2931 + $0x16a] sm:$0xff]
        %v3091 = vld [vmem:[%s2931 + $0x172] sm:$0xff]
        %3092 = vst [vmem:[#allocation3 + $0x40] sm:$0xff] %v3060
        %3093 = vst [vmem:[#allocation3 + $0x88] sm:$0xff] %v3061
        %3094 = vst [vmem:[#allocation3 + $0xd0] sm:$0xff] %v3062
        %3095 = vst [vmem:[#allocation3 + $0x118] sm:$0xff] %v3063
        %3096 = vst [vmem:[#allocation3 + $0x160] sm:$0xff] %v3064
        %3097 = vst [vmem:[#allocation3 + $0x1a8] sm:$0xff] %v3065
        %3098 = vst [vmem:[#allocation3 + $0x1f0] sm:$0xff] %v3066
        %3099 = vst [vmem:[#allocation3 + $0x238] sm:$0xff] %v3067
        %3100 = vst [vmem:[#allocation3 + $0x280] sm:$0xff] %v3068
        %3101 = vst [vmem:[#allocation3 + $0x2c8] sm:$0xff] %v3069
        %3102 = vst [vmem:[#allocation3 + $0x310] sm:$0xff] %v3070
        %3103 = vst [vmem:[#allocation3 + $0x358] sm:$0xff] %v3071
        %3104 = vst [vmem:[#allocation3 + $0x3a0] sm:$0xff] %v3072
        %3105 = vst [vmem:[#allocation3 + $0x3e8] sm:$0xff] %v3073
        %3106 = vst [vmem:[#allocation3 + $0x430] sm:$0xff] %v3074
        %3107 = vst [vmem:[#allocation3 + $0x478] sm:$0xff] %v3075
        %3108 = vst [vmem:[#allocation3 + $0x4c0] sm:$0xff] %v3076
        %3109 = vst [vmem:[#allocation3 + $0x508] sm:$0xff] %v3077
        %3110 = vst [vmem:[#allocation3 + $0x550] sm:$0xff] %v3078
        %3111 = vst [vmem:[#allocation3 + $0x598] sm:$0xff] %v3079
        %3112 = vst [vmem:[#allocation3 + $0x5e0] sm:$0xff] %v3080
        %3113 = vst [vmem:[#allocation3 + $0x628] sm:$0xff] %v3081
        %3114 = vst [vmem:[#allocation3 + $0x670] sm:$0xff] %v3082
        %3115 = vst [vmem:[#allocation3 + $0x6b8] sm:$0xff] %v3083
        %3116 = vst [vmem:[#allocation3 + $0x700] sm:$0xff] %v3084
        %3117 = vst [vmem:[#allocation3 + $0x748] sm:$0xff] %v3085
        %3118 = vst [vmem:[#allocation3 + $0x790] sm:$0xff] %v3086
        %3119 = vst [vmem:[#allocation3 + $0x7d8] sm:$0xff] %v3087
        %3120 = vst [vmem:[#allocation3 + $0x820] sm:$0xff] %v3088
        %3121 = vst [vmem:[#allocation3 + $0x868] sm:$0xff] %v3089
        %3122 = vst [vmem:[#allocation3 + $0x8b0] sm:$0xff] %v3090
        %3123 = vst [vmem:[#allocation3 + $0x8f8] sm:$0xff] %v3091
        %v3124 = vld [vmem:[#allocation3] sm:$0xff]
        %v3125 = vld [vmem:[#allocation3 + $0x8] sm:$0xff]
        %v3126 = vld [vmem:[#allocation3 + $0x10] sm:$0xff]
        %v3127 = vld [vmem:[#allocation3 + $0x18] sm:$0xff]
        %v3128 = vld [vmem:[#allocation3 + $0x20] sm:$0xff]
        %v3129 = vld [vmem:[#allocation3 + $0x28] sm:$0xff]
        %v3130 = vld [vmem:[#allocation3 + $0x30] sm:$0xff]
        %v3131 = vld [vmem:[#allocation3 + $0x38] sm:$0xff]
        %v3132 = vld [vmem:[#allocation3 + $0x40] sm:$0xff]
        %v3133 = vld [vmem:[#allocation3 + $0x48] sm:$0xff]
        %v3134 = vld [vmem:[#allocation3 + $0x50] sm:$0xff]
        %v3135 = vld [vmem:[#allocation3 + $0x58] sm:$0xff]
        %v3136 = vld [vmem:[#allocation3 + $0x60] sm:$0xff]
        %v3137 = vld [vmem:[#allocation3 + $0x68] sm:$0xff]
        %v3138 = vld [vmem:[#allocation3 + $0x70] sm:$0xff]
        %v3139 = vld [vmem:[#allocation3 + $0x78] sm:$0xff]
        %v3140 = vld [vmem:[#allocation3 + $0x80] sm:$0xff]
        %v3141 = vld [vmem:[#allocation3 + $0x88] sm:$0xff]
        %v3142 = vld [vmem:[#allocation3 + $0x90] sm:$0xff]
        %v3143 = vld [vmem:[#allocation3 + $0x98] sm:$0xff]
        %v3144 = vld [vmem:[#allocation3 + $0xa0] sm:$0xff]
        %v3145 = vld [vmem:[#allocation3 + $0xa8] sm:$0xff]
        %v3146 = vld [vmem:[#allocation3 + $0xb0] sm:$0xff]
        %v3147 = vld [vmem:[#allocation3 + $0xb8] sm:$0xff]
        %v3148 = vld [vmem:[#allocation3 + $0xc0] sm:$0xff]
        %v3149 = vld [vmem:[#allocation3 + $0xc8] sm:$0xff]
        %v3150 = vld [vmem:[#allocation3 + $0xd0] sm:$0xff]
        %v3151 = vld [vmem:[#allocation3 + $0xd8] sm:$0xff]
        %v3152 = vld [vmem:[#allocation3 + $0xe0] sm:$0xff]
        %v3153 = vld [vmem:[#allocation3 + $0xe8] sm:$0xff]
        %v3154 = vld [vmem:[#allocation3 + $0xf0] sm:$0xff]
        %v3155 = vld [vmem:[#allocation3 + $0xf8] sm:$0xff]
        %v3156 = vld [vmem:[#allocation3 + $0x100] sm:$0xff]
        %v3157 = vld [vmem:[#allocation3 + $0x108] sm:$0xff]
        %v3158 = vld [vmem:[#allocation3 + $0x110] sm:$0xff]
        %v3159 = vld [vmem:[#allocation3 + $0x118] sm:$0xff]
        %v3160 = vld [vmem:[#allocation3 + $0x120] sm:$0xff]
        %v3161 = vld [vmem:[#allocation3 + $0x128] sm:$0xff]
        %v3162 = vld [vmem:[#allocation3 + $0x130] sm:$0xff]
        %v3163 = vld [vmem:[#allocation3 + $0x138] sm:$0xff]
        %v3164 = vld [vmem:[#allocation3 + $0x140] sm:$0xff]
        %v3165 = vld [vmem:[#allocation3 + $0x148] sm:$0xff]
        %v3166 = vld [vmem:[#allocation3 + $0x150] sm:$0xff]
        %v3167 = vld [vmem:[#allocation3 + $0x158] sm:$0xff]
        %v3168 = vld [vmem:[#allocation3 + $0x160] sm:$0xff]
        %v3169 = vld [vmem:[#allocation3 + $0x168] sm:$0xff]
        %v3170 = vld [vmem:[#allocation3 + $0x170] sm:$0xff]
        %v3171 = vld [vmem:[#allocation3 + $0x178] sm:$0xff]
        %v3172 = vld [vmem:[#allocation3 + $0x180] sm:$0xff]
        %v3173 = vld [vmem:[#allocation3 + $0x188] sm:$0xff]
        %v3174 = vld [vmem:[#allocation3 + $0x190] sm:$0xff]
        %v3175 = vld [vmem:[#allocation3 + $0x198] sm:$0xff]
        %v3176 = vld [vmem:[#allocation3 + $0x1a0] sm:$0xff]
        %v3177 = vld [vmem:[#allocation3 + $0x1a8] sm:$0xff]
        %v3178 = vld [vmem:[#allocation3 + $0x1b0] sm:$0xff]
        %v3179 = vld [vmem:[#allocation3 + $0x1b8] sm:$0xff]
        %v3180 = vld [vmem:[#allocation3 + $0x1c0] sm:$0xff]
        %v3181 = vld [vmem:[#allocation3 + $0x1c8] sm:$0xff]
        %v3182 = vld [vmem:[#allocation3 + $0x1d0] sm:$0xff]
        %v3183 = vld [vmem:[#allocation3 + $0x1d8] sm:$0xff]
        %v3184 = vld [vmem:[#allocation3 + $0x1e0] sm:$0xff]
        %v3185 = vld [vmem:[#allocation3 + $0x1e8] sm:$0xff]
        %v3186 = vld [vmem:[#allocation3 + $0x1f0] sm:$0xff]
        %v3187 = vld [vmem:[#allocation3 + $0x1f8] sm:$0xff]
        %v3188 = vld [vmem:[#allocation3 + $0x200] sm:$0xff]
        %v3189 = vld [vmem:[#allocation3 + $0x208] sm:$0xff]
        %v3190 = vld [vmem:[#allocation3 + $0x210] sm:$0xff]
        %v3191 = vld [vmem:[#allocation3 + $0x218] sm:$0xff]
        %v3192 = vld [vmem:[#allocation3 + $0x220] sm:$0xff]
        %v3193 = vld [vmem:[#allocation3 + $0x228] sm:$0xff]
        %v3194 = vld [vmem:[#allocation3 + $0x230] sm:$0xff]
        %v3195 = vld [vmem:[#allocation3 + $0x238] sm:$0xff]
        %v3196 = vld [vmem:[#allocation3 + $0x240] sm:$0xff]
        %v3197 = vld [vmem:[#allocation3 + $0x248] sm:$0xff]
        %v3198 = vld [vmem:[#allocation3 + $0x250] sm:$0xff]
        %v3199 = vld [vmem:[#allocation3 + $0x258] sm:$0xff]
        %v3200 = vld [vmem:[#allocation3 + $0x260] sm:$0xff]
        %v3201 = vld [vmem:[#allocation3 + $0x268] sm:$0xff]
        %v3202 = vld [vmem:[#allocation3 + $0x270] sm:$0xff]
        %v3203 = vld [vmem:[#allocation3 + $0x278] sm:$0xff]
        %v3204 = vld [vmem:[#allocation3 + $0x280] sm:$0xff]
        %v3205 = vld [vmem:[#allocation3 + $0x288] sm:$0xff]
        %v3206 = vld [vmem:[#allocation3 + $0x290] sm:$0xff]
        %v3207 = vld [vmem:[#allocation3 + $0x298] sm:$0xff]
        %v3208 = vld [vmem:[#allocation3 + $0x2a0] sm:$0xff]
        %v3209 = vld [vmem:[#allocation3 + $0x2a8] sm:$0xff]
        %v3210 = vld [vmem:[#allocation3 + $0x2b0] sm:$0xff]
        %v3211 = vld [vmem:[#allocation3 + $0x2b8] sm:$0xff]
        %v3212 = vld [vmem:[#allocation3 + $0x2c0] sm:$0xff]
        %v3213 = vld [vmem:[#allocation3 + $0x2c8] sm:$0xff]
        %v3214 = vld [vmem:[#allocation3 + $0x2d0] sm:$0xff]
        %v3215 = vld [vmem:[#allocation3 + $0x2d8] sm:$0xff]
        %v3216 = vld [vmem:[#allocation3 + $0x2e0] sm:$0xff]
        %v3217 = vld [vmem:[#allocation3 + $0x2e8] sm:$0xff]
        %v3218 = vld [vmem:[#allocation3 + $0x2f0] sm:$0xff]
        %v3219 = vld [vmem:[#allocation3 + $0x2f8] sm:$0xff]
        %v3220 = vld [vmem:[#allocation3 + $0x300] sm:$0xff]
        %v3221 = vld [vmem:[#allocation3 + $0x308] sm:$0xff]
        %v3222 = vld [vmem:[#allocation3 + $0x310] sm:$0xff]
        %v3223 = vld [vmem:[#allocation3 + $0x318] sm:$0xff]
        %v3224 = vld [vmem:[#allocation3 + $0x320] sm:$0xff]
        %v3225 = vld [vmem:[#allocation3 + $0x328] sm:$0xff]
        %v3226 = vld [vmem:[#allocation3 + $0x330] sm:$0xff]
        %v3227 = vld [vmem:[#allocation3 + $0x338] sm:$0xff]
        %v3228 = vld [vmem:[#allocation3 + $0x340] sm:$0xff]
        %v3229 = vld [vmem:[#allocation3 + $0x348] sm:$0xff]
        %v3230 = vld [vmem:[#allocation3 + $0x350] sm:$0xff]
        %v3231 = vld [vmem:[#allocation3 + $0x358] sm:$0xff]
        %v3232 = vld [vmem:[#allocation3 + $0x360] sm:$0xff]
        %v3233 = vld [vmem:[#allocation3 + $0x368] sm:$0xff]
        %v3234 = vld [vmem:[#allocation3 + $0x370] sm:$0xff]
        %v3235 = vld [vmem:[#allocation3 + $0x378] sm:$0xff]
        %v3236 = vld [vmem:[#allocation3 + $0x380] sm:$0xff]
        %v3237 = vld [vmem:[#allocation3 + $0x388] sm:$0xff]
        %v3238 = vld [vmem:[#allocation3 + $0x390] sm:$0xff]
        %v3239 = vld [vmem:[#allocation3 + $0x398] sm:$0xff]
        %v3240 = vld [vmem:[#allocation3 + $0x3a0] sm:$0xff]
        %v3241 = vld [vmem:[#allocation3 + $0x3a8] sm:$0xff]
        %v3242 = vld [vmem:[#allocation3 + $0x3b0] sm:$0xff]
        %v3243 = vld [vmem:[#allocation3 + $0x3b8] sm:$0xff]
        %v3244 = vld [vmem:[#allocation3 + $0x3c0] sm:$0xff]
        %v3245 = vld [vmem:[#allocation3 + $0x3c8] sm:$0xff]
        %v3246 = vld [vmem:[#allocation3 + $0x3d0] sm:$0xff]
        %v3247 = vld [vmem:[#allocation3 + $0x3d8] sm:$0xff]
        %v3248 = vld [vmem:[#allocation3 + $0x3e0] sm:$0xff]
        %v3249 = vld [vmem:[#allocation3 + $0x3e8] sm:$0xff]
        %v3250 = vld [vmem:[#allocation3 + $0x3f0] sm:$0xff]
        %v3251 = vld [vmem:[#allocation3 + $0x3f8] sm:$0xff]
        %v3252 = vld [vmem:[#allocation3 + $0x400] sm:$0xff]
        %v3253 = vld [vmem:[#allocation3 + $0x408] sm:$0xff]
        %v3254 = vld [vmem:[#allocation3 + $0x410] sm:$0xff]
        %v3255 = vld [vmem:[#allocation3 + $0x418] sm:$0xff]
        %v3256 = vld [vmem:[#allocation3 + $0x420] sm:$0xff]
        %v3257 = vld [vmem:[#allocation3 + $0x428] sm:$0xff]
        %v3258 = vld [vmem:[#allocation3 + $0x430] sm:$0xff]
        %v3259 = vld [vmem:[#allocation3 + $0x438] sm:$0xff]
        %v3260 = vld [vmem:[#allocation3 + $0x440] sm:$0xff]
        %v3261 = vld [vmem:[#allocation3 + $0x448] sm:$0xff]
        %v3262 = vld [vmem:[#allocation3 + $0x450] sm:$0xff]
        %v3263 = vld [vmem:[#allocation3 + $0x458] sm:$0xff]
        %v3264 = vld [vmem:[#allocation3 + $0x460] sm:$0xff]
        %v3265 = vld [vmem:[#allocation3 + $0x468] sm:$0xff]
        %v3266 = vld [vmem:[#allocation3 + $0x470] sm:$0xff]
        %v3267 = vld [vmem:[#allocation3 + $0x478] sm:$0xff]
        %v3268 = vld [vmem:[#allocation3 + $0x480] sm:$0xff]
        %v3269 = vld [vmem:[#allocation3 + $0x488] sm:$0xff]
        %v3270 = vld [vmem:[#allocation3 + $0x490] sm:$0xff]
        %v3271 = vld [vmem:[#allocation3 + $0x498] sm:$0xff]
        %v3272 = vld [vmem:[#allocation3 + $0x4a0] sm:$0xff]
        %v3273 = vld [vmem:[#allocation3 + $0x4a8] sm:$0xff]
        %v3274 = vld [vmem:[#allocation3 + $0x4b0] sm:$0xff]
        %v3275 = vld [vmem:[#allocation3 + $0x4b8] sm:$0xff]
        %v3276 = vld [vmem:[#allocation3 + $0x4c0] sm:$0xff]
        %v3277 = vld [vmem:[#allocation3 + $0x4c8] sm:$0xff]
        %v3278 = vld [vmem:[#allocation3 + $0x4d0] sm:$0xff]
        %v3279 = vld [vmem:[#allocation3 + $0x4d8] sm:$0xff]
        %v3280 = vld [vmem:[#allocation3 + $0x4e0] sm:$0xff]
        %v3281 = vld [vmem:[#allocation3 + $0x4e8] sm:$0xff]
        %v3282 = vld [vmem:[#allocation3 + $0x4f0] sm:$0xff]
        %v3283 = vld [vmem:[#allocation3 + $0x4f8] sm:$0xff]
        %v3284 = vld [vmem:[#allocation3 + $0x500] sm:$0xff]
        %v3285 = vld [vmem:[#allocation3 + $0x508] sm:$0xff]
        %v3286 = vld [vmem:[#allocation3 + $0x510] sm:$0xff]
        %v3287 = vld [vmem:[#allocation3 + $0x518] sm:$0xff]
        %v3288 = vld [vmem:[#allocation3 + $0x520] sm:$0xff]
        %v3289 = vld [vmem:[#allocation3 + $0x528] sm:$0xff]
        %v3290 = vld [vmem:[#allocation3 + $0x530] sm:$0xff]
        %v3291 = vld [vmem:[#allocation3 + $0x538] sm:$0xff]
        %v3292 = vld [vmem:[#allocation3 + $0x540] sm:$0xff]
        %v3293 = vld [vmem:[#allocation3 + $0x548] sm:$0xff]
        %v3294 = vld [vmem:[#allocation3 + $0x550] sm:$0xff]
        %v3295 = vld [vmem:[#allocation3 + $0x558] sm:$0xff]
        %v3296 = vld [vmem:[#allocation3 + $0x560] sm:$0xff]
        %v3297 = vld [vmem:[#allocation3 + $0x568] sm:$0xff]
        %v3298 = vld [vmem:[#allocation3 + $0x570] sm:$0xff]
        %v3299 = vld [vmem:[#allocation3 + $0x578] sm:$0xff]
        %v3300 = vld [vmem:[#allocation3 + $0x580] sm:$0xff]
        %v3301 = vld [vmem:[#allocation3 + $0x588] sm:$0xff]
        %v3302 = vld [vmem:[#allocation3 + $0x590] sm:$0xff]
        %v3303 = vld [vmem:[#allocation3 + $0x598] sm:$0xff]
        %v3304 = vld [vmem:[#allocation3 + $0x5a0] sm:$0xff]
        %v3305 = vld [vmem:[#allocation3 + $0x5a8] sm:$0xff]
        %v3306 = vld [vmem:[#allocation3 + $0x5b0] sm:$0xff]
        %v3307 = vld [vmem:[#allocation3 + $0x5b8] sm:$0xff]
        %v3308 = vld [vmem:[#allocation3 + $0x5c0] sm:$0xff]
        %v3309 = vld [vmem:[#allocation3 + $0x5c8] sm:$0xff]
        %v3310 = vld [vmem:[#allocation3 + $0x5d0] sm:$0xff]
        %v3311 = vld [vmem:[#allocation3 + $0x5d8] sm:$0xff]
        %v3312 = vld [vmem:[#allocation3 + $0x5e0] sm:$0xff]
        %v3313 = vld [vmem:[#allocation3 + $0x5e8] sm:$0xff]
        %v3314 = vld [vmem:[#allocation3 + $0x5f0] sm:$0xff]
        %v3315 = vld [vmem:[#allocation3 + $0x5f8] sm:$0xff]
        %v3316 = vld [vmem:[#allocation3 + $0x600] sm:$0xff]
        %v3317 = vld [vmem:[#allocation3 + $0x608] sm:$0xff]
        %v3318 = vld [vmem:[#allocation3 + $0x610] sm:$0xff]
        %v3319 = vld [vmem:[#allocation3 + $0x618] sm:$0xff]
        %v3320 = vld [vmem:[#allocation3 + $0x620] sm:$0xff]
        %v3321 = vld [vmem:[#allocation3 + $0x628] sm:$0xff]
        %v3322 = vld [vmem:[#allocation3 + $0x630] sm:$0xff]
        %v3323 = vld [vmem:[#allocation3 + $0x638] sm:$0xff]
        %v3324 = vld [vmem:[#allocation3 + $0x640] sm:$0xff]
        %v3325 = vld [vmem:[#allocation3 + $0x648] sm:$0xff]
        %v3326 = vld [vmem:[#allocation3 + $0x650] sm:$0xff]
        %v3327 = vld [vmem:[#allocation3 + $0x658] sm:$0xff]
        %v3328 = vld [vmem:[#allocation3 + $0x660] sm:$0xff]
        %v3329 = vld [vmem:[#allocation3 + $0x668] sm:$0xff]
        %v3330 = vld [vmem:[#allocation3 + $0x670] sm:$0xff]
        %v3331 = vld [vmem:[#allocation3 + $0x678] sm:$0xff]
        %v3332 = vld [vmem:[#allocation3 + $0x680] sm:$0xff]
        %v3333 = vld [vmem:[#allocation3 + $0x688] sm:$0xff]
        %v3334 = vld [vmem:[#allocation3 + $0x690] sm:$0xff]
        %v3335 = vld [vmem:[#allocation3 + $0x698] sm:$0xff]
        %v3336 = vld [vmem:[#allocation3 + $0x6a0] sm:$0xff]
        %v3337 = vld [vmem:[#allocation3 + $0x6a8] sm:$0xff]
        %v3338 = vld [vmem:[#allocation3 + $0x6b0] sm:$0xff]
        %v3339 = vld [vmem:[#allocation3 + $0x6b8] sm:$0xff]
        %v3340 = vld [vmem:[#allocation3 + $0x6c0] sm:$0xff]
        %v3341 = vld [vmem:[#allocation3 + $0x6c8] sm:$0xff]
        %v3342 = vld [vmem:[#allocation3 + $0x6d0] sm:$0xff]
        %v3343 = vld [vmem:[#allocation3 + $0x6d8] sm:$0xff]
        %v3344 = vld [vmem:[#allocation3 + $0x6e0] sm:$0xff]
        %v3345 = vld [vmem:[#allocation3 + $0x6e8] sm:$0xff]
        %v3346 = vld [vmem:[#allocation3 + $0x6f0] sm:$0xff]
        %v3347 = vld [vmem:[#allocation3 + $0x6f8] sm:$0xff]
        %v3348 = vld [vmem:[#allocation3 + $0x700] sm:$0xff]
        %v3349 = vld [vmem:[#allocation3 + $0x708] sm:$0xff]
        %v3350 = vld [vmem:[#allocation3 + $0x710] sm:$0xff]
        %v3351 = vld [vmem:[#allocation3 + $0x718] sm:$0xff]
        %v3352 = vld [vmem:[#allocation3 + $0x720] sm:$0xff]
        %v3353 = vld [vmem:[#allocation3 + $0x728] sm:$0xff]
        %v3354 = vld [vmem:[#allocation3 + $0x730] sm:$0xff]
        %v3355 = vld [vmem:[#allocation3 + $0x738] sm:$0xff]
        %v3356 = vld [vmem:[#allocation3 + $0x740] sm:$0xff]
        %v3357 = vld [vmem:[#allocation3 + $0x748] sm:$0xff]
        %v3358 = vld [vmem:[#allocation3 + $0x750] sm:$0xff]
        %v3359 = vld [vmem:[#allocation3 + $0x758] sm:$0xff]
        %v3360 = vld [vmem:[#allocation3 + $0x760] sm:$0xff]
        %v3361 = vld [vmem:[#allocation3 + $0x768] sm:$0xff]
        %v3362 = vld [vmem:[#allocation3 + $0x770] sm:$0xff]
        %v3363 = vld [vmem:[#allocation3 + $0x778] sm:$0xff]
        %v3364 = vld [vmem:[#allocation3 + $0x780] sm:$0xff]
        %v3365 = vld [vmem:[#allocation3 + $0x788] sm:$0xff]
        %v3366 = vld [vmem:[#allocation3 + $0x790] sm:$0xff]
        %v3367 = vld [vmem:[#allocation3 + $0x798] sm:$0xff]
        %v3368 = vld [vmem:[#allocation3 + $0x7a0] sm:$0xff]
        %v3369 = vld [vmem:[#allocation3 + $0x7a8] sm:$0xff]
        %v3370 = vld [vmem:[#allocation3 + $0x7b0] sm:$0xff]
        %v3371 = vld [vmem:[#allocation3 + $0x7b8] sm:$0xff]
        %v3372 = vld [vmem:[#allocation3 + $0x7c0] sm:$0xff]
        %v3373 = vld [vmem:[#allocation3 + $0x7c8] sm:$0xff]
        %v3374 = vld [vmem:[#allocation3 + $0x7d0] sm:$0xff]
        %v3375 = vld [vmem:[#allocation3 + $0x7d8] sm:$0xff]
        %v3376 = vld [vmem:[#allocation3 + $0x7e0] sm:$0xff]
        %v3377 = vld [vmem:[#allocation3 + $0x7e8] sm:$0xff]
        %v3378 = vld [vmem:[#allocation3 + $0x7f0] sm:$0xff]
        %v3379 = vld [vmem:[#allocation3 + $0x7f8] sm:$0xff]
        %v3380 = vld [vmem:[#allocation3 + $0x800] sm:$0xff]
        %v3381 = vld [vmem:[#allocation3 + $0x808] sm:$0xff]
        %v3382 = vld [vmem:[#allocation3 + $0x810] sm:$0xff]
        %v3383 = vld [vmem:[#allocation3 + $0x818] sm:$0xff]
        %v3384 = vld [vmem:[#allocation3 + $0x820] sm:$0xff]
        %v3385 = vld [vmem:[#allocation3 + $0x828] sm:$0xff]
        %v3386 = vld [vmem:[#allocation3 + $0x830] sm:$0xff]
        %v3387 = vld [vmem:[#allocation3 + $0x838] sm:$0xff]
        %v3388 = vld [vmem:[#allocation3 + $0x840] sm:$0xff]
        %v3389 = vld [vmem:[#allocation3 + $0x848] sm:$0xff]
        %v3390 = vld [vmem:[#allocation3 + $0x850] sm:$0xff]
        %v3391 = vld [vmem:[#allocation3 + $0x858] sm:$0xff]
        %v3392 = vld [vmem:[#allocation3 + $0x860] sm:$0xff]
        %v3393 = vld [vmem:[#allocation3 + $0x868] sm:$0xff]
        %v3394 = vld [vmem:[#allocation3 + $0x870] sm:$0xff]
        %v3395 = vld [vmem:[#allocation3 + $0x878] sm:$0xff]
        %v3396 = vld [vmem:[#allocation3 + $0x880] sm:$0xff]
        %v3397 = vld [vmem:[#allocation3 + $0x888] sm:$0xff]
        %v3398 = vld [vmem:[#allocation3 + $0x890] sm:$0xff]
        %v3399 = vld [vmem:[#allocation3 + $0x898] sm:$0xff]
        %v3400 = vld [vmem:[#allocation3 + $0x8a0] sm:$0xff]
        %v3401 = vld [vmem:[#allocation3 + $0x8a8] sm:$0xff]
        %v3402 = vld [vmem:[#allocation3 + $0x8b0] sm:$0xff]
        %v3403 = vld [vmem:[#allocation3 + $0x8b8] sm:$0xff]
        %v3404 = vld [vmem:[#allocation3 + $0x8c0] sm:$0xff]
        %v3405 = vld [vmem:[#allocation3 + $0x8c8] sm:$0xff]
        %v3406 = vld [vmem:[#allocation3 + $0x8d0] sm:$0xff]
        %v3407 = vld [vmem:[#allocation3 + $0x8d8] sm:$0xff]
        %v3408 = vld [vmem:[#allocation3 + $0x8e0] sm:$0xff]
        %v3409 = vld [vmem:[#allocation3 + $0x8e8] sm:$0xff]
        %v3410 = vld [vmem:[#allocation3 + $0x8f0] sm:$0xff]
        %v3411 = vld [vmem:[#allocation3 + $0x8f8] sm:$0xff]
        %v3412 = vld [vmem:[#allocation10] sm:$0xff]
        %v3413 = vld [vmem:[#allocation10 + $0x8] sm:$0xff]
        %v3414 = vld [vmem:[#allocation10 + $0x10] sm:$0xff]
        %v3415 = vld [vmem:[#allocation10 + $0x18] sm:$0xff]
        %v3416 = vld [vmem:[#allocation10 + $0x20] sm:$0xff]
        %v3417 = vld [vmem:[#allocation10 + $0x28] sm:$0xff]
        %v3418 = vld [vmem:[#allocation10 + $0x30] sm:$0xff]
        %v3419 = vld [vmem:[#allocation10 + $0x38] sm:$0xff]
        %v3420 = vld [vmem:[#allocation10 + $0x40] sm:$0xff]
        %v3421 = vld [vmem:[#allocation10 + $0x48] sm:$0xff]
        %v3422 = vld [vmem:[#allocation10 + $0x50] sm:$0xff]
        %v3423 = vld [vmem:[#allocation10 + $0x58] sm:$0xff]
        %v3424 = vld [vmem:[#allocation10 + $0x60] sm:$0xff]
        %v3425 = vld [vmem:[#allocation10 + $0x68] sm:$0xff]
        %v3426 = vld [vmem:[#allocation10 + $0x70] sm:$0xff]
        %v3427 = vld [vmem:[#allocation10 + $0x78] sm:$0xff]
        %v3428 = vld [vmem:[#allocation10 + $0x80] sm:$0xff]
        %v3429 = vld [vmem:[#allocation10 + $0x88] sm:$0xff]
        %v3430 = vld [vmem:[#allocation10 + $0x90] sm:$0xff]
        %v3431 = vld [vmem:[#allocation10 + $0x98] sm:$0xff]
        %v3432 = vld [vmem:[#allocation10 + $0xa0] sm:$0xff]
        %v3433 = vld [vmem:[#allocation10 + $0xa8] sm:$0xff]
        %v3434 = vld [vmem:[#allocation10 + $0xb0] sm:$0xff]
        %v3435 = vld [vmem:[#allocation10 + $0xb8] sm:$0xff]
        %v3436 = vld [vmem:[#allocation10 + $0xc0] sm:$0xff]
        %v3437 = vld [vmem:[#allocation10 + $0xc8] sm:$0xff]
        %v3438 = vld [vmem:[#allocation10 + $0xd0] sm:$0xff]
        %v3439 = vld [vmem:[#allocation10 + $0xd8] sm:$0xff]
        %v3440 = vld [vmem:[#allocation10 + $0xe0] sm:$0xff]
        %v3441 = vld [vmem:[#allocation10 + $0xe8] sm:$0xff]
        %v3442 = vld [vmem:[#allocation10 + $0xf0] sm:$0xff]
        %v3443 = vld [vmem:[#allocation10 + $0xf8] sm:$0xff]
        %v3444 = vld [vmem:[#allocation10 + $0x100] sm:$0xff]
        %v3445 = vld [vmem:[#allocation10 + $0x108] sm:$0xff]
        %v3446 = vld [vmem:[#allocation10 + $0x110] sm:$0xff]
        %v3447 = vld [vmem:[#allocation10 + $0x118] sm:$0xff]
        %v3448 = vld [vmem:[#allocation10 + $0x120] sm:$0xff]
        %v3449 = vld [vmem:[#allocation10 + $0x128] sm:$0xff]
        %v3450 = vld [vmem:[#allocation10 + $0x130] sm:$0xff]
        %v3451 = vld [vmem:[#allocation10 + $0x138] sm:$0xff]
        %v3452 = vld [vmem:[#allocation10 + $0x140] sm:$0xff]
        %v3453 = vld [vmem:[#allocation10 + $0x148] sm:$0xff]
        %v3454 = vld [vmem:[#allocation10 + $0x150] sm:$0xff]
        %v3455 = vld [vmem:[#allocation10 + $0x158] sm:$0xff]
        %v3456 = vld [vmem:[#allocation10 + $0x160] sm:$0xff]
        %v3457 = vld [vmem:[#allocation10 + $0x168] sm:$0xff]
        %v3458 = vld [vmem:[#allocation10 + $0x170] sm:$0xff]
        %v3459 = vld [vmem:[#allocation10 + $0x178] sm:$0xff]
        %v3460 = vld [vmem:[#allocation10 + $0x180] sm:$0xff]
        %v3461 = vld [vmem:[#allocation10 + $0x188] sm:$0xff]
        %v3462 = vld [vmem:[#allocation10 + $0x190] sm:$0xff]
        %v3463 = vld [vmem:[#allocation10 + $0x198] sm:$0xff]
        %v3464 = vld [vmem:[#allocation10 + $0x1a0] sm:$0xff]
        %v3465 = vld [vmem:[#allocation10 + $0x1a8] sm:$0xff]
        %v3466 = vld [vmem:[#allocation10 + $0x1b0] sm:$0xff]
        %v3467 = vld [vmem:[#allocation10 + $0x1b8] sm:$0xff]
        %v3468 = vld [vmem:[#allocation10 + $0x1c0] sm:$0xff]
        %v3469 = vld [vmem:[#allocation10 + $0x1c8] sm:$0xff]
        %v3470 = vld [vmem:[#allocation10 + $0x1d0] sm:$0xff]
        %v3471 = vld [vmem:[#allocation10 + $0x1d8] sm:$0xff]
        %v3472 = vld [vmem:[#allocation10 + $0x1e0] sm:$0xff]
        %v3473 = vld [vmem:[#allocation10 + $0x1e8] sm:$0xff]
        %v3474 = vld [vmem:[#allocation10 + $0x1f0] sm:$0xff]
        %v3475 = vld [vmem:[#allocation10 + $0x1f8] sm:$0xff]
        %v3476 = vld [vmem:[#allocation10 + $0x200] sm:$0xff]
        %v3477 = vld [vmem:[#allocation10 + $0x208] sm:$0xff]
        %v3478 = vld [vmem:[#allocation10 + $0x210] sm:$0xff]
        %v3479 = vld [vmem:[#allocation10 + $0x218] sm:$0xff]
        %v3480 = vld [vmem:[#allocation10 + $0x220] sm:$0xff]
        %v3481 = vld [vmem:[#allocation10 + $0x228] sm:$0xff]
        %v3482 = vld [vmem:[#allocation10 + $0x230] sm:$0xff]
        %v3483 = vld [vmem:[#allocation10 + $0x238] sm:$0xff]
        %v3484 = vld [vmem:[#allocation10 + $0x240] sm:$0xff]
        %v3485 = vld [vmem:[#allocation10 + $0x248] sm:$0xff]
        %v3486 = vld [vmem:[#allocation10 + $0x250] sm:$0xff]
        %v3487 = vld [vmem:[#allocation10 + $0x258] sm:$0xff]
        %v3488 = vld [vmem:[#allocation10 + $0x260] sm:$0xff]
        %v3489 = vld [vmem:[#allocation10 + $0x268] sm:$0xff]
        %v3490 = vld [vmem:[#allocation10 + $0x270] sm:$0xff]
        %v3491 = vld [vmem:[#allocation10 + $0x278] sm:$0xff]
        %v3492 = vld [vmem:[#allocation10 + $0x280] sm:$0xff]
        %v3493 = vld [vmem:[#allocation10 + $0x288] sm:$0xff]
        %v3494 = vld [vmem:[#allocation10 + $0x290] sm:$0xff]
        %v3495 = vld [vmem:[#allocation10 + $0x298] sm:$0xff]
        %v3496 = vld [vmem:[#allocation10 + $0x2a0] sm:$0xff]
        %v3497 = vld [vmem:[#allocation10 + $0x2a8] sm:$0xff]
        %v3498 = vld [vmem:[#allocation10 + $0x2b0] sm:$0xff]
        %v3499 = vld [vmem:[#allocation10 + $0x2b8] sm:$0xff]
        %v3500 = vld [vmem:[#allocation10 + $0x2c0] sm:$0xff]
        %v3501 = vld [vmem:[#allocation10 + $0x2c8] sm:$0xff]
        %v3502 = vld [vmem:[#allocation10 + $0x2d0] sm:$0xff]
        %v3503 = vld [vmem:[#allocation10 + $0x2d8] sm:$0xff]
        %v3504 = vld [vmem:[#allocation10 + $0x2e0] sm:$0xff]
        %v3505 = vld [vmem:[#allocation10 + $0x2e8] sm:$0xff]
        %v3506 = vld [vmem:[#allocation10 + $0x2f0] sm:$0xff]
        %v3507 = vld [vmem:[#allocation10 + $0x2f8] sm:$0xff]
        %v3508 = vld [vmem:[#allocation10 + $0x300] sm:$0xff]
        %v3509 = vld [vmem:[#allocation10 + $0x308] sm:$0xff]
        %v3510 = vld [vmem:[#allocation10 + $0x310] sm:$0xff]
        %v3511 = vld [vmem:[#allocation10 + $0x318] sm:$0xff]
        %v3512 = vld [vmem:[#allocation10 + $0x320] sm:$0xff]
        %v3513 = vld [vmem:[#allocation10 + $0x328] sm:$0xff]
        %v3514 = vld [vmem:[#allocation10 + $0x330] sm:$0xff]
        %v3515 = vld [vmem:[#allocation10 + $0x338] sm:$0xff]
        %v3516 = vld [vmem:[#allocation10 + $0x340] sm:$0xff]
        %v3517 = vld [vmem:[#allocation10 + $0x348] sm:$0xff]
        %v3518 = vld [vmem:[#allocation10 + $0x350] sm:$0xff]
        %v3519 = vld [vmem:[#allocation10 + $0x358] sm:$0xff]
        %v3520 = vld [vmem:[#allocation10 + $0x360] sm:$0xff]
        %v3521 = vld [vmem:[#allocation10 + $0x368] sm:$0xff]
        %v3522 = vld [vmem:[#allocation10 + $0x370] sm:$0xff]
        %v3523 = vld [vmem:[#allocation10 + $0x378] sm:$0xff]
        %v3524 = vld [vmem:[#allocation10 + $0x380] sm:$0xff]
        %v3525 = vld [vmem:[#allocation10 + $0x388] sm:$0xff]
        %v3526 = vld [vmem:[#allocation10 + $0x390] sm:$0xff]
        %v3527 = vld [vmem:[#allocation10 + $0x398] sm:$0xff]
        %v3528 = vld [vmem:[#allocation10 + $0x3a0] sm:$0xff]
        %v3529 = vld [vmem:[#allocation10 + $0x3a8] sm:$0xff]
        %v3530 = vld [vmem:[#allocation10 + $0x3b0] sm:$0xff]
        %v3531 = vld [vmem:[#allocation10 + $0x3b8] sm:$0xff]
        %v3532 = vld [vmem:[#allocation10 + $0x3c0] sm:$0xff]
        %v3533 = vld [vmem:[#allocation10 + $0x3c8] sm:$0xff]
        %v3534 = vld [vmem:[#allocation10 + $0x3d0] sm:$0xff]
        %v3535 = vld [vmem:[#allocation10 + $0x3d8] sm:$0xff]
        %v3536 = vld [vmem:[#allocation10 + $0x3e0] sm:$0xff]
        %v3537 = vld [vmem:[#allocation10 + $0x3e8] sm:$0xff]
        %v3538 = vld [vmem:[#allocation10 + $0x3f0] sm:$0xff]
        %v3539 = vld [vmem:[#allocation10 + $0x3f8] sm:$0xff]
        %v3540 = vld [vmem:[#allocation10 + $0x400] sm:$0xff]
        %v3541 = vld [vmem:[#allocation10 + $0x408] sm:$0xff]
        %v3542 = vld [vmem:[#allocation10 + $0x410] sm:$0xff]
        %v3543 = vld [vmem:[#allocation10 + $0x418] sm:$0xff]
        %v3544 = vld [vmem:[#allocation10 + $0x420] sm:$0xff]
        %v3545 = vld [vmem:[#allocation10 + $0x428] sm:$0xff]
        %v3546 = vld [vmem:[#allocation10 + $0x430] sm:$0xff]
        %v3547 = vld [vmem:[#allocation10 + $0x438] sm:$0xff]
        %v3548 = vld [vmem:[#allocation10 + $0x440] sm:$0xff]
        %v3549 = vld [vmem:[#allocation10 + $0x448] sm:$0xff]
        %v3550 = vld [vmem:[#allocation10 + $0x450] sm:$0xff]
        %v3551 = vld [vmem:[#allocation10 + $0x458] sm:$0xff]
        %v3552 = vld [vmem:[#allocation10 + $0x460] sm:$0xff]
        %v3553 = vld [vmem:[#allocation10 + $0x468] sm:$0xff]
        %v3554 = vld [vmem:[#allocation10 + $0x470] sm:$0xff]
        %v3555 = vld [vmem:[#allocation10 + $0x478] sm:$0xff]
        %v3556 = vld [vmem:[%s489 + $0x1] sm:$0xff]
        %v3557 = vld [vmem:[%s489 + $0x9] sm:$0xff]
        %v3558 = vld [vmem:[%s489 + $0x19] sm:$0xff]
        %v3559 = vld [vmem:[%s489 + $0x21] sm:$0xff]
        %v3560 = vld [vmem:[%s489 + $0x31] sm:$0xff]
        %v3561 = vld [vmem:[%s489 + $0x39] sm:$0xff]
        %v3562 = vld [vmem:[%s489 + $0x49] sm:$0xff]
        %v3563 = vld [vmem:[%s489 + $0x51] sm:$0xff]
        %v3564 = vld [vmem:[%s489 + $0x61] sm:$0xff]
        %v3565 = vld [vmem:[%s489 + $0x69] sm:$0xff]
        %v3566 = vld [vmem:[%s489 + $0x79] sm:$0xff]
        %v3567 = vld [vmem:[%s489 + $0x81] sm:$0xff]
        %v3568 = vld [vmem:[%s489 + $0x91] sm:$0xff]
        %v3569 = vld [vmem:[%s489 + $0x99] sm:$0xff]
        %v3570 = vld [vmem:[%s489 + $0xa9] sm:$0xff]
        %v3571 = vld [vmem:[%s489 + $0xb1] sm:$0xff]
        %v3572 = vld [vmem:[%s489 + $0xc1] sm:$0xff]
        %v3573 = vld [vmem:[%s489 + $0xc9] sm:$0xff]
        %v3574 = vld [vmem:[%s489 + $0xd9] sm:$0xff]
        %v3575 = vld [vmem:[%s489 + $0xe1] sm:$0xff]
        %v3576 = vld [vmem:[%s489 + $0xf1] sm:$0xff]
        %v3577 = vld [vmem:[%s489 + $0xf9] sm:$0xff]
        %v3578 = vld [vmem:[%s489 + $0x109] sm:$0xff]
        %v3579 = vld [vmem:[%s489 + $0x111] sm:$0xff]
        %v3580 = vld [vmem:[%s489 + $0x121] sm:$0xff]
        %v3581 = vld [vmem:[%s489 + $0x129] sm:$0xff]
        %v3582 = vld [vmem:[%s489 + $0x139] sm:$0xff]
        %v3583 = vld [vmem:[%s489 + $0x141] sm:$0xff]
        %v3584 = vld [vmem:[%s489 + $0x151] sm:$0xff]
        %v3585 = vld [vmem:[%s489 + $0x159] sm:$0xff]
        %v3586 = vld [vmem:[%s489 + $0x169] sm:$0xff]
        %v3587 = vld [vmem:[%s489 + $0x171] sm:$0xff]
        %v3588 = vld [vmem:[#allocation12] sm:$0x1]
        %v3590 = vlaneseq
        %v3591 = vshrl.u32 %v3590, 7
        %v3592 = vsub.s32 0, %v3591
        %v3593 = vrot.slane %v3588, %v3592
        %3595 = vmatprep.subr.mxu0 0.0
        %3596 = vmatpush1.msra.mxu0 %v3412
        %3597 = vmatprep.subr.mxu0 0.0
        %3598 = vmatpush1.msra.mxu0 %v3413
        %3599 = vmatprep.subr.mxu0 0.0
        %3600 = vmatpush1.msra.mxu0 %v3414
        %3601 = vmatprep.subr.mxu0 0.0
        %3602 = vmatpush1.msra.mxu0 %v3415
        %3603 = vmatprep.subr.mxu0 0.0
        %3604 = vmatpush1.msra.mxu0 %v3416
        %3605 = vmatprep.subr.mxu0 0.0
        %3606 = vmatpush1.msra.mxu0 %v3417
        %3607 = vmatprep.subr.mxu0 0.0
        %3608 = vmatpush1.msra.mxu0 %v3418
        %3609 = vmatprep.subr.mxu0 0.0
        %3610 = vmatpush1.msra.mxu0 %v3419
        %3611 = vmatprep.subr.mxu0 0.0
        %3612 = vmatpush1.msra.mxu0 %v3420
        %3613 = vmatprep.subr.mxu0 0.0
        %3614 = vmatpush1.msra.mxu0 %v3421
        %3615 = vmatprep.subr.mxu0 0.0
        %3616 = vmatpush1.msra.mxu0 %v3422
        %3617 = vmatprep.subr.mxu0 0.0
        %3618 = vmatpush1.msra.mxu0 %v3423
        %3619 = vmatprep.subr.mxu0 0.0
        %3620 = vmatpush1.msra.mxu0 %v3424
        %3621 = vmatprep.subr.mxu0 0.0
        %3622 = vmatpush1.msra.mxu0 %v3425
        %3623 = vmatprep.subr.mxu0 0.0
        %3624 = vmatpush1.msra.mxu0 %v3426
        %3625 = vmatprep.subr.mxu0 0.0
        %3626 = vmatpush1.msra.mxu0 %v3427
        %3627 = vmatprep.subr.mxu0 0.0
        %3628 = vmatpush1.msra.mxu0 %v3428
        %3629 = vmatprep.subr.mxu0 0.0
        %3630 = vmatpush1.msra.mxu0 %v3429
        %3631 = vmatprep.subr.mxu0 0.0
        %3632 = vmatpush1.msra.mxu0 %v3430
        %3633 = vmatprep.subr.mxu0 0.0
        %3634 = vmatpush1.msra.mxu0 %v3431
        %3635 = vmatprep.subr.mxu0 0.0
        %3636 = vmatpush1.msra.mxu0 %v3432
        %3637 = vmatprep.subr.mxu0 0.0
        %3638 = vmatpush1.msra.mxu0 %v3433
        %3639 = vmatprep.subr.mxu0 0.0
        %3640 = vmatpush1.msra.mxu0 %v3434
        %3641 = vmatprep.subr.mxu0 0.0
        %3642 = vmatpush1.msra.mxu0 %v3435
        %3643 = vmatprep.subr.mxu0 0.0
        %3644 = vmatpush1.msra.mxu0 %v3436
        %3645 = vmatprep.subr.mxu0 0.0
        %3646 = vmatpush1.msra.mxu0 %v3437
        %3647 = vmatprep.subr.mxu0 0.0
        %3648 = vmatpush1.msra.mxu0 %v3438
        %3649 = vmatprep.subr.mxu0 0.0
        %3650 = vmatpush1.msra.mxu0 %v3439
        %3651 = vmatprep.subr.mxu0 0.0
        %3652 = vmatpush1.msra.mxu0 %v3440
        %3653 = vmatprep.subr.mxu0 0.0
        %3654 = vmatpush1.msra.mxu0 %v3441
        %3655 = vmatprep.subr.mxu0 0.0
        %3656 = vmatpush1.msra.mxu0 %v3442
        %3657 = vmatprep.subr.mxu0 0.0
        %3658 = vmatpush1.msra.mxu0 %v3443
        %3659 = vmatprep.mubr.f32.mxu0 %v3125
        %3660 = vmatmul.mubr.f32.gmra.mrb[0].mxu0 %v3124
        %v3661 = vpop.f32.mrb[0].mxu0
        %v3662 = vadd.f32 %v3593, %v3661
        %v3663 = vpop.f32.mrb[0].mxu0
        %3664 = vmatprep.mubr.f32.mxu0 %v3134
        %3665 = vmatmul.mubr.f32.gmra.mrb[0].mxu0 %v3133
        %v3666 = vpop.f32.mrb[0].mxu0
        %v3667 = vadd.f32 %v3593, %v3666
        %v3668 = vpop.f32.mrb[0].mxu0
        %3669 = vmatprep.mubr.f32.mxu0 %v3143
        %3670 = vmatmul.mubr.f32.gmra.mrb[0].mxu0 %v3142
        %v3671 = vpop.f32.mrb[0].mxu0
        %v3672 = vadd.f32 %v3593, %v3671
        %v3673 = vpop.f32.mrb[0].mxu0
        %3674 = vmatprep.mubr.f32.mxu0 %v3152
        %3675 = vmatmul.mubr.f32.gmra.mrb[0].mxu0 %v3151
        %v3676 = vpop.f32.mrb[0].mxu0
        %v3677 = vadd.f32 %v3593, %v3676
        %v3678 = vpop.f32.mrb[0].mxu0
        %3679 = vmatprep.mubr.f32.mxu0 %v3161
        %3680 = vmatmul.mubr.f32.gmra.mrb[0].mxu0 %v3160
        %v3681 = vpop.f32.mrb[0].mxu0
        %v3682 = vadd.f32 %v3593, %v3681
        %v3683 = vpop.f32.mrb[0].mxu0
        %3684 = vmatprep.mubr.f32.mxu0 %v3170
        %3685 = vmatmul.mubr.f32.gmra.mrb[0].mxu0 %v3169
        %v3686 = vpop.f32.mrb[0].mxu0
        %v3687 = vadd.f32 %v3593, %v3686
        %v3688 = vpop.f32.mrb[0].mxu0
        %3689 = vmatprep.mubr.f32.mxu0 %v3179
        %3690 = vmatmul.mubr.f32.gmra.mrb[0].mxu0 %v3178
        %v3691 = vpop.f32.mrb[0].mxu0
        %v3692 = vadd.f32 %v3593, %v3691
        %v3693 = vpop.f32.mrb[0].mxu0
        %3694 = vmatprep.mubr.f32.mxu0 %v3188
        %3695 = vmatmul.mubr.f32.gmra.mrb[0].mxu0 %v3187
        %v3696 = vpop.f32.mrb[0].mxu0
        %v3697 = vadd.f32 %v3593, %v3696
        %v3698 = vpop.f32.mrb[0].mxu0
        %3699 = vmatprep.mubr.f32.mxu0 %v3197
        %3700 = vmatmul.mubr.f32.gmra.mrb[0].mxu0 %v3196
        %v3701 = vpop.f32.mrb[0].mxu0
        %v3702 = vadd.f32 %v3593, %v3701
        %v3703 = vpop.f32.mrb[0].mxu0
        %3704 = vmatprep.mubr.f32.mxu0 %v3206
        %3705 = vmatmul.mubr.f32.gmra.mrb[0].mxu0 %v3205
        %v3706 = vpop.f32.mrb[0].mxu0
        %v3707 = vadd.f32 %v3593, %v3706
        %v3708 = vpop.f32.mrb[0].mxu0
        %3709 = vmatprep.mubr.f32.mxu0 %v3215
        %3710 = vmatmul.mubr.f32.gmra.mrb[0].mxu0 %v3214
        %v3711 = vpop.f32.mrb[0].mxu0
        %v3712 = vadd.f32 %v3593, %v3711
        %v3713 = vpop.f32.mrb[0].mxu0
        %3714 = vmatprep.mubr.f32.mxu0 %v3224
        %3715 = vmatmul.mubr.f32.gmra.mrb[0].mxu0 %v3223
        %v3716 = vpop.f32.mrb[0].mxu0
        %v3717 = vadd.f32 %v3593, %v3716
        %v3718 = vpop.f32.mrb[0].mxu0
        %3719 = vmatprep.mubr.f32.mxu0 %v3233
        %3720 = vmatmul.mubr.f32.gmra.mrb[0].mxu0 %v3232
        %v3721 = vpop.f32.mrb[0].mxu0
        %v3722 = vadd.f32 %v3593, %v3721
        %v3723 = vpop.f32.mrb[0].mxu0
        %3724 = vmatprep.mubr.f32.mxu0 %v3242
        %3725 = vmatmul.mubr.f32.gmra.mrb[0].mxu0 %v3241
        %v3726 = vpop.f32.mrb[0].mxu0
        %v3727 = vadd.f32 %v3593, %v3726
        %v3728 = vpop.f32.mrb[0].mxu0
        %3729 = vmatprep.mubr.f32.mxu0 %v3251
        %3730 = vmatmul.mubr.f32.gmra.mrb[0].mxu0 %v3250
        %v3731 = vpop.f32.mrb[0].mxu0
        %v3732 = vadd.f32 %v3593, %v3731
        %v3733 = vpop.f32.mrb[0].mxu0
        %3734 = vmatprep.mubr.f32.mxu0 %v3260
        %3735 = vmatmul.mubr.f32.gmra.mrb[0].mxu0 %v3259
        %v3736 = vpop.f32.mrb[0].mxu0
        %v3737 = vadd.f32 %v3593, %v3736
        %v3738 = vpop.f32.mrb[0].mxu0
        %3739 = vmatprep.mubr.f32.mxu0 %v3269
        %3740 = vmatmul.mubr.f32.gmra.mrb[0].mxu0 %v3268
        %v3741 = vpop.f32.mrb[0].mxu0
        %v3742 = vadd.f32 %v3593, %v3741
        %v3743 = vpop.f32.mrb[0].mxu0
        %3744 = vmatprep.mubr.f32.mxu0 %v3278
        %3745 = vmatmul.mubr.f32.gmra.mrb[0].mxu0 %v3277
        %v3746 = vpop.f32.mrb[0].mxu0
        %v3747 = vadd.f32 %v3593, %v3746
        %v3748 = vpop.f32.mrb[0].mxu0
        %3749 = vmatprep.mubr.f32.mxu0 %v3287
        %3750 = vmatmul.mubr.f32.gmra.mrb[0].mxu0 %v3286
        %v3751 = vpop.f32.mrb[0].mxu0
        %v3752 = vadd.f32 %v3593, %v3751
        %v3753 = vpop.f32.mrb[0].mxu0
        %3754 = vmatprep.mubr.f32.mxu0 %v3296
        %3755 = vmatmul.mubr.f32.gmra.mrb[0].mxu0 %v3295
        %v3756 = vpop.f32.mrb[0].mxu0
        %v3757 = vadd.f32 %v3593, %v3756
        %v3758 = vpop.f32.mrb[0].mxu0
        %3759 = vmatprep.mubr.f32.mxu0 %v3305
        %3760 = vmatmul.mubr.f32.gmra.mrb[0].mxu0 %v3304
        %v3761 = vpop.f32.mrb[0].mxu0
        %v3762 = vadd.f32 %v3593, %v3761
        %v3763 = vpop.f32.mrb[0].mxu0
        %3764 = vmatprep.mubr.f32.mxu0 %v3314
        %3765 = vmatmul.mubr.f32.gmra.mrb[0].mxu0 %v3313
        %v3766 = vpop.f32.mrb[0].mxu0
        %v3767 = vadd.f32 %v3593, %v3766
        %v3768 = vpop.f32.mrb[0].mxu0
        %3769 = vmatprep.mubr.f32.mxu0 %v3323
        %3770 = vmatmul.mubr.f32.gmra.mrb[0].mxu0 %v3322
        %v3771 = vpop.f32.mrb[0].mxu0
        %v3772 = vadd.f32 %v3593, %v3771
        %v3773 = vpop.f32.mrb[0].mxu0
        %3774 = vmatprep.mubr.f32.mxu0 %v3332
        %3775 = vmatmul.mubr.f32.gmra.mrb[0].mxu0 %v3331
        %v3776 = vpop.f32.mrb[0].mxu0
        %v3777 = vadd.f32 %v3593, %v3776
        %v3778 = vpop.f32.mrb[0].mxu0
        %3779 = vmatprep.mubr.f32.mxu0 %v3341
        %3780 = vmatmul.mubr.f32.gmra.mrb[0].mxu0 %v3340
        %v3781 = vpop.f32.mrb[0].mxu0
        %v3782 = vadd.f32 %v3593, %v3781
        %v3783 = vpop.f32.mrb[0].mxu0
        %3784 = vmatprep.mubr.f32.mxu0 %v3350
        %3785 = vmatmul.mubr.f32.gmra.mrb[0].mxu0 %v3349
        %v3786 = vpop.f32.mrb[0].mxu0
        %v3787 = vadd.f32 %v3593, %v3786
        %v3788 = vpop.f32.mrb[0].mxu0
        %3789 = vmatprep.mubr.f32.mxu0 %v3359
        %3790 = vmatmul.mubr.f32.gmra.mrb[0].mxu0 %v3358
        %v3791 = vpop.f32.mrb[0].mxu0
        %v3792 = vadd.f32 %v3593, %v3791
        %v3793 = vpop.f32.mrb[0].mxu0
        %3794 = vmatprep.mubr.f32.mxu0 %v3368
        %3795 = vmatmul.mubr.f32.gmra.mrb[0].mxu0 %v3367
        %v3796 = vpop.f32.mrb[0].mxu0
        %v3797 = vadd.f32 %v3593, %v3796
        %v3798 = vpop.f32.mrb[0].mxu0
        %3799 = vmatprep.mubr.f32.mxu0 %v3377
        %3800 = vmatmul.mubr.f32.gmra.mrb[0].mxu0 %v3376
        %v3801 = vpop.f32.mrb[0].mxu0
        %v3802 = vadd.f32 %v3593, %v3801
        %v3803 = vpop.f32.mrb[0].mxu0
        %3804 = vmatprep.mubr.f32.mxu0 %v3386
        %3805 = vmatmul.mubr.f32.gmra.mrb[0].mxu0 %v3385
        %v3806 = vpop.f32.mrb[0].mxu0
        %v3807 = vadd.f32 %v3593, %v3806
        %v3808 = vpop.f32.mrb[0].mxu0
        %3809 = vmatprep.mubr.f32.mxu0 %v3395
        %3810 = vmatmul.mubr.f32.gmra.mrb[0].mxu0 %v3394
        %v3811 = vpop.f32.mrb[0].mxu0
        %v3812 = vadd.f32 %v3593, %v3811
        %v3813 = vpop.f32.mrb[0].mxu0
        %3814 = vmatprep.mubr.f32.mxu0 %v3404
        %3815 = vmatmul.mubr.f32.gmra.mrb[0].mxu0 %v3403
        %v3816 = vpop.f32.mrb[0].mxu0
        %v3817 = vadd.f32 %v3593, %v3816
        %v3818 = vpop.f32.mrb[0].mxu0
        %3819 = vdwg.mxu0
        %3820 = vmatprep.subr.mxu0 0.0
        %3821 = vmatpush1.msra.mxu0 %v3444
        %3822 = vmatprep.subr.mxu0 0.0
        %3823 = vmatpush1.msra.mxu0 %v3445
        %3824 = vmatprep.subr.mxu0 0.0
        %3825 = vmatpush1.msra.mxu0 %v3446
        %3826 = vmatprep.subr.mxu0 0.0
        %3827 = vmatpush1.msra.mxu0 %v3447
        %3828 = vmatprep.subr.mxu0 0.0
        %3829 = vmatpush1.msra.mxu0 %v3448
        %3830 = vmatprep.subr.mxu0 0.0
        %3831 = vmatpush1.msra.mxu0 %v3449
        %3832 = vmatprep.subr.mxu0 0.0
        %3833 = vmatpush1.msra.mxu0 %v3450
        %3834 = vmatprep.subr.mxu0 0.0
        %3835 = vmatpush1.msra.mxu0 %v3451
        %3836 = vmatprep.subr.mxu0 0.0
        %3837 = vmatpush1.msra.mxu0 %v3452
        %3838 = vmatprep.subr.mxu0 0.0
        %3839 = vmatpush1.msra.mxu0 %v3453
        %3840 = vmatprep.subr.mxu0 0.0
        %3841 = vmatpush1.msra.mxu0 %v3454
        %3842 = vmatprep.subr.mxu0 0.0
        %3843 = vmatpush1.msra.mxu0 %v3455
        %3844 = vmatprep.subr.mxu0 0.0
        %3845 = vmatpush1.msra.mxu0 %v3456
        %3846 = vmatprep.subr.mxu0 0.0
        %3847 = vmatpush1.msra.mxu0 %v3457
        %3848 = vmatprep.subr.mxu0 0.0
        %3849 = vmatpush1.msra.mxu0 %v3458
        %3850 = vmatprep.subr.mxu0 0.0
        %3851 = vmatpush1.msra.mxu0 %v3459
        %3852 = vmatprep.subr.mxu0 0.0
        %3853 = vmatpush1.msra.mxu0 %v3460
        %3854 = vmatprep.subr.mxu0 0.0
        %3855 = vmatpush1.msra.mxu0 %v3461
        %3856 = vmatprep.subr.mxu0 0.0
        %3857 = vmatpush1.msra.mxu0 %v3462
        %3858 = vmatprep.subr.mxu0 0.0
        %3859 = vmatpush1.msra.mxu0 %v3463
        %3860 = vmatprep.subr.mxu0 0.0
        %3861 = vmatpush1.msra.mxu0 %v3464
        %3862 = vmatprep.subr.mxu0 0.0
        %3863 = vmatpush1.msra.mxu0 %v3465
        %3864 = vmatprep.subr.mxu0 0.0
        %3865 = vmatpush1.msra.mxu0 %v3466
        %3866 = vmatprep.subr.mxu0 0.0
        %3867 = vmatpush1.msra.mxu0 %v3467
        %3868 = vmatprep.subr.mxu0 0.0
        %3869 = vmatpush1.msra.mxu0 %v3468
        %3870 = vmatprep.subr.mxu0 0.0
        %3871 = vmatpush1.msra.mxu0 %v3469
        %3872 = vmatprep.subr.mxu0 0.0
        %3873 = vmatpush1.msra.mxu0 %v3470
        %3874 = vmatprep.subr.mxu0 0.0
        %3875 = vmatpush1.msra.mxu0 %v3471
        %3876 = vmatprep.subr.mxu0 0.0
        %3877 = vmatpush1.msra.mxu0 %v3472
        %3878 = vmatprep.subr.mxu0 0.0
        %3879 = vmatpush1.msra.mxu0 %v3473
        %3880 = vmatprep.subr.mxu0 0.0
        %3881 = vmatpush1.msra.mxu0 %v3474
        %3882 = vmatprep.subr.mxu0 0.0
        %3883 = vmatpush1.msra.mxu0 %v3475
        %3884 = vmatprep.mubr.f32.mxu0 %v3127
        %3885 = vmatmul.mubr.f32.gmra.mrb[0].mxu0 %v3126
        %v3886 = vpop.f32.mrb[0].mxu0
        %v3887 = vadd.f32 %v3662, %v3886
        %v3888 = vpop.f32.mrb[0].mxu0
        %3889 = vmatprep.mubr.f32.mxu0 %v3136
        %3890 = vmatmul.mubr.f32.gmra.mrb[0].mxu0 %v3135
        %v3891 = vpop.f32.mrb[0].mxu0
        %v3892 = vadd.f32 %v3667, %v3891
        %v3893 = vpop.f32.mrb[0].mxu0
        %3894 = vmatprep.mubr.f32.mxu0 %v3145
        %3895 = vmatmul.mubr.f32.gmra.mrb[0].mxu0 %v3144
        %v3896 = vpop.f32.mrb[0].mxu0
        %v3897 = vadd.f32 %v3672, %v3896
        %v3898 = vpop.f32.mrb[0].mxu0
        %3899 = vmatprep.mubr.f32.mxu0 %v3154
        %3900 = vmatmul.mubr.f32.gmra.mrb[0].mxu0 %v3153
        %v3901 = vpop.f32.mrb[0].mxu0
        %v3902 = vadd.f32 %v3677, %v3901
        %v3903 = vpop.f32.mrb[0].mxu0
        %3904 = vmatprep.mubr.f32.mxu0 %v3163
        %3905 = vmatmul.mubr.f32.gmra.mrb[0].mxu0 %v3162
        %v3906 = vpop.f32.mrb[0].mxu0
        %v3907 = vadd.f32 %v3682, %v3906
        %v3908 = vpop.f32.mrb[0].mxu0
        %3909 = vmatprep.mubr.f32.mxu0 %v3172
        %3910 = vmatmul.mubr.f32.gmra.mrb[0].mxu0 %v3171
        %v3911 = vpop.f32.mrb[0].mxu0
        %v3912 = vadd.f32 %v3687, %v3911
        %v3913 = vpop.f32.mrb[0].mxu0
        %3914 = vmatprep.mubr.f32.mxu0 %v3181
        %3915 = vmatmul.mubr.f32.gmra.mrb[0].mxu0 %v3180
        %v3916 = vpop.f32.mrb[0].mxu0
        %v3917 = vadd.f32 %v3692, %v3916
        %v3918 = vpop.f32.mrb[0].mxu0
        %3919 = vmatprep.mubr.f32.mxu0 %v3190
        %3920 = vmatmul.mubr.f32.gmra.mrb[0].mxu0 %v3189
        %v3921 = vpop.f32.mrb[0].mxu0
        %v3922 = vadd.f32 %v3697, %v3921
        %v3923 = vpop.f32.mrb[0].mxu0
        %3924 = vmatprep.mubr.f32.mxu0 %v3199
        %3925 = vmatmul.mubr.f32.gmra.mrb[0].mxu0 %v3198
        %v3926 = vpop.f32.mrb[0].mxu0
        %v3927 = vadd.f32 %v3702, %v3926
        %v3928 = vpop.f32.mrb[0].mxu0
        %3929 = vmatprep.mubr.f32.mxu0 %v3208
        %3930 = vmatmul.mubr.f32.gmra.mrb[0].mxu0 %v3207
        %v3931 = vpop.f32.mrb[0].mxu0
        %v3932 = vadd.f32 %v3707, %v3931
        %v3933 = vpop.f32.mrb[0].mxu0
        %3934 = vmatprep.mubr.f32.mxu0 %v3217
        %3935 = vmatmul.mubr.f32.gmra.mrb[0].mxu0 %v3216
        %v3936 = vpop.f32.mrb[0].mxu0
        %v3937 = vadd.f32 %v3712, %v3936
        %v3938 = vpop.f32.mrb[0].mxu0
        %3939 = vmatprep.mubr.f32.mxu0 %v3226
        %3940 = vmatmul.mubr.f32.gmra.mrb[0].mxu0 %v3225
        %v3941 = vpop.f32.mrb[0].mxu0
        %v3942 = vadd.f32 %v3717, %v3941
        %v3943 = vpop.f32.mrb[0].mxu0
        %3944 = vmatprep.mubr.f32.mxu0 %v3235
        %3945 = vmatmul.mubr.f32.gmra.mrb[0].mxu0 %v3234
        %v3946 = vpop.f32.mrb[0].mxu0
        %v3947 = vadd.f32 %v3722, %v3946
        %v3948 = vpop.f32.mrb[0].mxu0
        %3949 = vmatprep.mubr.f32.mxu0 %v3244
        %3950 = vmatmul.mubr.f32.gmra.mrb[0].mxu0 %v3243
        %v3951 = vpop.f32.mrb[0].mxu0
        %v3952 = vadd.f32 %v3727, %v3951
        %v3953 = vpop.f32.mrb[0].mxu0
        %3954 = vmatprep.mubr.f32.mxu0 %v3253
        %3955 = vmatmul.mubr.f32.gmra.mrb[0].mxu0 %v3252
        %v3956 = vpop.f32.mrb[0].mxu0
        %v3957 = vadd.f32 %v3732, %v3956
        %v3958 = vpop.f32.mrb[0].mxu0
        %3959 = vmatprep.mubr.f32.mxu0 %v3262
        %3960 = vmatmul.mubr.f32.gmra.mrb[0].mxu0 %v3261
        %v3961 = vpop.f32.mrb[0].mxu0
        %v3962 = vadd.f32 %v3737, %v3961
        %v3963 = vpop.f32.mrb[0].mxu0
        %3964 = vmatprep.mubr.f32.mxu0 %v3271
        %3965 = vmatmul.mubr.f32.gmra.mrb[0].mxu0 %v3270
        %v3966 = vpop.f32.mrb[0].mxu0
        %v3967 = vadd.f32 %v3742, %v3966
        %v3968 = vpop.f32.mrb[0].mxu0
        %3969 = vmatprep.mubr.f32.mxu0 %v3280
        %3970 = vmatmul.mubr.f32.gmra.mrb[0].mxu0 %v3279
        %v3971 = vpop.f32.mrb[0].mxu0
        %v3972 = vadd.f32 %v3747, %v3971
        %v3973 = vpop.f32.mrb[0].mxu0
        %3974 = vmatprep.mubr.f32.mxu0 %v3289
        %3975 = vmatmul.mubr.f32.gmra.mrb[0].mxu0 %v3288
        %v3976 = vpop.f32.mrb[0].mxu0
        %v3977 = vadd.f32 %v3752, %v3976
        %v3978 = vpop.f32.mrb[0].mxu0
        %3979 = vmatprep.mubr.f32.mxu0 %v3298
        %3980 = vmatmul.mubr.f32.gmra.mrb[0].mxu0 %v3297
        %v3981 = vpop.f32.mrb[0].mxu0
        %v3982 = vadd.f32 %v3757, %v3981
        %v3983 = vpop.f32.mrb[0].mxu0
        %3984 = vmatprep.mubr.f32.mxu0 %v3307
        %3985 = vmatmul.mubr.f32.gmra.mrb[0].mxu0 %v3306
        %v3986 = vpop.f32.mrb[0].mxu0
        %v3987 = vadd.f32 %v3762, %v3986
        %v3988 = vpop.f32.mrb[0].mxu0
        %3989 = vmatprep.mubr.f32.mxu0 %v3316
        %3990 = vmatmul.mubr.f32.gmra.mrb[0].mxu0 %v3315
        %v3991 = vpop.f32.mrb[0].mxu0
        %v3992 = vadd.f32 %v3767, %v3991
        %v3993 = vpop.f32.mrb[0].mxu0
        %3994 = vmatprep.mubr.f32.mxu0 %v3325
        %3995 = vmatmul.mubr.f32.gmra.mrb[0].mxu0 %v3324
        %v3996 = vpop.f32.mrb[0].mxu0
        %v3997 = vadd.f32 %v3772, %v3996
        %v3998 = vpop.f32.mrb[0].mxu0
        %3999 = vmatprep.mubr.f32.mxu0 %v3334
        %4000 = vmatmul.mubr.f32.gmra.mrb[0].mxu0 %v3333
        %v4001 = vpop.f32.mrb[0].mxu0
        %v4002 = vadd.f32 %v3777, %v4001
        %v4003 = vpop.f32.mrb[0].mxu0
        %4004 = vmatprep.mubr.f32.mxu0 %v3343
        %4005 = vmatmul.mubr.f32.gmra.mrb[0].mxu0 %v3342
        %v4006 = vpop.f32.mrb[0].mxu0
        %v4007 = vadd.f32 %v3782, %v4006
        %v4008 = vpop.f32.mrb[0].mxu0
        %4009 = vmatprep.mubr.f32.mxu0 %v3352
        %4010 = vmatmul.mubr.f32.gmra.mrb[0].mxu0 %v3351
        %v4011 = vpop.f32.mrb[0].mxu0
        %v4012 = vadd.f32 %v3787, %v4011
        %v4013 = vpop.f32.mrb[0].mxu0
        %4014 = vmatprep.mubr.f32.mxu0 %v3361
        %4015 = vmatmul.mubr.f32.gmra.mrb[0].mxu0 %v3360
        %v4016 = vpop.f32.mrb[0].mxu0
        %v4017 = vadd.f32 %v3792, %v4016
        %v4018 = vpop.f32.mrb[0].mxu0
        %4019 = vmatprep.mubr.f32.mxu0 %v3370
        %4020 = vmatmul.mubr.f32.gmra.mrb[0].mxu0 %v3369
        %v4021 = vpop.f32.mrb[0].mxu0
        %v4022 = vadd.f32 %v3797, %v4021
        %v4023 = vpop.f32.mrb[0].mxu0
        %4024 = vmatprep.mubr.f32.mxu0 %v3379
        %4025 = vmatmul.mubr.f32.gmra.mrb[0].mxu0 %v3378
        %v4026 = vpop.f32.mrb[0].mxu0
        %v4027 = vadd.f32 %v3802, %v4026
        %v4028 = vpop.f32.mrb[0].mxu0
        %4029 = vmatprep.mubr.f32.mxu0 %v3388
        %4030 = vmatmul.mubr.f32.gmra.mrb[0].mxu0 %v3387
        %v4031 = vpop.f32.mrb[0].mxu0
        %v4032 = vadd.f32 %v3807, %v4031
        %v4033 = vpop.f32.mrb[0].mxu0
        %4034 = vmatprep.mubr.f32.mxu0 %v3397
        %4035 = vmatmul.mubr.f32.gmra.mrb[0].mxu0 %v3396
        %v4036 = vpop.f32.mrb[0].mxu0
        %v4037 = vadd.f32 %v3812, %v4036
        %v4038 = vpop.f32.mrb[0].mxu0
        %4039 = vmatprep.mubr.f32.mxu0 %v3406
        %4040 = vmatmul.mubr.f32.gmra.mrb[0].mxu0 %v3405
        %v4041 = vpop.f32.mrb[0].mxu0
        %v4042 = vadd.f32 %v3817, %v4041
        %v4043 = vpop.f32.mrb[0].mxu0
        %4044 = vdwg.mxu0
        %4045 = vmatprep.subr.mxu0 0.0
        %4046 = vmatpush1.msra.mxu0 %v3476
        %4047 = vmatprep.subr.mxu0 0.0
        %4048 = vmatpush1.msra.mxu0 %v3477
        %4049 = vmatprep.subr.mxu0 0.0
        %4050 = vmatpush1.msra.mxu0 %v3478
        %4051 = vmatprep.subr.mxu0 0.0
        %4052 = vmatpush1.msra.mxu0 %v3479
        %4053 = vmatprep.subr.mxu0 0.0
        %4054 = vmatpush1.msra.mxu0 %v3480
        %4055 = vmatprep.subr.mxu0 0.0
        %4056 = vmatpush1.msra.mxu0 %v3481
        %4057 = vmatprep.subr.mxu0 0.0
        %4058 = vmatpush1.msra.mxu0 %v3482
        %4059 = vmatprep.subr.mxu0 0.0
        %4060 = vmatpush1.msra.mxu0 %v3483
        %4061 = vmatprep.subr.mxu0 0.0
        %4062 = vmatpush1.msra.mxu0 %v3484
        %4063 = vmatprep.subr.mxu0 0.0
        %4064 = vmatpush1.msra.mxu0 %v3485
        %4065 = vmatprep.subr.mxu0 0.0
        %4066 = vmatpush1.msra.mxu0 %v3486
        %4067 = vmatprep.subr.mxu0 0.0
        %4068 = vmatpush1.msra.mxu0 %v3487
        %4069 = vmatprep.subr.mxu0 0.0
        %4070 = vmatpush1.msra.mxu0 %v3488
        %4071 = vmatprep.subr.mxu0 0.0
        %4072 = vmatpush1.msra.mxu0 %v3489
        %4073 = vmatprep.subr.mxu0 0.0
        %4074 = vmatpush1.msra.mxu0 %v3490
        %4075 = vmatprep.subr.mxu0 0.0
        %4076 = vmatpush1.msra.mxu0 %v3491
        %4077 = vmatprep.subr.mxu0 0.0
        %4078 = vmatpush1.msra.mxu0 %v3492
        %4079 = vmatprep.subr.mxu0 0.0
        %4080 = vmatpush1.msra.mxu0 %v3493
        %4081 = vmatprep.subr.mxu0 0.0
        %4082 = vmatpush1.msra.mxu0 %v3494
        %4083 = vmatprep.subr.mxu0 0.0
        %4084 = vmatpush1.msra.mxu0 %v3495
        %4085 = vmatprep.subr.mxu0 0.0
        %4086 = vmatpush1.msra.mxu0 %v3496
        %4087 = vmatprep.subr.mxu0 0.0
        %4088 = vmatpush1.msra.mxu0 %v3497
        %4089 = vmatprep.subr.mxu0 0.0
        %4090 = vmatpush1.msra.mxu0 %v3498
        %4091 = vmatprep.subr.mxu0 0.0
        %4092 = vmatpush1.msra.mxu0 %v3499
        %4093 = vmatprep.subr.mxu0 0.0
        %4094 = vmatpush1.msra.mxu0 %v3500
        %4095 = vmatprep.subr.mxu0 0.0
        %4096 = vmatpush1.msra.mxu0 %v3501
        %4097 = vmatprep.subr.mxu0 0.0
        %4098 = vmatpush1.msra.mxu0 %v3502
        %4099 = vmatprep.subr.mxu0 0.0
        %4100 = vmatpush1.msra.mxu0 %v3503
        %4101 = vmatprep.subr.mxu0 0.0
        %4102 = vmatpush1.msra.mxu0 %v3504
        %4103 = vmatprep.subr.mxu0 0.0
        %4104 = vmatpush1.msra.mxu0 %v3505
        %4105 = vmatprep.subr.mxu0 0.0
        %4106 = vmatpush1.msra.mxu0 %v3506
        %4107 = vmatprep.subr.mxu0 0.0
        %4108 = vmatpush1.msra.mxu0 %v3507
        %4109 = vmatprep.mubr.f32.mxu0 %v3129
        %4110 = vmatmul.mubr.f32.gmra.mrb[0].mxu0 %v3128
        %v4111 = vpop.f32.mrb[0].mxu0
        %v4112 = vadd.f32 %v3887, %v4111
        %v4113 = vpop.f32.mrb[0].mxu0
        %4114 = vmatprep.mubr.f32.mxu0 %v3138
        %4115 = vmatmul.mubr.f32.gmra.mrb[0].mxu0 %v3137
        %v4116 = vpop.f32.mrb[0].mxu0
        %v4117 = vadd.f32 %v3892, %v4116
        %v4118 = vpop.f32.mrb[0].mxu0
        %4119 = vmatprep.mubr.f32.mxu0 %v3147
        %4120 = vmatmul.mubr.f32.gmra.mrb[0].mxu0 %v3146
        %v4121 = vpop.f32.mrb[0].mxu0
        %v4122 = vadd.f32 %v3897, %v4121
        %v4123 = vpop.f32.mrb[0].mxu0
        %4124 = vmatprep.mubr.f32.mxu0 %v3156
        %4125 = vmatmul.mubr.f32.gmra.mrb[0].mxu0 %v3155
        %v4126 = vpop.f32.mrb[0].mxu0
        %v4127 = vadd.f32 %v3902, %v4126
        %v4128 = vpop.f32.mrb[0].mxu0
        %4129 = vmatprep.mubr.f32.mxu0 %v3165
        %4130 = vmatmul.mubr.f32.gmra.mrb[0].mxu0 %v3164
        %v4131 = vpop.f32.mrb[0].mxu0
        %v4132 = vadd.f32 %v3907, %v4131
        %v4133 = vpop.f32.mrb[0].mxu0
        %4134 = vmatprep.mubr.f32.mxu0 %v3174
        %4135 = vmatmul.mubr.f32.gmra.mrb[0].mxu0 %v3173
        %v4136 = vpop.f32.mrb[0].mxu0
        %v4137 = vadd.f32 %v3912, %v4136
        %v4138 = vpop.f32.mrb[0].mxu0
        %4139 = vmatprep.mubr.f32.mxu0 %v3183
        %4140 = vmatmul.mubr.f32.gmra.mrb[0].mxu0 %v3182
        %v4141 = vpop.f32.mrb[0].mxu0
        %v4142 = vadd.f32 %v3917, %v4141
        %v4143 = vpop.f32.mrb[0].mxu0
        %4144 = vmatprep.mubr.f32.mxu0 %v3192
        %4145 = vmatmul.mubr.f32.gmra.mrb[0].mxu0 %v3191
        %v4146 = vpop.f32.mrb[0].mxu0
        %v4147 = vadd.f32 %v3922, %v4146
        %v4148 = vpop.f32.mrb[0].mxu0
        %4149 = vmatprep.mubr.f32.mxu0 %v3201
        %4150 = vmatmul.mubr.f32.gmra.mrb[0].mxu0 %v3200
        %v4151 = vpop.f32.mrb[0].mxu0
        %v4152 = vadd.f32 %v3927, %v4151
        %v4153 = vpop.f32.mrb[0].mxu0
        %4154 = vmatprep.mubr.f32.mxu0 %v3210
        %4155 = vmatmul.mubr.f32.gmra.mrb[0].mxu0 %v3209
        %v4156 = vpop.f32.mrb[0].mxu0
        %v4157 = vadd.f32 %v3932, %v4156
        %v4158 = vpop.f32.mrb[0].mxu0
        %4159 = vmatprep.mubr.f32.mxu0 %v3219
        %4160 = vmatmul.mubr.f32.gmra.mrb[0].mxu0 %v3218
        %v4161 = vpop.f32.mrb[0].mxu0
        %v4162 = vadd.f32 %v3937, %v4161
        %v4163 = vpop.f32.mrb[0].mxu0
        %4164 = vmatprep.mubr.f32.mxu0 %v3228
        %4165 = vmatmul.mubr.f32.gmra.mrb[0].mxu0 %v3227
        %v4166 = vpop.f32.mrb[0].mxu0
        %v4167 = vadd.f32 %v3942, %v4166
        %v4168 = vpop.f32.mrb[0].mxu0
        %4169 = vmatprep.mubr.f32.mxu0 %v3237
        %4170 = vmatmul.mubr.f32.gmra.mrb[0].mxu0 %v3236
        %v4171 = vpop.f32.mrb[0].mxu0
        %v4172 = vadd.f32 %v3947, %v4171
        %v4173 = vpop.f32.mrb[0].mxu0
        %4174 = vmatprep.mubr.f32.mxu0 %v3246
        %4175 = vmatmul.mubr.f32.gmra.mrb[0].mxu0 %v3245
        %v4176 = vpop.f32.mrb[0].mxu0
        %v4177 = vadd.f32 %v3952, %v4176
        %v4178 = vpop.f32.mrb[0].mxu0
        %4179 = vmatprep.mubr.f32.mxu0 %v3255
        %4180 = vmatmul.mubr.f32.gmra.mrb[0].mxu0 %v3254
        %v4181 = vpop.f32.mrb[0].mxu0
        %v4182 = vadd.f32 %v3957, %v4181
        %v4183 = vpop.f32.mrb[0].mxu0
        %4184 = vmatprep.mubr.f32.mxu0 %v3264
        %4185 = vmatmul.mubr.f32.gmra.mrb[0].mxu0 %v3263
        %v4186 = vpop.f32.mrb[0].mxu0
        %v4187 = vadd.f32 %v3962, %v4186
        %v4188 = vpop.f32.mrb[0].mxu0
        %4189 = vmatprep.mubr.f32.mxu0 %v3273
        %4190 = vmatmul.mubr.f32.gmra.mrb[0].mxu0 %v3272
        %v4191 = vpop.f32.mrb[0].mxu0
        %v4192 = vadd.f32 %v3967, %v4191
        %v4193 = vpop.f32.mrb[0].mxu0
        %4194 = vmatprep.mubr.f32.mxu0 %v3282
        %4195 = vmatmul.mubr.f32.gmra.mrb[0].mxu0 %v3281
        %v4196 = vpop.f32.mrb[0].mxu0
        %v4197 = vadd.f32 %v3972, %v4196
        %v4198 = vpop.f32.mrb[0].mxu0
        %4199 = vmatprep.mubr.f32.mxu0 %v3291
        %4200 = vmatmul.mubr.f32.gmra.mrb[0].mxu0 %v3290
        %v4201 = vpop.f32.mrb[0].mxu0
        %v4202 = vadd.f32 %v3977, %v4201
        %v4203 = vpop.f32.mrb[0].mxu0
        %4204 = vmatprep.mubr.f32.mxu0 %v3300
        %4205 = vmatmul.mubr.f32.gmra.mrb[0].mxu0 %v3299
        %v4206 = vpop.f32.mrb[0].mxu0
        %v4207 = vadd.f32 %v3982, %v4206
        %v4208 = vpop.f32.mrb[0].mxu0
        %4209 = vmatprep.mubr.f32.mxu0 %v3309
        %4210 = vmatmul.mubr.f32.gmra.mrb[0].mxu0 %v3308
        %v4211 = vpop.f32.mrb[0].mxu0
        %v4212 = vadd.f32 %v3987, %v4211
        %v4213 = vpop.f32.mrb[0].mxu0
        %4214 = vmatprep.mubr.f32.mxu0 %v3318
        %4215 = vmatmul.mubr.f32.gmra.mrb[0].mxu0 %v3317
        %v4216 = vpop.f32.mrb[0].mxu0
        %v4217 = vadd.f32 %v3992, %v4216
        %v4218 = vpop.f32.mrb[0].mxu0
        %4219 = vmatprep.mubr.f32.mxu0 %v3327
        %4220 = vmatmul.mubr.f32.gmra.mrb[0].mxu0 %v3326
        %v4221 = vpop.f32.mrb[0].mxu0
        %v4222 = vadd.f32 %v3997, %v4221
        %v4223 = vpop.f32.mrb[0].mxu0
        %4224 = vmatprep.mubr.f32.mxu0 %v3336
        %4225 = vmatmul.mubr.f32.gmra.mrb[0].mxu0 %v3335
        %v4226 = vpop.f32.mrb[0].mxu0
        %v4227 = vadd.f32 %v4002, %v4226
        %v4228 = vpop.f32.mrb[0].mxu0
        %4229 = vmatprep.mubr.f32.mxu0 %v3345
        %4230 = vmatmul.mubr.f32.gmra.mrb[0].mxu0 %v3344
        %v4231 = vpop.f32.mrb[0].mxu0
        %v4232 = vadd.f32 %v4007, %v4231
        %v4233 = vpop.f32.mrb[0].mxu0
        %4234 = vmatprep.mubr.f32.mxu0 %v3354
        %4235 = vmatmul.mubr.f32.gmra.mrb[0].mxu0 %v3353
        %v4236 = vpop.f32.mrb[0].mxu0
        %v4237 = vadd.f32 %v4012, %v4236
        %v4238 = vpop.f32.mrb[0].mxu0
        %4239 = vmatprep.mubr.f32.mxu0 %v3363
        %4240 = vmatmul.mubr.f32.gmra.mrb[0].mxu0 %v3362
        %v4241 = vpop.f32.mrb[0].mxu0
        %v4242 = vadd.f32 %v4017, %v4241
        %v4243 = vpop.f32.mrb[0].mxu0
        %4244 = vmatprep.mubr.f32.mxu0 %v3372
        %4245 = vmatmul.mubr.f32.gmra.mrb[0].mxu0 %v3371
        %v4246 = vpop.f32.mrb[0].mxu0
        %v4247 = vadd.f32 %v4022, %v4246
        %v4248 = vpop.f32.mrb[0].mxu0
        %4249 = vmatprep.mubr.f32.mxu0 %v3381
        %4250 = vmatmul.mubr.f32.gmra.mrb[0].mxu0 %v3380
        %v4251 = vpop.f32.mrb[0].mxu0
        %v4252 = vadd.f32 %v4027, %v4251
        %v4253 = vpop.f32.mrb[0].mxu0
        %4254 = vmatprep.mubr.f32.mxu0 %v3390
        %4255 = vmatmul.mubr.f32.gmra.mrb[0].mxu0 %v3389
        %v4256 = vpop.f32.mrb[0].mxu0
        %v4257 = vadd.f32 %v4032, %v4256
        %v4258 = vpop.f32.mrb[0].mxu0
        %4259 = vmatprep.mubr.f32.mxu0 %v3399
        %4260 = vmatmul.mubr.f32.gmra.mrb[0].mxu0 %v3398
        %v4261 = vpop.f32.mrb[0].mxu0
        %v4262 = vadd.f32 %v4037, %v4261
        %v4263 = vpop.f32.mrb[0].mxu0
        %4264 = vmatprep.mubr.f32.mxu0 %v3408
        %4265 = vmatmul.mubr.f32.gmra.mrb[0].mxu0 %v3407
        %v4266 = vpop.f32.mrb[0].mxu0
        %v4267 = vadd.f32 %v4042, %v4266
        %v4268 = vpop.f32.mrb[0].mxu0
        %4269 = vdwg.mxu0
        %4270 = vmatprep.subr.mxu0 0.0
        %4271 = vmatpush1.msra.mxu0 %v3508
        %4272 = vmatprep.subr.mxu0 0.0
        %4273 = vmatpush1.msra.mxu0 %v3509
        %4274 = vmatprep.subr.mxu0 0.0
        %4275 = vmatpush1.msra.mxu0 %v3510
        %4276 = vmatprep.subr.mxu0 0.0
        %4277 = vmatpush1.msra.mxu0 %v3511
        %4278 = vmatprep.subr.mxu0 0.0
        %4279 = vmatpush1.msra.mxu0 %v3512
        %4280 = vmatprep.subr.mxu0 0.0
        %4281 = vmatpush1.msra.mxu0 %v3513
        %4282 = vmatprep.subr.mxu0 0.0
        %4283 = vmatpush1.msra.mxu0 %v3514
        %4284 = vmatprep.subr.mxu0 0.0
        %4285 = vmatpush1.msra.mxu0 %v3515
        %4286 = vmatprep.subr.mxu0 0.0
        %4287 = vmatpush1.msra.mxu0 %v3516
        %4288 = vmatprep.subr.mxu0 0.0
        %4289 = vmatpush1.msra.mxu0 %v3517
        %4290 = vmatprep.subr.mxu0 0.0
        %4291 = vmatpush1.msra.mxu0 %v3518
        %4292 = vmatprep.subr.mxu0 0.0
        %4293 = vmatpush1.msra.mxu0 %v3519
        %4294 = vmatprep.subr.mxu0 0.0
        %4295 = vmatpush1.msra.mxu0 %v3520
        %4296 = vmatprep.subr.mxu0 0.0
        %4297 = vmatpush1.msra.mxu0 %v3521
        %4298 = vmatprep.subr.mxu0 0.0
        %4299 = vmatpush1.msra.mxu0 %v3522
        %4300 = vmatprep.subr.mxu0 0.0
        %4301 = vmatpush1.msra.mxu0 %v3523
        %4302 = vmatprep.subr.mxu0 0.0
        %4303 = vmatpush1.msra.mxu0 %v3524
        %4304 = vmatprep.subr.mxu0 0.0
        %4305 = vmatpush1.msra.mxu0 %v3525
        %4306 = vmatprep.subr.mxu0 0.0
        %4307 = vmatpush1.msra.mxu0 %v3526
        %4308 = vmatprep.subr.mxu0 0.0
        %4309 = vmatpush1.msra.mxu0 %v3527
        %4310 = vmatprep.subr.mxu0 0.0
        %4311 = vmatpush1.msra.mxu0 %v3528
        %4312 = vmatprep.subr.mxu0 0.0
        %4313 = vmatpush1.msra.mxu0 %v3529
        %4314 = vmatprep.subr.mxu0 0.0
        %4315 = vmatpush1.msra.mxu0 %v3530
        %4316 = vmatprep.subr.mxu0 0.0
        %4317 = vmatpush1.msra.mxu0 %v3531
        %4318 = vmatprep.subr.mxu0 0.0
        %4319 = vmatpush1.msra.mxu0 %v3532
        %4320 = vmatprep.subr.mxu0 0.0
        %4321 = vmatpush1.msra.mxu0 %v3533
        %4322 = vmatprep.subr.mxu0 0.0
        %4323 = vmatpush1.msra.mxu0 %v3534
        %4324 = vmatprep.subr.mxu0 0.0
        %4325 = vmatpush1.msra.mxu0 %v3535
        %4326 = vmatprep.subr.mxu0 0.0
        %4327 = vmatpush1.msra.mxu0 %v3536
        %4328 = vmatprep.subr.mxu0 0.0
        %4329 = vmatpush1.msra.mxu0 %v3537
        %4330 = vmatprep.subr.mxu0 0.0
        %4331 = vmatpush1.msra.mxu0 %v3538
        %4332 = vmatprep.subr.mxu0 0.0
        %4333 = vmatpush1.msra.mxu0 %v3539
        %4334 = vmatprep.mubr.f32.mxu0 %v3131
        %4335 = vmatmul.mubr.f32.gmra.mrb[0].mxu0 %v3130
        %v4336 = vpop.f32.mrb[0].mxu0
        %v4337 = vadd.f32 %v4112, %v4336
        %v4338 = vpop.f32.mrb[0].mxu0
        %4339 = vmatprep.mubr.f32.mxu0 %v3140
        %4340 = vmatmul.mubr.f32.gmra.mrb[0].mxu0 %v3139
        %v4341 = vpop.f32.mrb[0].mxu0
        %v4342 = vadd.f32 %v4117, %v4341
        %v4343 = vpop.f32.mrb[0].mxu0
        %4344 = vmatprep.mubr.f32.mxu0 %v3149
        %4345 = vmatmul.mubr.f32.gmra.mrb[0].mxu0 %v3148
        %v4346 = vpop.f32.mrb[0].mxu0
        %v4347 = vadd.f32 %v4122, %v4346
        %v4348 = vpop.f32.mrb[0].mxu0
        %4349 = vmatprep.mubr.f32.mxu0 %v3158
        %4350 = vmatmul.mubr.f32.gmra.mrb[0].mxu0 %v3157
        %v4351 = vpop.f32.mrb[0].mxu0
        %v4352 = vadd.f32 %v4127, %v4351
        %v4353 = vpop.f32.mrb[0].mxu0
        %4354 = vmatprep.mubr.f32.mxu0 %v3167
        %4355 = vmatmul.mubr.f32.gmra.mrb[0].mxu0 %v3166
        %v4356 = vpop.f32.mrb[0].mxu0
        %v4357 = vadd.f32 %v4132, %v4356
        %v4358 = vpop.f32.mrb[0].mxu0
        %4359 = vmatprep.mubr.f32.mxu0 %v3176
        %4360 = vmatmul.mubr.f32.gmra.mrb[0].mxu0 %v3175
        %v4361 = vpop.f32.mrb[0].mxu0
        %v4362 = vadd.f32 %v4137, %v4361
        %v4363 = vpop.f32.mrb[0].mxu0
        %4364 = vmatprep.mubr.f32.mxu0 %v3185
        %4365 = vmatmul.mubr.f32.gmra.mrb[0].mxu0 %v3184
        %v4366 = vpop.f32.mrb[0].mxu0
        %v4367 = vadd.f32 %v4142, %v4366
        %v4368 = vpop.f32.mrb[0].mxu0
        %4369 = vmatprep.mubr.f32.mxu0 %v3194
        %4370 = vmatmul.mubr.f32.gmra.mrb[0].mxu0 %v3193
        %v4371 = vpop.f32.mrb[0].mxu0
        %v4372 = vadd.f32 %v4147, %v4371
        %v4373 = vpop.f32.mrb[0].mxu0
        %4374 = vmatprep.mubr.f32.mxu0 %v3203
        %4375 = vmatmul.mubr.f32.gmra.mrb[0].mxu0 %v3202
        %v4376 = vpop.f32.mrb[0].mxu0
        %v4377 = vadd.f32 %v4152, %v4376
        %v4378 = vpop.f32.mrb[0].mxu0
        %4379 = vmatprep.mubr.f32.mxu0 %v3212
        %4380 = vmatmul.mubr.f32.gmra.mrb[0].mxu0 %v3211
        %v4381 = vpop.f32.mrb[0].mxu0
        %v4382 = vadd.f32 %v4157, %v4381
        %v4383 = vpop.f32.mrb[0].mxu0
        %4384 = vmatprep.mubr.f32.mxu0 %v3221
        %4385 = vmatmul.mubr.f32.gmra.mrb[0].mxu0 %v3220
        %v4386 = vpop.f32.mrb[0].mxu0
        %v4387 = vadd.f32 %v4162, %v4386
        %v4388 = vpop.f32.mrb[0].mxu0
        %4389 = vmatprep.mubr.f32.mxu0 %v3230
        %4390 = vmatmul.mubr.f32.gmra.mrb[0].mxu0 %v3229
        %v4391 = vpop.f32.mrb[0].mxu0
        %v4392 = vadd.f32 %v4167, %v4391
        %v4393 = vpop.f32.mrb[0].mxu0
        %4394 = vmatprep.mubr.f32.mxu0 %v3239
        %4395 = vmatmul.mubr.f32.gmra.mrb[0].mxu0 %v3238
        %v4396 = vpop.f32.mrb[0].mxu0
        %v4397 = vadd.f32 %v4172, %v4396
        %v4398 = vpop.f32.mrb[0].mxu0
        %4399 = vmatprep.mubr.f32.mxu0 %v3248
        %4400 = vmatmul.mubr.f32.gmra.mrb[0].mxu0 %v3247
        %v4401 = vpop.f32.mrb[0].mxu0
        %v4402 = vadd.f32 %v4177, %v4401
        %v4403 = vpop.f32.mrb[0].mxu0
        %4404 = vmatprep.mubr.f32.mxu0 %v3257
        %4405 = vmatmul.mubr.f32.gmra.mrb[0].mxu0 %v3256
        %v4406 = vpop.f32.mrb[0].mxu0
        %v4407 = vadd.f32 %v4182, %v4406
        %v4408 = vpop.f32.mrb[0].mxu0
        %4409 = vmatprep.mubr.f32.mxu0 %v3266
        %4410 = vmatmul.mubr.f32.gmra.mrb[0].mxu0 %v3265
        %v4411 = vpop.f32.mrb[0].mxu0
        %v4412 = vadd.f32 %v4187, %v4411
        %v4413 = vpop.f32.mrb[0].mxu0
        %4414 = vmatprep.mubr.f32.mxu0 %v3275
        %4415 = vmatmul.mubr.f32.gmra.mrb[0].mxu0 %v3274
        %v4416 = vpop.f32.mrb[0].mxu0
        %v4417 = vadd.f32 %v4192, %v4416
        %v4418 = vpop.f32.mrb[0].mxu0
        %4419 = vmatprep.mubr.f32.mxu0 %v3284
        %4420 = vmatmul.mubr.f32.gmra.mrb[0].mxu0 %v3283
        %v4421 = vpop.f32.mrb[0].mxu0
        %v4422 = vadd.f32 %v4197, %v4421
        %v4423 = vpop.f32.mrb[0].mxu0
        %4424 = vmatprep.mubr.f32.mxu0 %v3293
        %4425 = vmatmul.mubr.f32.gmra.mrb[0].mxu0 %v3292
        %v4426 = vpop.f32.mrb[0].mxu0
        %v4427 = vadd.f32 %v4202, %v4426
        %v4428 = vpop.f32.mrb[0].mxu0
        %4429 = vmatprep.mubr.f32.mxu0 %v3302
        %4430 = vmatmul.mubr.f32.gmra.mrb[0].mxu0 %v3301
        %v4431 = vpop.f32.mrb[0].mxu0
        %v4432 = vadd.f32 %v4207, %v4431
        %v4433 = vpop.f32.mrb[0].mxu0
        %4434 = vmatprep.mubr.f32.mxu0 %v3311
        %4435 = vmatmul.mubr.f32.gmra.mrb[0].mxu0 %v3310
        %v4436 = vpop.f32.mrb[0].mxu0
        %v4437 = vadd.f32 %v4212, %v4436
        %v4438 = vpop.f32.mrb[0].mxu0
        %4439 = vmatprep.mubr.f32.mxu0 %v3320
        %4440 = vmatmul.mubr.f32.gmra.mrb[0].mxu0 %v3319
        %v4441 = vpop.f32.mrb[0].mxu0
        %v4442 = vadd.f32 %v4217, %v4441
        %v4443 = vpop.f32.mrb[0].mxu0
        %4444 = vmatprep.mubr.f32.mxu0 %v3329
        %4445 = vmatmul.mubr.f32.gmra.mrb[0].mxu0 %v3328
        %v4446 = vpop.f32.mrb[0].mxu0
        %v4447 = vadd.f32 %v4222, %v4446
        %v4448 = vpop.f32.mrb[0].mxu0
        %4449 = vmatprep.mubr.f32.mxu0 %v3338
        %4450 = vmatmul.mubr.f32.gmra.mrb[0].mxu0 %v3337
        %v4451 = vpop.f32.mrb[0].mxu0
        %v4452 = vadd.f32 %v4227, %v4451
        %v4453 = vpop.f32.mrb[0].mxu0
        %4454 = vmatprep.mubr.f32.mxu0 %v3347
        %4455 = vmatmul.mubr.f32.gmra.mrb[0].mxu0 %v3346
        %v4456 = vpop.f32.mrb[0].mxu0
        %v4457 = vadd.f32 %v4232, %v4456
        %v4458 = vpop.f32.mrb[0].mxu0
        %4459 = vmatprep.mubr.f32.mxu0 %v3356
        %4460 = vmatmul.mubr.f32.gmra.mrb[0].mxu0 %v3355
        %v4461 = vpop.f32.mrb[0].mxu0
        %v4462 = vadd.f32 %v4237, %v4461
        %v4463 = vpop.f32.mrb[0].mxu0
        %4464 = vmatprep.mubr.f32.mxu0 %v3365
        %4465 = vmatmul.mubr.f32.gmra.mrb[0].mxu0 %v3364
        %v4466 = vpop.f32.mrb[0].mxu0
        %v4467 = vadd.f32 %v4242, %v4466
        %v4468 = vpop.f32.mrb[0].mxu0
        %4469 = vmatprep.mubr.f32.mxu0 %v3374
        %4470 = vmatmul.mubr.f32.gmra.mrb[0].mxu0 %v3373
        %v4471 = vpop.f32.mrb[0].mxu0
        %v4472 = vadd.f32 %v4247, %v4471
        %v4473 = vpop.f32.mrb[0].mxu0
        %4474 = vmatprep.mubr.f32.mxu0 %v3383
        %4475 = vmatmul.mubr.f32.gmra.mrb[0].mxu0 %v3382
        %v4476 = vpop.f32.mrb[0].mxu0
        %v4477 = vadd.f32 %v4252, %v4476
        %v4478 = vpop.f32.mrb[0].mxu0
        %4479 = vmatprep.mubr.f32.mxu0 %v3392
        %4480 = vmatmul.mubr.f32.gmra.mrb[0].mxu0 %v3391
        %v4481 = vpop.f32.mrb[0].mxu0
        %v4482 = vadd.f32 %v4257, %v4481
        %v4483 = vpop.f32.mrb[0].mxu0
        %4484 = vmatprep.mubr.f32.mxu0 %v3401
        %4485 = vmatmul.mubr.f32.gmra.mrb[0].mxu0 %v3400
        %v4486 = vpop.f32.mrb[0].mxu0
        %v4487 = vadd.f32 %v4262, %v4486
        %v4488 = vpop.f32.mrb[0].mxu0
        %4489 = vmatprep.mubr.f32.mxu0 %v3410
        %4490 = vmatmul.mubr.f32.gmra.mrb[0].mxu0 %v3409
        %v4491 = vpop.f32.mrb[0].mxu0
        %v4492 = vadd.f32 %v4267, %v4491
        %v4493 = vpop.f32.mrb[0].mxu0
        %4494 = vdwg.mxu0
        %4495 = vmatprep.subr.mxu0 0.0
        %4496 = vmatpush1.msra.mxu0 %v3540
        %4497 = vmatprep.subr.mxu0 0.0
        %4498 = vmatpush1.msra.mxu0 %v3541
        %4499 = vmatprep.subr.mxu0 0.0
        %4500 = vmatpush1.msra.mxu0 %v3542
        %4501 = vmatprep.subr.mxu0 0.0
        %4502 = vmatpush1.msra.mxu0 %v3543
        %4503 = vmatprep.subr.mxu0 0.0
        %4504 = vmatpush1.msra.mxu0 %v3544
        %4505 = vmatprep.subr.mxu0 0.0
        %4506 = vmatpush1.msra.mxu0 %v3545
        %4507 = vmatprep.subr.mxu0 0.0
        %4508 = vmatpush1.msra.mxu0 %v3546
        %4509 = vmatprep.subr.mxu0 0.0
        %4510 = vmatpush1.msra.mxu0 %v3547
        %4511 = vmatprep.subr.mxu0 0.0
        %4512 = vmatpush1.msra.mxu0 %v3548
        %4513 = vmatprep.subr.mxu0 0.0
        %4514 = vmatpush1.msra.mxu0 %v3549
        %4515 = vmatprep.subr.mxu0 0.0
        %4516 = vmatpush1.msra.mxu0 %v3550
        %4517 = vmatprep.subr.mxu0 0.0
        %4518 = vmatpush1.msra.mxu0 %v3551
        %4519 = vmatprep.subr.mxu0 0.0
        %4520 = vmatpush1.msra.mxu0 %v3552
        %4521 = vmatprep.subr.mxu0 0.0
        %4522 = vmatpush1.msra.mxu0 %v3553
        %4523 = vmatprep.subr.mxu0 0.0
        %4524 = vmatpush1.msra.mxu0 %v3554
        %4525 = vmatprep.subr.mxu0 0.0
        %4526 = vmatpush1.msra.mxu0 %v3555
        %4527 = vmatprep.subr.mxu0 0.0
        %4528 = vmatpush1.msra.mxu0 0.0
        %4529 = vmatprep.subr.mxu0 0.0
        %4530 = vmatpush1.msra.mxu0 0.0
        %4531 = vmatprep.subr.mxu0 0.0
        %4532 = vmatpush1.msra.mxu0 0.0
        %4533 = vmatprep.subr.mxu0 0.0
        %4534 = vmatpush1.msra.mxu0 0.0
        %4535 = vmatprep.subr.mxu0 0.0
        %4536 = vmatpush1.msra.mxu0 0.0
        %4537 = vmatprep.subr.mxu0 0.0
        %4538 = vmatpush1.msra.mxu0 0.0
        %4539 = vmatprep.subr.mxu0 0.0
        %4540 = vmatpush1.msra.mxu0 0.0
        %4541 = vmatprep.subr.mxu0 0.0
        %4542 = vmatpush1.msra.mxu0 0.0
        %4543 = vmatprep.subr.mxu0 0.0
        %4544 = vmatpush1.msra.mxu0 0.0
        %4545 = vmatprep.subr.mxu0 0.0
        %4546 = vmatpush1.msra.mxu0 0.0
        %4547 = vmatprep.subr.mxu0 0.0
        %4548 = vmatpush1.msra.mxu0 0.0
        %4549 = vmatprep.subr.mxu0 0.0
        %4550 = vmatpush1.msra.mxu0 0.0
        %4551 = vmatprep.subr.mxu0 0.0
        %4552 = vmatpush1.msra.mxu0 0.0
        %4553 = vmatprep.subr.mxu0 0.0
        %4554 = vmatpush1.msra.mxu0 0.0
        %4555 = vmatprep.subr.mxu0 0.0
        %4556 = vmatpush1.msra.mxu0 0.0
        %4557 = vmatprep.subr.mxu0 0.0
        %4558 = vmatpush1.msra.mxu0 0.0
        %4559 = vmatprep.mubr.f32.mxu0 0.0
        %4560 = vmatmul.mubr.f32.gmra.mrb[0].mxu0 %v3132
        %v4561 = vpop.f32.mrb[0].mxu0
        %v4562 = vadd.f32 %v4337, %v4561
        %v4563 = vpop.f32.mrb[0].mxu0
        %4564 = vmatprep.mubr.f32.mxu0 0.0
        %4565 = vmatmul.mubr.f32.gmra.mrb[0].mxu0 %v3141
        %v4566 = vpop.f32.mrb[0].mxu0
        %v4567 = vadd.f32 %v4342, %v4566
        %v4568 = vpop.f32.mrb[0].mxu0
        %4569 = vmatprep.mubr.f32.mxu0 0.0
        %4570 = vmatmul.mubr.f32.gmra.mrb[0].mxu0 %v3150
        %v4571 = vpop.f32.mrb[0].mxu0
        %v4572 = vadd.f32 %v4347, %v4571
        %v4573 = vpop.f32.mrb[0].mxu0
        %4574 = vmatprep.mubr.f32.mxu0 0.0
        %4575 = vmatmul.mubr.f32.gmra.mrb[0].mxu0 %v3159
        %v4576 = vpop.f32.mrb[0].mxu0
        %v4577 = vadd.f32 %v4352, %v4576
        %v4578 = vpop.f32.mrb[0].mxu0
        %4579 = vmatprep.mubr.f32.mxu0 0.0
        %4580 = vmatmul.mubr.f32.gmra.mrb[0].mxu0 %v3168
        %v4581 = vpop.f32.mrb[0].mxu0
        %v4582 = vadd.f32 %v4357, %v4581
        %v4583 = vpop.f32.mrb[0].mxu0
        %4584 = vmatprep.mubr.f32.mxu0 0.0
        %4585 = vmatmul.mubr.f32.gmra.mrb[0].mxu0 %v3177
        %v4586 = vpop.f32.mrb[0].mxu0
        %v4587 = vadd.f32 %v4362, %v4586
        %v4588 = vpop.f32.mrb[0].mxu0
        %4589 = vmatprep.mubr.f32.mxu0 0.0
        %4590 = vmatmul.mubr.f32.gmra.mrb[0].mxu0 %v3186
        %v4591 = vpop.f32.mrb[0].mxu0
        %v4592 = vadd.f32 %v4367, %v4591
        %v4593 = vpop.f32.mrb[0].mxu0
        %4594 = vmatprep.mubr.f32.mxu0 0.0
        %4595 = vmatmul.mubr.f32.gmra.mrb[0].mxu0 %v3195
        %v4596 = vpop.f32.mrb[0].mxu0
        %v4597 = vadd.f32 %v4372, %v4596
        %v4598 = vpop.f32.mrb[0].mxu0
        %4599 = vmatprep.mubr.f32.mxu0 0.0
        %4600 = vmatmul.mubr.f32.gmra.mrb[0].mxu0 %v3204
        %v4601 = vpop.f32.mrb[0].mxu0
        %v4602 = vadd.f32 %v4377, %v4601
        %v4603 = vpop.f32.mrb[0].mxu0
        %4604 = vmatprep.mubr.f32.mxu0 0.0
        %4605 = vmatmul.mubr.f32.gmra.mrb[0].mxu0 %v3213
        %v4606 = vpop.f32.mrb[0].mxu0
        %v4607 = vadd.f32 %v4382, %v4606
        %v4608 = vpop.f32.mrb[0].mxu0
        %4609 = vmatprep.mubr.f32.mxu0 0.0
        %4610 = vmatmul.mubr.f32.gmra.mrb[0].mxu0 %v3222
        %v4611 = vpop.f32.mrb[0].mxu0
        %v4612 = vadd.f32 %v4387, %v4611
        %v4613 = vpop.f32.mrb[0].mxu0
        %4614 = vmatprep.mubr.f32.mxu0 0.0
        %4615 = vmatmul.mubr.f32.gmra.mrb[0].mxu0 %v3231
        %v4616 = vpop.f32.mrb[0].mxu0
        %v4617 = vadd.f32 %v4392, %v4616
        %v4618 = vpop.f32.mrb[0].mxu0
        %4619 = vmatprep.mubr.f32.mxu0 0.0
        %4620 = vmatmul.mubr.f32.gmra.mrb[0].mxu0 %v3240
        %v4621 = vpop.f32.mrb[0].mxu0
        %v4622 = vadd.f32 %v4397, %v4621
        %v4623 = vpop.f32.mrb[0].mxu0
        %4624 = vmatprep.mubr.f32.mxu0 0.0
        %4625 = vmatmul.mubr.f32.gmra.mrb[0].mxu0 %v3249
        %v4626 = vpop.f32.mrb[0].mxu0
        %v4627 = vadd.f32 %v4402, %v4626
        %v4628 = vpop.f32.mrb[0].mxu0
        %4629 = vmatprep.mubr.f32.mxu0 0.0
        %4630 = vmatmul.mubr.f32.gmra.mrb[0].mxu0 %v3258
        %v4631 = vpop.f32.mrb[0].mxu0
        %v4632 = vadd.f32 %v4407, %v4631
        %v4633 = vpop.f32.mrb[0].mxu0
        %4634 = vmatprep.mubr.f32.mxu0 0.0
        %4635 = vmatmul.mubr.f32.gmra.mrb[0].mxu0 %v3267
        %v4636 = vpop.f32.mrb[0].mxu0
        %v4637 = vadd.f32 %v4412, %v4636
        %v4638 = vpop.f32.mrb[0].mxu0
        %4639 = vmatprep.mubr.f32.mxu0 0.0
        %4640 = vmatmul.mubr.f32.gmra.mrb[0].mxu0 %v3276
        %v4641 = vpop.f32.mrb[0].mxu0
        %v4642 = vadd.f32 %v4417, %v4641
        %v4643 = vpop.f32.mrb[0].mxu0
        %4644 = vmatprep.mubr.f32.mxu0 0.0
        %4645 = vmatmul.mubr.f32.gmra.mrb[0].mxu0 %v3285
        %v4646 = vpop.f32.mrb[0].mxu0
        %v4647 = vadd.f32 %v4422, %v4646
        %v4648 = vpop.f32.mrb[0].mxu0
        %4649 = vmatprep.mubr.f32.mxu0 0.0
        %4650 = vmatmul.mubr.f32.gmra.mrb[0].mxu0 %v3294
        %v4651 = vpop.f32.mrb[0].mxu0
        %v4652 = vadd.f32 %v4427, %v4651
        %v4653 = vpop.f32.mrb[0].mxu0
        %4654 = vmatprep.mubr.f32.mxu0 0.0
        %4655 = vmatmul.mubr.f32.gmra.mrb[0].mxu0 %v3303
        %v4656 = vpop.f32.mrb[0].mxu0
        %v4657 = vadd.f32 %v4432, %v4656
        %v4658 = vpop.f32.mrb[0].mxu0
        %4659 = vmatprep.mubr.f32.mxu0 0.0
        %4660 = vmatmul.mubr.f32.gmra.mrb[0].mxu0 %v3312
        %v4661 = vpop.f32.mrb[0].mxu0
        %v4662 = vadd.f32 %v4437, %v4661
        %v4663 = vpop.f32.mrb[0].mxu0
        %4664 = vmatprep.mubr.f32.mxu0 0.0
        %4665 = vmatmul.mubr.f32.gmra.mrb[0].mxu0 %v3321
        %v4666 = vpop.f32.mrb[0].mxu0
        %v4667 = vadd.f32 %v4442, %v4666
        %v4668 = vpop.f32.mrb[0].mxu0
        %4669 = vmatprep.mubr.f32.mxu0 0.0
        %4670 = vmatmul.mubr.f32.gmra.mrb[0].mxu0 %v3330
        %v4671 = vpop.f32.mrb[0].mxu0
        %v4672 = vadd.f32 %v4447, %v4671
        %v4673 = vpop.f32.mrb[0].mxu0
        %4674 = vmatprep.mubr.f32.mxu0 0.0
        %4675 = vmatmul.mubr.f32.gmra.mrb[0].mxu0 %v3339
        %v4676 = vpop.f32.mrb[0].mxu0
        %v4677 = vadd.f32 %v4452, %v4676
        %v4678 = vpop.f32.mrb[0].mxu0
        %4679 = vmatprep.mubr.f32.mxu0 0.0
        %4680 = vmatmul.mubr.f32.gmra.mrb[0].mxu0 %v3348
        %v4681 = vpop.f32.mrb[0].mxu0
        %v4682 = vadd.f32 %v4457, %v4681
        %v4683 = vpop.f32.mrb[0].mxu0
        %4684 = vmatprep.mubr.f32.mxu0 0.0
        %4685 = vmatmul.mubr.f32.gmra.mrb[0].mxu0 %v3357
        %v4686 = vpop.f32.mrb[0].mxu0
        %v4687 = vadd.f32 %v4462, %v4686
        %v4688 = vpop.f32.mrb[0].mxu0
        %4689 = vmatprep.mubr.f32.mxu0 0.0
        %4690 = vmatmul.mubr.f32.gmra.mrb[0].mxu0 %v3366
        %v4691 = vpop.f32.mrb[0].mxu0
        %v4692 = vadd.f32 %v4467, %v4691
        %v4693 = vpop.f32.mrb[0].mxu0
        %4694 = vmatprep.mubr.f32.mxu0 0.0
        %4695 = vmatmul.mubr.f32.gmra.mrb[0].mxu0 %v3375
        %v4696 = vpop.f32.mrb[0].mxu0
        %v4697 = vadd.f32 %v4472, %v4696
        %v4698 = vpop.f32.mrb[0].mxu0
        %4699 = vmatprep.mubr.f32.mxu0 0.0
        %4700 = vmatmul.mubr.f32.gmra.mrb[0].mxu0 %v3384
        %v4701 = vpop.f32.mrb[0].mxu0
        %v4702 = vadd.f32 %v4477, %v4701
        %v4703 = vpop.f32.mrb[0].mxu0
        %4704 = vmatprep.mubr.f32.mxu0 0.0
        %4705 = vmatmul.mubr.f32.gmra.mrb[0].mxu0 %v3393
        %v4706 = vpop.f32.mrb[0].mxu0
        %v4707 = vadd.f32 %v4482, %v4706
        %v4708 = vpop.f32.mrb[0].mxu0
        %4709 = vmatprep.mubr.f32.mxu0 0.0
        %4710 = vmatmul.mubr.f32.gmra.mrb[0].mxu0 %v3402
        %v4711 = vpop.f32.mrb[0].mxu0
        %v4712 = vadd.f32 %v4487, %v4711
        %v4713 = vpop.f32.mrb[0].mxu0
        %4714 = vmatprep.mubr.f32.mxu0 0.0
        %4715 = vmatmul.mubr.f32.gmra.mrb[0].mxu0 %v3411
        %v4716 = vpop.f32.mrb[0].mxu0
        %v4717 = vadd.f32 %v4492, %v4716
        %v4718 = vpop.f32.mrb[0].mxu0
        %4719 = vdwg.mxu0
        %v4720 = vadd.f32 %v4562, %v3556
        %v4721 = vadd.f32 %v4567, %v3557
        %v4722 = vadd.f32 %v4572, %v3558
        %v4723 = vadd.f32 %v4577, %v3559
        %v4724 = vadd.f32 %v4582, %v3560
        %v4725 = vadd.f32 %v4587, %v3561
        %v4726 = vadd.f32 %v4592, %v3562
        %v4727 = vadd.f32 %v4597, %v3563
        %v4728 = vadd.f32 %v4602, %v3564
        %v4729 = vadd.f32 %v4607, %v3565
        %v4730 = vadd.f32 %v4612, %v3566
        %v4731 = vadd.f32 %v4617, %v3567
        %v4732 = vadd.f32 %v4622, %v3568
        %v4733 = vadd.f32 %v4627, %v3569
        %v4734 = vadd.f32 %v4632, %v3570
        %v4735 = vadd.f32 %v4637, %v3571
        %v4736 = vadd.f32 %v4642, %v3572
        %v4737 = vadd.f32 %v4647, %v3573
        %v4738 = vadd.f32 %v4652, %v3574
        %v4739 = vadd.f32 %v4657, %v3575
        %v4740 = vadd.f32 %v4662, %v3576
        %v4741 = vadd.f32 %v4667, %v3577
        %v4742 = vadd.f32 %v4672, %v3578
        %v4743 = vadd.f32 %v4677, %v3579
        %v4744 = vadd.f32 %v4682, %v3580
        %v4745 = vadd.f32 %v4687, %v3581
        %v4746 = vadd.f32 %v4692, %v3582
        %v4747 = vadd.f32 %v4697, %v3583
        %v4748 = vadd.f32 %v4702, %v3584
        %v4749 = vadd.f32 %v4707, %v3585
        %v4750 = vadd.f32 %v4712, %v3586
        %v4751 = vadd.f32 %v4717, %v3587
        %v4752 = vmax.f32 %v4720, 0.0
        %v4753 = vmax.f32 %v4721, 0.0
        %v4754 = vmax.f32 %v4722, 0.0
        %v4755 = vmax.f32 %v4723, 0.0
        %v4756 = vmax.f32 %v4724, 0.0
        %v4757 = vmax.f32 %v4725, 0.0
        %v4758 = vmax.f32 %v4726, 0.0
        %v4759 = vmax.f32 %v4727, 0.0
        %v4760 = vmax.f32 %v4728, 0.0
        %v4761 = vmax.f32 %v4729, 0.0
        %v4762 = vmax.f32 %v4730, 0.0
        %v4763 = vmax.f32 %v4731, 0.0
        %v4764 = vmax.f32 %v4732, 0.0
        %v4765 = vmax.f32 %v4733, 0.0
        %v4766 = vmax.f32 %v4734, 0.0
        %v4767 = vmax.f32 %v4735, 0.0
        %v4768 = vmax.f32 %v4736, 0.0
        %v4769 = vmax.f32 %v4737, 0.0
        %v4770 = vmax.f32 %v4738, 0.0
        %v4771 = vmax.f32 %v4739, 0.0
        %v4772 = vmax.f32 %v4740, 0.0
        %v4773 = vmax.f32 %v4741, 0.0
        %v4774 = vmax.f32 %v4742, 0.0
        %v4775 = vmax.f32 %v4743, 0.0
        %v4776 = vmax.f32 %v4744, 0.0
        %v4777 = vmax.f32 %v4745, 0.0
        %v4778 = vmax.f32 %v4746, 0.0
        %v4779 = vmax.f32 %v4747, 0.0
        %v4780 = vmax.f32 %v4748, 0.0
        %v4781 = vmax.f32 %v4749, 0.0
        %v4782 = vmax.f32 %v4750, 0.0
        %v4783 = vmax.f32 %v4751, 0.0
        %4784 = vst [vmem:[%s296] sm:$0xff] %v4752
        %4785 = vst [vmem:[%s296 + $0x8] sm:$0xff] %v4753
        %4786 = vst [vmem:[%s296 + $0x10] sm:$0xff] %v4754
        %4787 = vst [vmem:[%s296 + $0x18] sm:$0xff] %v4755
        %4788 = vst [vmem:[%s296 + $0x20] sm:$0xff] %v4756
        %4789 = vst [vmem:[%s296 + $0x28] sm:$0xff] %v4757
        %4790 = vst [vmem:[%s296 + $0x30] sm:$0xff] %v4758
        %4791 = vst [vmem:[%s296 + $0x38] sm:$0xff] %v4759
        %4792 = vst [vmem:[%s296 + $0x40] sm:$0xff] %v4760
        %4793 = vst [vmem:[%s296 + $0x48] sm:$0xff] %v4761
        %4794 = vst [vmem:[%s296 + $0x50] sm:$0xff] %v4762
        %4795 = vst [vmem:[%s296 + $0x58] sm:$0xff] %v4763
        %4796 = vst [vmem:[%s296 + $0x60] sm:$0xff] %v4764
        %4797 = vst [vmem:[%s296 + $0x68] sm:$0xff] %v4765
        %4798 = vst [vmem:[%s296 + $0x70] sm:$0xff] %v4766
        %4799 = vst [vmem:[%s296 + $0x78] sm:$0xff] %v4767
        %4800 = vst [vmem:[%s296 + $0x80] sm:$0xff] %v4768
        %4801 = vst [vmem:[%s296 + $0x88] sm:$0xff] %v4769
        %4802 = vst [vmem:[%s296 + $0x90] sm:$0xff] %v4770
        %4803 = vst [vmem:[%s296 + $0x98] sm:$0xff] %v4771
        %4804 = vst [vmem:[%s296 + $0xa0] sm:$0xff] %v4772
        %4805 = vst [vmem:[%s296 + $0xa8] sm:$0xff] %v4773
        %4806 = vst [vmem:[%s296 + $0xb0] sm:$0xff] %v4774
        %4807 = vst [vmem:[%s296 + $0xb8] sm:$0xff] %v4775
        %4808 = vst [vmem:[%s296 + $0xc0] sm:$0xff] %v4776
        %4809 = vst [vmem:[%s296 + $0xc8] sm:$0xff] %v4777
        %4810 = vst [vmem:[%s296 + $0xd0] sm:$0xff] %v4778
        %4811 = vst [vmem:[%s296 + $0xd8] sm:$0xff] %v4779
        %4812 = vst [vmem:[%s296 + $0xe0] sm:$0xff] %v4780
        %4813 = vst [vmem:[%s296 + $0xe8] sm:$0xff] %v4781
        %4814 = vst [vmem:[%s296 + $0xf0] sm:$0xff] %v4782
        %4815 = vst [vmem:[%s296 + $0xf8] sm:$0xff] %v4783
        %s4816 = sand.u32 %s142, 1
        %s4817 = scalar_lea.sflag [#allocation6], %s4816
        %s4818 = sand.u32 %s142, 1
        %s4819 = smul.addr %s4818, 256
        %s4820 = scalar_lea.vmem [#allocation13], %s4819
        // Predicated region
        $region61: #{tpu_custom_call.1} parent=39 // pred_check
          %p4821 = pneg %p152
        $region62: #{tpu_custom_call.1} parent=39 // pred_check_branch
          %4823 = sbr.rel (%p4821) target = $region64
        $region63: #{tpu_custom_call.1} parent=39 // pred_region
          %s4825 = ssub.s32 4096, 4096
          %4826 = vsyncadd %s4817, %s4825
          %s4827 = smul.addr %s24, 32
          %s4828 = smul.addr %s4827, 128
          %s4829 = scalar_lea.hbm %s5, %s4828
          %s4830 = sshll.u32 %s4820, 4
          %s4831 = int_to_ptr.vmem [resolvable:$true] %s4830
          %4836 = dma.vmem_to_hbm [thread:$0]  %s4831, 4096, %s4829, %s4817, 128, 128, 8
        $region64: #{tpu_custom_call.1} parent=39 // pred_fallthru
          _
      $region40: #{tpu_custom_call.1} parent=5 // pred_fallthru
        _
      %p4837 = scmp.le.s32.totalorder 2, %s19
      // Predicated region
      $region65: #{tpu_custom_call.1} parent=5 // pred_check
        %p4838 = pneg %p4837
      $region66: #{tpu_custom_call.1} parent=5 // pred_check_branch
        %4840 = sbr.rel (%p4838) target = $region68
      $region67: #{tpu_custom_call.1} parent=5 // pred_region
        %s4841 = ssub.s32 %s19, 2
        // Predicated region
        $region69: #{tpu_custom_call.1} parent=67 // pred_check
          %p4842 = pneg %p158
        $region70: #{tpu_custom_call.1} parent=67 // pred_check_branch
          %4844 = sbr.rel (%p4842) target = $region72
        $region71: #{tpu_custom_call.1} parent=67 // pred_region
          %s4845 = sand.u32 %s143, 1
          %s4846 = scalar_lea.sflag [#allocation6], %s4845
          %s4847 = sand.u32 %s143, 1
          %s4848 = smul.addr %s4847, 256
          %s4849 = scalar_lea.vmem [#allocation13], %s4848
          %4850 = dma.done %s4846, 4096
        $region72: #{tpu_custom_call.1} parent=67 // pred_fallthru
          _
      $region68: #{tpu_custom_call.1} parent=5 // pred_fallthru
        _
    $region6: #{tpu_custom_call.1} parent=1 // loop_footer
      %s23 = sadd.s32 1, %s19
    $region7: #{tpu_custom_call.1} parent=1 // loop_footer_branch
      %18 = sbr.rel target = $region3
    $region8: #{tpu_custom_call.1} parent=1 // loop_exit
      _
    %4851 = vsyncpa [#allocation5], 1
    %s4852 = scalar_lea.sflag [#allocation5], 1
    %4853 = vsyncpa %s4852, 1
    %4854 = vsyncpa [#allocation8], 1
    %4855 = vsyncpa [#allocation11], 1
    %4856 = vsyncpa [#allocation6], 1
    %s4857 = scalar_lea.sflag [#allocation6], 1
    %4858 = vsyncpa %s4857, 1

</llo_original>
